<compile_context>
chip_gen: v6e
topology: v6e:2x2x1
jax: 0.10.0
libtpu: 0.0.40
codegen_flags: <defaults>
</compile_context>

<pallas_src>
import jax
import jax.numpy as jnp
from jax import lax
from jax.experimental import pallas as pl
from jax.experimental.pallas import tpu as pltpu


# ----------------------------- Pallas kernel ----------------------------- #

def _conv_bn_relu_kernel(p_ref, w_ref, scale_ref, shift_ref, o_ref):
    # p_ref: (1, K, TM) bf16 patches^T tile; w_ref: (E, K) bf16 weights.
    acc = jnp.dot(w_ref[...], p_ref[0], preferred_element_type=jnp.float32)  # (E, TM) f32
    y = acc * scale_ref[...] + shift_ref[...]                                # (E, 1) bcast over lanes
    o_ref[0] = jnp.maximum(y, 0.0).astype(o_ref.dtype)


# ------------------------------ host helpers ------------------------------ #

def _im2col_k3p1_T(x, stride):
    """x: [B, C, H, W] -> patches^T [B, C*9, Ho*Wo]; feature order (c, kh, kw)."""
    B, C, H, W = x.shape
    Ho = (H + 2 - 3) // stride + 1
    Wo = (W + 2 - 3) // stride + 1
    xp = jnp.pad(x, ((0, 0), (0, 0), (1, 1), (1, 1)))
    cols = []
    for kh in range(3):
        for kw in range(3):
            cols.append(xp[:, :,
                           kh:kh + stride * (Ho - 1) + 1:stride,
                           kw:kw + stride * (Wo - 1) + 1:stride])  # [B, C, Ho, Wo]
    cols = jnp.stack(cols, axis=2)                                  # [B, C, 9, Ho, Wo]
    return cols.reshape(B, C * 9, Ho * Wo), (Ho, Wo)


def _pick_tile(K, E, HoWo):
    """Largest lane-dense spatial tile whose double-buffered working set fits VMEM."""
    if HoWo <= 1024:
        return HoWo
    budget = 24 * 1024 * 1024                      # headroom under 32 MiB scoped default
    w_bytes = 2 * (E * K * 2)                      # bf16 weights, double-buffered
    tm = 1024
    while tm > 128:
        tiles = 2 * (K * tm * 2 + E * tm * 4)      # bf16 patches + f32 out, double-buffered
        if w_bytes + tiles <= budget:
            break
        tm //= 2
    return tm


def conv3x3_bn_relu(x, params, *, stride, eps=1e-5):
    """Fused Conv2d(3x3, stride, pad=1, no bias) + BatchNorm2d(inference) + ReLU.

    x: [B, Cin, H, W] f32;  params: dict(w[E,Cin,3,3], gamma,beta,mean,var [E]).
    Returns [B, E, Ho, Wo] f32.
    """
    B, Cin, H, W = x.shape
    E = params["w"].shape[0]
    K = Cin * 9

    patches_t, (Ho, Wo) = _im2col_k3p1_T(x.astype(jnp.bfloat16), stride)  # [B, K, HoWo]
    HoWo = Ho * Wo
    w2d = params["w"].reshape(E, K).astype(jnp.bfloat16)                  # [E, K]

    # Fold BatchNorm (running stats) into per-channel scale/shift.
    inv_std = params["gamma"] / jnp.sqrt(params["var"] + eps)
    scale = inv_std.reshape(E, 1).astype(jnp.float32)
    shift = (params["beta"] - params["mean"] * inv_std).reshape(E, 1).astype(jnp.float32)

    TM = _pick_tile(K, E, HoWo)
    nm = pl.cdiv(HoWo, TM)

    flops = 2 * B * HoWo * K * E
    bytes_accessed = (B * K * HoWo * 2      # bf16 patches read
                      + E * K * 2           # bf16 weights read
                      + 2 * E * 4           # scale/shift
                      + B * E * HoWo * 4)   # f32 output write

    out = pl.pallas_call(
        _conv_bn_relu_kernel,
        out_shape=jax.ShapeDtypeStruct((B, E, HoWo), jnp.float32),
        grid_spec=pltpu.PrefetchScalarGridSpec(
            num_scalar_prefetch=0,
            grid=(B, nm),
            in_specs=[
                pl.BlockSpec((1, K, TM), lambda b, m: (b, 0, m)),  # patches^T tile
                pl.BlockSpec((E, K), lambda b, m: (0, 0)),         # weights (resident)
                pl.BlockSpec((E, 1), lambda b, m: (0, 0)),         # BN scale
                pl.BlockSpec((E, 1), lambda b, m: (0, 0)),         # BN shift
            ],
            out_specs=pl.BlockSpec((1, E, TM), lambda b, m: (b, 0, m)),
        ),
        compiler_params=pltpu.CompilerParams(
            dimension_semantics=("parallel", "parallel")),
        cost_estimate=pl.CostEstimate(
            flops=flops, transcendentals=0, bytes_accessed=bytes_accessed),
    )(patches_t, w2d, scale, shift)

    return out.reshape(B, E, Ho, Wo)   # pure reshape -> NCHW, no transpose


# --------------------------- module-level forwards --------------------------- #

def patch_embed_forward(x, params):
    """PatchEmbed: conv(s2) -> BN -> ReLU."""
    return conv3x3_bn_relu(x, params, stride=2)


def patch_embed_stage1_forward(x, p1, p2, p3):
    """PatchEmbed_stage1: conv(s2)+BN+ReLU -> conv(s1)+BN+ReLU -> conv(s2)+BN+ReLU."""
    x = conv3x3_bn_relu(x, p1, stride=2)
    x = conv3x3_bn_relu(x, p2, stride=1)
    x = conv3x3_bn_relu(x, p3, stride=2)
    return x


def dgmn2_patch_embed_forward(x, params):
    """DGMN2 forward through the patch-embedding path (transformer blocks omitted,
    see TODO at top).  Returns the stride-8/16/32 feature maps ('0','1','2')."""
    x = patch_embed_stage1_forward(x, params["pe1_1"], params["pe1_2"], params["pe1_3"])
    x = patch_embed_forward(x, params["pe2"])
    out0 = x
    x = patch_embed_forward(x, params["pe3"])
    out1 = x
    x = patch_embed_forward(x, params["pe4"])
    out2 = x
    return {"0": out0, "1": out1, "2": out2}


# ------------------------------- reference ------------------------------- #

def _ref_conv_bn_relu(x, params, *, stride, eps=1e-5):
    y = lax.conv_general_dilated(
        x.astype(jnp.bfloat16), params["w"].astype(jnp.bfloat16),
        window_strides=(stride, stride), padding=((1, 1), (1, 1)),
        dimension_numbers=("NCHW", "OIHW", "NCHW"),
        preferred_element_type=jnp.float32)
    inv_std = params["gamma"] / jnp.sqrt(params["var"] + eps)
    scale = inv_std.reshape(1, -1, 1, 1)
    shift = (params["beta"] - params["mean"] * inv_std).reshape(1, -1, 1, 1)
    return jnp.maximum(y * scale + shift, 0.0)


def _ref_pipeline(x, params):
    x = _ref_conv_bn_relu(x, params["pe1_1"], stride=2)
    x = _ref_conv_bn_relu(x, params["pe1_2"], stride=1)
    x = _ref_conv_bn_relu(x, params["pe1_3"], stride=2)
    x = _ref_conv_bn_relu(x, params["pe2"], stride=2)
    out0 = x
    x = _ref_conv_bn_relu(x, params["pe3"], stride=2)
    out1 = x
    x = _ref_conv_bn_relu(x, params["pe4"], stride=2)
    return {"0": out0, "1": out1, "2": x}


# --------------------------------- main --------------------------------- #

def _make_layer_params(key, cin, cout):
    kw, kg, kb, km, kv = jax.random.split(key, 5)
    w_scale = (cin * 9) ** -0.5
    return dict(
        w=jax.random.normal(kw, (cout, cin, 3, 3), dtype=jnp.float32) * w_scale,
        gamma=1.0 + 0.1 * jax.random.normal(kg, (cout,), dtype=jnp.float32),
        beta=0.1 * jax.random.normal(kb, (cout,), dtype=jnp.float32),
        mean=0.1 * jax.random.normal(km, (cout,), dtype=jnp.float32),
        var=jnp.abs(1.0 + 0.1 * jax.random.normal(kv, (cout,), dtype=jnp.float32)),
    )


if __name__ == "__main__":
    key = jax.random.PRNGKey(0)
    k_x, k1, k2, k3, k4, k5, k6 = jax.random.split(key, 7)

    # Small DGMN2-like configuration: in_chans=3, embed_dims=(16,32,64,128), mid=8.
    B, Cin, H, W = 2, 3, 64, 64
    embed_dims = (16, 32, 64, 128)
    mid = embed_dims[0] // 2

    x = jax.random.normal(k_x, (B, Cin, H, W), dtype=jnp.float32)
    params = {
        "pe1_1": _make_layer_params(k1, Cin, mid),
        "pe1_2": _make_layer_params(k2, mid, mid),
        "pe1_3": _make_layer_params(k3, mid, embed_dims[0]),
        "pe2": _make_layer_params(k4, embed_dims[0], embed_dims[1]),
        "pe3": _make_layer_params(k5, embed_dims[1], embed_dims[2]),
        "pe4": _make_layer_params(k6, embed_dims[2], embed_dims[3]),
    }

    fwd = jax.jit(dgmn2_patch_embed_forward)
    out = fwd(x, params)
    out = jax.block_until_ready(out)

    ref = _ref_pipeline(x, params)

    assert out["0"].shape == (B, embed_dims[1], H // 8, W // 8), out["0"].shape
    assert out["1"].shape == (B, embed_dims[2], H // 16, W // 16), out["1"].shape
    assert out["2"].shape == (B, embed_dims[3], H // 32, W // 32), out["2"].shape
    for k in ("0", "1", "2"):
        err = float(jnp.max(jnp.abs(out[k] - ref[k])))
        assert jnp.allclose(out[k], ref[k], atol=5e-2, rtol=5e-2), (k, err)

    print("KERNEL_OK")
</pallas_src>

<mosaic_0001>
module attributes {stable_mosaic.version = 11 : i64} {
  func.func @_conv_bn_relu_kernel(%arg0: i32, %arg1: i32, %arg2: memref<1x27x1024xbf16, #tpu.memory_space<vmem>>, %arg3: memref<8x27xbf16, #tpu.memory_space<vmem>>, %arg4: memref<8x1xf32, #tpu.memory_space<vmem>>, %arg5: memref<8x1xf32, #tpu.memory_space<vmem>>, %arg6: memref<1x8x1024xf32, #tpu.memory_space<vmem>>) attributes {dimension_semantics = [#tpu.dimension_semantics<parallel>, #tpu.dimension_semantics<parallel>], iteration_bounds = array<i64: 2, 1>, scalar_prefetch = 0 : i64, scratch_operands = 0 : i64, tpu.core_type = #tpu.core_type<tc>, window_params = [{transform_indices = @transform_0, window_bounds = array<i64: 1, 27, 1024>}, {pipeline_mode = #tpu.pipeline_mode<synchronous>, transform_indices = @transform_1, window_bounds = array<i64: 8, 27>}, {pipeline_mode = #tpu.pipeline_mode<synchronous>, transform_indices = @transform_2, window_bounds = array<i64: 8, 1>}, {pipeline_mode = #tpu.pipeline_mode<synchronous>, transform_indices = @transform_3, window_bounds = array<i64: 8, 1>}, {transform_indices = @transform_4, window_bounds = array<i64: 1, 8, 1024>}]} {
    %c0 = arith.constant 0 : index
    %c0_0 = arith.constant 0 : index
    %0 = vector.load %arg3[%c0, %c0_0] : memref<8x27xbf16, #tpu.memory_space<vmem>>, vector<8x27xbf16>
    %c0_1 = arith.constant 0 : index
    %c0_2 = arith.constant 0 : index
    %c0_3 = arith.constant 0 : index
    %1 = vector.load %arg2[%c0_1, %c0_2, %c0_3] : memref<1x27x1024xbf16, #tpu.memory_space<vmem>>, vector<1x27x1024xbf16>
    %2 = vector.shape_cast %1 : vector<1x27x1024xbf16> to vector<27x1024xbf16>
    %cst = arith.constant dense<0.000000e+00> : vector<8x1024xf32>
    %3 = tpu.matmul %0, %2, %cst {dimension_numbers = #tpu.dot_dimension_numbers<[1], [0], [0], [1], [0, 0, 1, 1], [], []>} : vector<8x27xbf16>, vector<27x1024xbf16>, vector<8x1024xf32> -> vector<8x1024xf32>
    %c0_4 = arith.constant 0 : index
    %c0_5 = arith.constant 0 : index
    %4 = vector.load %arg4[%c0_4, %c0_5] : memref<8x1xf32, #tpu.memory_space<vmem>>, vector<8x1xf32>
    %5 = vector.broadcast %4 : vector<8x1xf32> to vector<8x1024xf32>
    %6 = arith.mulf %3, %5 : vector<8x1024xf32>
    %c0_6 = arith.constant 0 : index
    %c0_7 = arith.constant 0 : index
    %7 = vector.load %arg5[%c0_6, %c0_7] : memref<8x1xf32, #tpu.memory_space<vmem>>, vector<8x1xf32>
    %8 = vector.broadcast %7 : vector<8x1xf32> to vector<8x1024xf32>
    %9 = arith.addf %6, %8 : vector<8x1024xf32>
    %cst_8 = arith.constant 0.000000e+00 : f32
    %10 = vector.broadcast %cst_8 : f32 to vector<8x1024xf32>
    %11 = arith.maximumf %9, %10 : vector<8x1024xf32>
    %c0_9 = arith.constant 0 : index
    %c0_10 = arith.constant 0 : index
    %c0_11 = arith.constant 0 : index
    %12 = vector.load %arg6[%c0_9, %c0_10, %c0_11] : memref<1x8x1024xf32, #tpu.memory_space<vmem>>, vector<1x8x1024xf32>
    %13 = vector.shape_cast %12 : vector<1x8x1024xf32> to vector<8x1024xf32>
    %14 = vector.shape_cast %11 : vector<8x1024xf32> to vector<1x8x1024xf32>
    tpu.vector_store %arg6[%c0_9, %c0_10, %c0_11], %14 {strides = array<i32>} : memref<1x8x1024xf32, #tpu.memory_space<vmem>>, vector<1x8x1024xf32>,
    return
  }
  func.func @transform_0(%arg0: i32, %arg1: i32) -> (i32, i32, i32) {
    %c0_i32 = arith.constant 0 : i32
    %c0_i32_0 = arith.constant 0 : i32
    return %arg0, %c0_i32, %arg1 : i32, i32, i32
  }
  func.func @transform_1(%arg0: i32, %arg1: i32) -> (i32, i32) {
    %c0_i32 = arith.constant 0 : i32
    %c0_i32_0 = arith.constant 0 : i32
    %c0_i32_1 = arith.constant 0 : i32
    return %c0_i32, %c0_i32_0 : i32, i32
  }
  func.func @transform_2(%arg0: i32, %arg1: i32) -> (i32, i32) {
    %c0_i32 = arith.constant 0 : i32
    %c0_i32_0 = arith.constant 0 : i32
    %c0_i32_1 = arith.constant 0 : i32
    return %c0_i32, %c0_i32_0 : i32, i32
  }
  func.func @transform_3(%arg0: i32, %arg1: i32) -> (i32, i32) {
    %c0_i32 = arith.constant 0 : i32
    %c0_i32_0 = arith.constant 0 : i32
    %c0_i32_1 = arith.constant 0 : i32
    return %c0_i32, %c0_i32_0 : i32, i32
  }
  func.func @transform_4(%arg0: i32, %arg1: i32) -> (i32, i32, i32) {
    %c0_i32 = arith.constant 0 : i32
    %c0_i32_0 = arith.constant 0 : i32
    return %arg0, %c0_i32, %arg1 : i32, i32, i32
  }
}

module attributes {stable_mosaic.version = 11 : i64} {
  func.func @_conv_bn_relu_kernel(%arg0: i32, %arg1: i32, %arg2: memref<1x72x1024xbf16, #tpu.memory_space<vmem>>, %arg3: memref<8x72xbf16, #tpu.memory_space<vmem>>, %arg4: memref<8x1xf32, #tpu.memory_space<vmem>>, %arg5: memref<8x1xf32, #tpu.memory_space<vmem>>, %arg6: memref<1x8x1024xf32, #tpu.memory_space<vmem>>) attributes {dimension_semantics = [#tpu.dimension_semantics<parallel>, #tpu.dimension_semantics<parallel>], iteration_bounds = array<i64: 2, 1>, scalar_prefetch = 0 : i64, scratch_operands = 0 : i64, tpu.core_type = #tpu.core_type<tc>, window_params = [{transform_indices = @transform_0, window_bounds = array<i64: 1, 72, 1024>}, {pipeline_mode = #tpu.pipeline_mode<synchronous>, transform_indices = @transform_1, window_bounds = array<i64: 8, 72>}, {pipeline_mode = #tpu.pipeline_mode<synchronous>, transform_indices = @transform_2, window_bounds = array<i64: 8, 1>}, {pipeline_mode = #tpu.pipeline_mode<synchronous>, transform_indices = @transform_3, window_bounds = array<i64: 8, 1>}, {transform_indices = @transform_4, window_bounds = array<i64: 1, 8, 1024>}]} {
    %c0 = arith.constant 0 : index
    %c0_0 = arith.constant 0 : index
    %0 = vector.load %arg3[%c0, %c0_0] : memref<8x72xbf16, #tpu.memory_space<vmem>>, vector<8x72xbf16>
    %c0_1 = arith.constant 0 : index
    %c0_2 = arith.constant 0 : index
    %c0_3 = arith.constant 0 : index
    %1 = vector.load %arg2[%c0_1, %c0_2, %c0_3] : memref<1x72x1024xbf16, #tpu.memory_space<vmem>>, vector<1x72x1024xbf16>
    %2 = vector.shape_cast %1 : vector<1x72x1024xbf16> to vector<72x1024xbf16>
    %cst = arith.constant dense<0.000000e+00> : vector<8x1024xf32>
    %3 = tpu.matmul %0, %2, %cst {dimension_numbers = #tpu.dot_dimension_numbers<[1], [0], [0], [1], [0, 0, 1, 1], [], []>} : vector<8x72xbf16>, vector<72x1024xbf16>, vector<8x1024xf32> -> vector<8x1024xf32>
    %c0_4 = arith.constant 0 : index
    %c0_5 = arith.constant 0 : index
    %4 = vector.load %arg4[%c0_4, %c0_5] : memref<8x1xf32, #tpu.memory_space<vmem>>, vector<8x1xf32>
    %5 = vector.broadcast %4 : vector<8x1xf32> to vector<8x1024xf32>
    %6 = arith.mulf %3, %5 : vector<8x1024xf32>
    %c0_6 = arith.constant 0 : index
    %c0_7 = arith.constant 0 : index
    %7 = vector.load %arg5[%c0_6, %c0_7] : memref<8x1xf32, #tpu.memory_space<vmem>>, vector<8x1xf32>
    %8 = vector.broadcast %7 : vector<8x1xf32> to vector<8x1024xf32>
    %9 = arith.addf %6, %8 : vector<8x1024xf32>
    %cst_8 = arith.constant 0.000000e+00 : f32
    %10 = vector.broadcast %cst_8 : f32 to vector<8x1024xf32>
    %11 = arith.maximumf %9, %10 : vector<8x1024xf32>
    %c0_9 = arith.constant 0 : index
    %c0_10 = arith.constant 0 : index
    %c0_11 = arith.constant 0 : index
    %12 = vector.load %arg6[%c0_9, %c0_10, %c0_11] : memref<1x8x1024xf32, #tpu.memory_space<vmem>>, vector<1x8x1024xf32>
    %13 = vector.shape_cast %12 : vector<1x8x1024xf32> to vector<8x1024xf32>
    %14 = vector.shape_cast %11 : vector<8x1024xf32> to vector<1x8x1024xf32>
    tpu.vector_store %arg6[%c0_9, %c0_10, %c0_11], %14 {strides = array<i32>} : memref<1x8x1024xf32, #tpu.memory_space<vmem>>, vector<1x8x1024xf32>,
    return
  }
  func.func @transform_0(%arg0: i32, %arg1: i32) -> (i32, i32, i32) {
    %c0_i32 = arith.constant 0 : i32
    %c0_i32_0 = arith.constant 0 : i32
    return %arg0, %c0_i32, %arg1 : i32, i32, i32
  }
  func.func @transform_1(%arg0: i32, %arg1: i32) -> (i32, i32) {
    %c0_i32 = arith.constant 0 : i32
    %c0_i32_0 = arith.constant 0 : i32
    %c0_i32_1 = arith.constant 0 : i32
    return %c0_i32, %c0_i32_0 : i32, i32
  }
  func.func @transform_2(%arg0: i32, %arg1: i32) -> (i32, i32) {
    %c0_i32 = arith.constant 0 : i32
    %c0_i32_0 = arith.constant 0 : i32
    %c0_i32_1 = arith.constant 0 : i32
    return %c0_i32, %c0_i32_0 : i32, i32
  }
  func.func @transform_3(%arg0: i32, %arg1: i32) -> (i32, i32) {
    %c0_i32 = arith.constant 0 : i32
    %c0_i32_0 = arith.constant 0 : i32
    %c0_i32_1 = arith.constant 0 : i32
    return %c0_i32, %c0_i32_0 : i32, i32
  }
  func.func @transform_4(%arg0: i32, %arg1: i32) -> (i32, i32, i32) {
    %c0_i32 = arith.constant 0 : i32
    %c0_i32_0 = arith.constant 0 : i32
    return %arg0, %c0_i32, %arg1 : i32, i32, i32
  }
}

module attributes {stable_mosaic.version = 11 : i64} {
  func.func @_conv_bn_relu_kernel(%arg0: i32, %arg1: i32, %arg2: memref<1x72x256xbf16, #tpu.memory_space<vmem>>, %arg3: memref<16x72xbf16, #tpu.memory_space<vmem>>, %arg4: memref<16x1xf32, #tpu.memory_space<vmem>>, %arg5: memref<16x1xf32, #tpu.memory_space<vmem>>, %arg6: memref<1x16x256xf32, #tpu.memory_space<vmem>>) attributes {dimension_semantics = [#tpu.dimension_semantics<parallel>, #tpu.dimension_semantics<parallel>], iteration_bounds = array<i64: 2, 1>, scalar_prefetch = 0 : i64, scratch_operands = 0 : i64, tpu.core_type = #tpu.core_type<tc>, window_params = [{transform_indices = @transform_0, window_bounds = array<i64: 1, 72, 256>}, {pipeline_mode = #tpu.pipeline_mode<synchronous>, transform_indices = @transform_1, window_bounds = array<i64: 16, 72>}, {pipeline_mode = #tpu.pipeline_mode<synchronous>, transform_indices = @transform_2, window_bounds = array<i64: 16, 1>}, {pipeline_mode = #tpu.pipeline_mode<synchronous>, transform_indices = @transform_3, window_bounds = array<i64: 16, 1>}, {transform_indices = @transform_4, window_bounds = array<i64: 1, 16, 256>}]} {
    %c0 = arith.constant 0 : index
    %c0_0 = arith.constant 0 : index
    %0 = vector.load %arg3[%c0, %c0_0] : memref<16x72xbf16, #tpu.memory_space<vmem>>, vector<16x72xbf16>
    %c0_1 = arith.constant 0 : index
    %c0_2 = arith.constant 0 : index
    %c0_3 = arith.constant 0 : index
    %1 = vector.load %arg2[%c0_1, %c0_2, %c0_3] : memref<1x72x256xbf16, #tpu.memory_space<vmem>>, vector<1x72x256xbf16>
    %2 = vector.shape_cast %1 : vector<1x72x256xbf16> to vector<72x256xbf16>
    %cst = arith.constant dense<0.000000e+00> : vector<16x256xf32>
    %3 = tpu.matmul %0, %2, %cst {dimension_numbers = #tpu.dot_dimension_numbers<[1], [0], [0], [1], [0, 0, 1, 1], [], []>} : vector<16x72xbf16>, vector<72x256xbf16>, vector<16x256xf32> -> vector<16x256xf32>
    %c0_4 = arith.constant 0 : index
    %c0_5 = arith.constant 0 : index
    %4 = vector.load %arg4[%c0_4, %c0_5] : memref<16x1xf32, #tpu.memory_space<vmem>>, vector<16x1xf32>
    %5 = vector.broadcast %4 : vector<16x1xf32> to vector<16x256xf32>
    %6 = arith.mulf %3, %5 : vector<16x256xf32>
    %c0_6 = arith.constant 0 : index
    %c0_7 = arith.constant 0 : index
    %7 = vector.load %arg5[%c0_6, %c0_7] : memref<16x1xf32, #tpu.memory_space<vmem>>, vector<16x1xf32>
    %8 = vector.broadcast %7 : vector<16x1xf32> to vector<16x256xf32>
    %9 = arith.addf %6, %8 : vector<16x256xf32>
    %cst_8 = arith.constant 0.000000e+00 : f32
    %10 = vector.broadcast %cst_8 : f32 to vector<16x256xf32>
    %11 = arith.maximumf %9, %10 : vector<16x256xf32>
    %c0_9 = arith.constant 0 : index
    %c0_10 = arith.constant 0 : index
    %c0_11 = arith.constant 0 : index
    %12 = vector.load %arg6[%c0_9, %c0_10, %c0_11] : memref<1x16x256xf32, #tpu.memory_space<vmem>>, vector<1x16x256xf32>
    %13 = vector.shape_cast %12 : vector<1x16x256xf32> to vector<16x256xf32>
    %14 = vector.shape_cast %11 : vector<16x256xf32> to vector<1x16x256xf32>
    tpu.vector_store %arg6[%c0_9, %c0_10, %c0_11], %14 {strides = array<i32>} : memref<1x16x256xf32, #tpu.memory_space<vmem>>, vector<1x16x256xf32>,
    return
  }
  func.func @transform_0(%arg0: i32, %arg1: i32) -> (i32, i32, i32) {
    %c0_i32 = arith.constant 0 : i32
    %c0_i32_0 = arith.constant 0 : i32
    return %arg0, %c0_i32, %arg1 : i32, i32, i32
  }
  func.func @transform_1(%arg0: i32, %arg1: i32) -> (i32, i32) {
    %c0_i32 = arith.constant 0 : i32
    %c0_i32_0 = arith.constant 0 : i32
    %c0_i32_1 = arith.constant 0 : i32
    return %c0_i32, %c0_i32_0 : i32, i32
  }
  func.func @transform_2(%arg0: i32, %arg1: i32) -> (i32, i32) {
    %c0_i32 = arith.constant 0 : i32
    %c0_i32_0 = arith.constant 0 : i32
    %c0_i32_1 = arith.constant 0 : i32
    return %c0_i32, %c0_i32_0 : i32, i32
  }
  func.func @transform_3(%arg0: i32, %arg1: i32) -> (i32, i32) {
    %c0_i32 = arith.constant 0 : i32
    %c0_i32_0 = arith.constant 0 : i32
    %c0_i32_1 = arith.constant 0 : i32
    return %c0_i32, %c0_i32_0 : i32, i32
  }
  func.func @transform_4(%arg0: i32, %arg1: i32) -> (i32, i32, i32) {
    %c0_i32 = arith.constant 0 : i32
    %c0_i32_0 = arith.constant 0 : i32
    return %arg0, %c0_i32, %arg1 : i32, i32, i32
  }
}

module attributes {stable_mosaic.version = 11 : i64} {
  func.func @_conv_bn_relu_kernel(%arg0: i32, %arg1: i32, %arg2: memref<1x144x64xbf16, #tpu.memory_space<vmem>>, %arg3: memref<32x144xbf16, #tpu.memory_space<vmem>>, %arg4: memref<32x1xf32, #tpu.memory_space<vmem>>, %arg5: memref<32x1xf32, #tpu.memory_space<vmem>>, %arg6: memref<1x32x64xf32, #tpu.memory_space<vmem>>) attributes {dimension_semantics = [#tpu.dimension_semantics<parallel>, #tpu.dimension_semantics<parallel>], iteration_bounds = array<i64: 2, 1>, scalar_prefetch = 0 : i64, scratch_operands = 0 : i64, tpu.core_type = #tpu.core_type<tc>, window_params = [{transform_indices = @transform_0, window_bounds = array<i64: 1, 144, 64>}, {pipeline_mode = #tpu.pipeline_mode<synchronous>, transform_indices = @transform_1, window_bounds = array<i64: 32, 144>}, {pipeline_mode = #tpu.pipeline_mode<synchronous>, transform_indices = @transform_2, window_bounds = array<i64: 32, 1>}, {pipeline_mode = #tpu.pipeline_mode<synchronous>, transform_indices = @transform_3, window_bounds = array<i64: 32, 1>}, {transform_indices = @transform_4, window_bounds = array<i64: 1, 32, 64>}]} {
    %c0 = arith.constant 0 : index
    %c0_0 = arith.constant 0 : index
    %0 = vector.load %arg3[%c0, %c0_0] : memref<32x144xbf16, #tpu.memory_space<vmem>>, vector<32x144xbf16>
    %c0_1 = arith.constant 0 : index
    %c0_2 = arith.constant 0 : index
    %c0_3 = arith.constant 0 : index
    %1 = vector.load %arg2[%c0_1, %c0_2, %c0_3] : memref<1x144x64xbf16, #tpu.memory_space<vmem>>, vector<1x144x64xbf16>
    %2 = vector.shape_cast %1 : vector<1x144x64xbf16> to vector<144x64xbf16>
    %cst = arith.constant dense<0.000000e+00> : vector<32x64xf32>
    %3 = tpu.matmul %0, %2, %cst {dimension_numbers = #tpu.dot_dimension_numbers<[1], [0], [0], [1], [0, 0, 1, 1], [], []>} : vector<32x144xbf16>, vector<144x64xbf16>, vector<32x64xf32> -> vector<32x64xf32>
    %c0_4 = arith.constant 0 : index
    %c0_5 = arith.constant 0 : index
    %4 = vector.load %arg4[%c0_4, %c0_5] : memref<32x1xf32, #tpu.memory_space<vmem>>, vector<32x1xf32>
    %5 = vector.broadcast %4 : vector<32x1xf32> to vector<32x64xf32>
    %6 = arith.mulf %3, %5 : vector<32x64xf32>
    %c0_6 = arith.constant 0 : index
    %c0_7 = arith.constant 0 : index
    %7 = vector.load %arg5[%c0_6, %c0_7] : memref<32x1xf32, #tpu.memory_space<vmem>>, vector<32x1xf32>
    %8 = vector.broadcast %7 : vector<32x1xf32> to vector<32x64xf32>
    %9 = arith.addf %6, %8 : vector<32x64xf32>
    %cst_8 = arith.constant 0.000000e+00 : f32
    %10 = vector.broadcast %cst_8 : f32 to vector<32x64xf32>
    %11 = arith.maximumf %9, %10 : vector<32x64xf32>
    %c0_9 = arith.constant 0 : index
    %c0_10 = arith.constant 0 : index
    %c0_11 = arith.constant 0 : index
    %12 = vector.load %arg6[%c0_9, %c0_10, %c0_11] : memref<1x32x64xf32, #tpu.memory_space<vmem>>, vector<1x32x64xf32>
    %13 = vector.shape_cast %12 : vector<1x32x64xf32> to vector<32x64xf32>
    %14 = vector.shape_cast %11 : vector<32x64xf32> to vector<1x32x64xf32>
    tpu.vector_store %arg6[%c0_9, %c0_10, %c0_11], %14 {strides = array<i32>} : memref<1x32x64xf32, #tpu.memory_space<vmem>>, vector<1x32x64xf32>,
    return
  }
  func.func @transform_0(%arg0: i32, %arg1: i32) -> (i32, i32, i32) {
    %c0_i32 = arith.constant 0 : i32
    %c0_i32_0 = arith.constant 0 : i32
    return %arg0, %c0_i32, %arg1 : i32, i32, i32
  }
  func.func @transform_1(%arg0: i32, %arg1: i32) -> (i32, i32) {
    %c0_i32 = arith.constant 0 : i32
    %c0_i32_0 = arith.constant 0 : i32
    %c0_i32_1 = arith.constant 0 : i32
    return %c0_i32, %c0_i32_0 : i32, i32
  }
  func.func @transform_2(%arg0: i32, %arg1: i32) -> (i32, i32) {
    %c0_i32 = arith.constant 0 : i32
    %c0_i32_0 = arith.constant 0 : i32
    %c0_i32_1 = arith.constant 0 : i32
    return %c0_i32, %c0_i32_0 : i32, i32
  }
  func.func @transform_3(%arg0: i32, %arg1: i32) -> (i32, i32) {
    %c0_i32 = arith.constant 0 : i32
    %c0_i32_0 = arith.constant 0 : i32
    %c0_i32_1 = arith.constant 0 : i32
    return %c0_i32, %c0_i32_0 : i32, i32
  }
  func.func @transform_4(%arg0: i32, %arg1: i32) -> (i32, i32, i32) {
    %c0_i32 = arith.constant 0 : i32
    %c0_i32_0 = arith.constant 0 : i32
    return %arg0, %c0_i32, %arg1 : i32, i32, i32
  }
}

module attributes {stable_mosaic.version = 11 : i64} {
  func.func @_conv_bn_relu_kernel(%arg0: i32, %arg1: i32, %arg2: memref<1x288x16xbf16, #tpu.memory_space<vmem>>, %arg3: memref<64x288xbf16, #tpu.memory_space<vmem>>, %arg4: memref<64x1xf32, #tpu.memory_space<vmem>>, %arg5: memref<64x1xf32, #tpu.memory_space<vmem>>, %arg6: memref<1x64x16xf32, #tpu.memory_space<vmem>>) attributes {dimension_semantics = [#tpu.dimension_semantics<parallel>, #tpu.dimension_semantics<parallel>], iteration_bounds = array<i64: 2, 1>, scalar_prefetch = 0 : i64, scratch_operands = 0 : i64, tpu.core_type = #tpu.core_type<tc>, window_params = [{transform_indices = @transform_0, window_bounds = array<i64: 1, 288, 16>}, {pipeline_mode = #tpu.pipeline_mode<synchronous>, transform_indices = @transform_1, window_bounds = array<i64: 64, 288>}, {pipeline_mode = #tpu.pipeline_mode<synchronous>, transform_indices = @transform_2, window_bounds = array<i64: 64, 1>}, {pipeline_mode = #tpu.pipeline_mode<synchronous>, transform_indices = @transform_3, window_bounds = array<i64: 64, 1>}, {transform_indices = @transform_4, window_bounds = array<i64: 1, 64, 16>}]} {
    %c0 = arith.constant 0 : index
    %c0_0 = arith.constant 0 : index
    %0 = vector.load %arg3[%c0, %c0_0] : memref<64x288xbf16, #tpu.memory_space<vmem>>, vector<64x288xbf16>
    %c0_1 = arith.constant 0 : index
    %c0_2 = arith.constant 0 : index
    %c0_3 = arith.constant 0 : index
    %1 = vector.load %arg2[%c0_1, %c0_2, %c0_3] : memref<1x288x16xbf16, #tpu.memory_space<vmem>>, vector<1x288x16xbf16>
    %2 = vector.shape_cast %1 : vector<1x288x16xbf16> to vector<288x16xbf16>
    %cst = arith.constant dense<0.000000e+00> : vector<64x16xf32>
    %3 = tpu.matmul %0, %2, %cst {dimension_numbers = #tpu.dot_dimension_numbers<[1], [0], [0], [1], [0, 0, 1, 1], [], []>} : vector<64x288xbf16>, vector<288x16xbf16>, vector<64x16xf32> -> vector<64x16xf32>
    %c0_4 = arith.constant 0 : index
    %c0_5 = arith.constant 0 : index
    %4 = vector.load %arg4[%c0_4, %c0_5] : memref<64x1xf32, #tpu.memory_space<vmem>>, vector<64x1xf32>
    %5 = vector.broadcast %4 : vector<64x1xf32> to vector<64x16xf32>
    %6 = arith.mulf %3, %5 : vector<64x16xf32>
    %c0_6 = arith.constant 0 : index
    %c0_7 = arith.constant 0 : index
    %7 = vector.load %arg5[%c0_6, %c0_7] : memref<64x1xf32, #tpu.memory_space<vmem>>, vector<64x1xf32>
    %8 = vector.broadcast %7 : vector<64x1xf32> to vector<64x16xf32>
    %9 = arith.addf %6, %8 : vector<64x16xf32>
    %cst_8 = arith.constant 0.000000e+00 : f32
    %10 = vector.broadcast %cst_8 : f32 to vector<64x16xf32>
    %11 = arith.maximumf %9, %10 : vector<64x16xf32>
    %c0_9 = arith.constant 0 : index
    %c0_10 = arith.constant 0 : index
    %c0_11 = arith.constant 0 : index
    %12 = vector.load %arg6[%c0_9, %c0_10, %c0_11] : memref<1x64x16xf32, #tpu.memory_space<vmem>>, vector<1x64x16xf32>
    %13 = vector.shape_cast %12 : vector<1x64x16xf32> to vector<64x16xf32>
    %14 = vector.shape_cast %11 : vector<64x16xf32> to vector<1x64x16xf32>
    tpu.vector_store %arg6[%c0_9, %c0_10, %c0_11], %14 {strides = array<i32>} : memref<1x64x16xf32, #tpu.memory_space<vmem>>, vector<1x64x16xf32>,
    return
  }
  func.func @transform_0(%arg0: i32, %arg1: i32) -> (i32, i32, i32) {
    %c0_i32 = arith.constant 0 : i32
    %c0_i32_0 = arith.constant 0 : i32
    return %arg0, %c0_i32, %arg1 : i32, i32, i32
  }
  func.func @transform_1(%arg0: i32, %arg1: i32) -> (i32, i32) {
    %c0_i32 = arith.constant 0 : i32
    %c0_i32_0 = arith.constant 0 : i32
    %c0_i32_1 = arith.constant 0 : i32
    return %c0_i32, %c0_i32_0 : i32, i32
  }
  func.func @transform_2(%arg0: i32, %arg1: i32) -> (i32, i32) {
    %c0_i32 = arith.constant 0 : i32
    %c0_i32_0 = arith.constant 0 : i32
    %c0_i32_1 = arith.constant 0 : i32
    return %c0_i32, %c0_i32_0 : i32, i32
  }
  func.func @transform_3(%arg0: i32, %arg1: i32) -> (i32, i32) {
    %c0_i32 = arith.constant 0 : i32
    %c0_i32_0 = arith.constant 0 : i32
    %c0_i32_1 = arith.constant 0 : i32
    return %c0_i32, %c0_i32_0 : i32, i32
  }
  func.func @transform_4(%arg0: i32, %arg1: i32) -> (i32, i32, i32) {
    %c0_i32 = arith.constant 0 : i32
    %c0_i32_0 = arith.constant 0 : i32
    return %arg0, %c0_i32, %arg1 : i32, i32, i32
  }
}

module attributes {stable_mosaic.version = 11 : i64} {
  func.func @_conv_bn_relu_kernel(%arg0: i32, %arg1: i32, %arg2: memref<1x576x4xbf16, #tpu.memory_space<vmem>>, %arg3: memref<128x576xbf16, #tpu.memory_space<vmem>>, %arg4: memref<128x1xf32, #tpu.memory_space<vmem>>, %arg5: memref<128x1xf32, #tpu.memory_space<vmem>>, %arg6: memref<1x128x4xf32, #tpu.memory_space<vmem>>) attributes {dimension_semantics = [#tpu.dimension_semantics<parallel>, #tpu.dimension_semantics<parallel>], iteration_bounds = array<i64: 2, 1>, scalar_prefetch = 0 : i64, scratch_operands = 0 : i64, tpu.core_type = #tpu.core_type<tc>, window_params = [{transform_indices = @transform_0, window_bounds = array<i64: 1, 576, 4>}, {pipeline_mode = #tpu.pipeline_mode<synchronous>, transform_indices = @transform_1, window_bounds = array<i64: 128, 576>}, {pipeline_mode = #tpu.pipeline_mode<synchronous>, transform_indices = @transform_2, window_bounds = array<i64: 128, 1>}, {pipeline_mode = #tpu.pipeline_mode<synchronous>, transform_indices = @transform_3, window_bounds = array<i64: 128, 1>}, {transform_indices = @transform_4, window_bounds = array<i64: 1, 128, 4>}]} {
    %c0 = arith.constant 0 : index
    %c0_0 = arith.constant 0 : index
    %0 = vector.load %arg3[%c0, %c0_0] : memref<128x576xbf16, #tpu.memory_space<vmem>>, vector<128x576xbf16>
    %c0_1 = arith.constant 0 : index
    %c0_2 = arith.constant 0 : index
    %c0_3 = arith.constant 0 : index
    %1 = vector.load %arg2[%c0_1, %c0_2, %c0_3] : memref<1x576x4xbf16, #tpu.memory_space<vmem>>, vector<1x576x4xbf16>
    %2 = vector.shape_cast %1 : vector<1x576x4xbf16> to vector<576x4xbf16>
    %cst = arith.constant dense<0.000000e+00> : vector<128x4xf32>
    %3 = tpu.matmul %0, %2, %cst {dimension_numbers = #tpu.dot_dimension_numbers<[1], [0], [0], [1], [0, 0, 1, 1], [], []>} : vector<128x576xbf16>, vector<576x4xbf16>, vector<128x4xf32> -> vector<128x4xf32>
    %c0_4 = arith.constant 0 : index
    %c0_5 = arith.constant 0 : index
    %4 = vector.load %arg4[%c0_4, %c0_5] : memref<128x1xf32, #tpu.memory_space<vmem>>, vector<128x1xf32>
    %5 = vector.broadcast %4 : vector<128x1xf32> to vector<128x4xf32>
    %6 = arith.mulf %3, %5 : vector<128x4xf32>
    %c0_6 = arith.constant 0 : index
    %c0_7 = arith.constant 0 : index
    %7 = vector.load %arg5[%c0_6, %c0_7] : memref<128x1xf32, #tpu.memory_space<vmem>>, vector<128x1xf32>
    %8 = vector.broadcast %7 : vector<128x1xf32> to vector<128x4xf32>
    %9 = arith.addf %6, %8 : vector<128x4xf32>
    %cst_8 = arith.constant 0.000000e+00 : f32
    %10 = vector.broadcast %cst_8 : f32 to vector<128x4xf32>
    %11 = arith.maximumf %9, %10 : vector<128x4xf32>
    %c0_9 = arith.constant 0 : index
    %c0_10 = arith.constant 0 : index
    %c0_11 = arith.constant 0 : index
    %12 = vector.load %arg6[%c0_9, %c0_10, %c0_11] : memref<1x128x4xf32, #tpu.memory_space<vmem>>, vector<1x128x4xf32>
    %13 = vector.shape_cast %12 : vector<1x128x4xf32> to vector<128x4xf32>
    %14 = vector.shape_cast %11 : vector<128x4xf32> to vector<1x128x4xf32>
    tpu.vector_store %arg6[%c0_9, %c0_10, %c0_11], %14 {strides = array<i32>} : memref<1x128x4xf32, #tpu.memory_space<vmem>>, vector<1x128x4xf32>,
    return
  }
  func.func @transform_0(%arg0: i32, %arg1: i32) -> (i32, i32, i32) {
    %c0_i32 = arith.constant 0 : i32
    %c0_i32_0 = arith.constant 0 : i32
    return %arg0, %c0_i32, %arg1 : i32, i32, i32
  }
  func.func @transform_1(%arg0: i32, %arg1: i32) -> (i32, i32) {
    %c0_i32 = arith.constant 0 : i32
    %c0_i32_0 = arith.constant 0 : i32
    %c0_i32_1 = arith.constant 0 : i32
    return %c0_i32, %c0_i32_0 : i32, i32
  }
  func.func @transform_2(%arg0: i32, %arg1: i32) -> (i32, i32) {
    %c0_i32 = arith.constant 0 : i32
    %c0_i32_0 = arith.constant 0 : i32
    %c0_i32_1 = arith.constant 0 : i32
    return %c0_i32, %c0_i32_0 : i32, i32
  }
  func.func @transform_3(%arg0: i32, %arg1: i32) -> (i32, i32) {
    %c0_i32 = arith.constant 0 : i32
    %c0_i32_0 = arith.constant 0 : i32
    %c0_i32_1 = arith.constant 0 : i32
    return %c0_i32, %c0_i32_0 : i32, i32
  }
  func.func @transform_4(%arg0: i32, %arg1: i32) -> (i32, i32, i32) {
    %c0_i32 = arith.constant 0 : i32
    %c0_i32_0 = arith.constant 0 : i32
    return %arg0, %c0_i32, %arg1 : i32, i32, i32
  }
}

</mosaic_0001>

<llo_original>
// kernel: dgmn2_patch_embed_forward.6
$region0: #{dgmn2_patch_embed_forward.6}
  #allocation0 [shape = 'u32[]', space=smem, size = 0x4, offset = 0x4, fixed_abs, tag = 'smem constant byte address 0x4 - core index']
  #allocation1 [shape = 'u32[144,128]{1,0:T(1,128)}', space=vmem, size = 0x12000, scoped, tag = 'internal scratch']
  %s0 = inlined_call_operand.vmem [shape: bf16[2,27,1024], index: 0, kind: input, shape index: {}]
  %s1 = inlined_call_operand.vmem [shape: bf16[8,27], index: 1, kind: input, shape index: {}]
  %s2 = inlined_call_operand.vmem [shape: f32[8,1], index: 2, kind: input, shape index: {}]
  %s3 = inlined_call_operand.vmem [shape: f32[8,1], index: 3, kind: input, shape index: {}]
  %s4 = inlined_call_operand.vmem [shape: f32[2,8,1024], index: 4, kind: output, shape index: {}]
  %s5 = sld [smem:[#allocation0]]
  $region49: #{dgmn2_patch_embed_forward.6} parent=0
    _
  %s7 = ssub.s32 1, %s5
  %s8 = scalar_select 0, %s7, %s5
  loop: start=0, step=1, limit=4
  $region2: #{dgmn2_patch_embed_forward.6} parent=0 // loop_pre_header
    _
  $region3: #{dgmn2_patch_embed_forward.6} parent=0 // loop_header
    %s10 = sphi 0, %s14
    %p11 = scmp.ge.s32.totalorder %s10, 4
    %s17 = sphi 0, %s29
    %s18 = sphi 0, %s25
    %s19 = sphi 0, %s17
    %s20 = sphi 0, %s18
    %s21 = sphi 0, %s19
    %s22 = sphi 0, %s20
    %s34 = sphi 0, %s36
    %s37 = sphi 0, %s34
    %s38 = sphi 0, %s37
    %s54 = sphi 0, %s38
    %s58 = sphi 0, %s58
    %s60 = sphi 0, %s58
    %s61 = sphi 0, %s60
    %s75 = sphi 0, %s61
    %s79 = sphi 0, %s79
    %s81 = sphi 0, %s79
    %s82 = sphi 0, %s81
    %s96 = sphi 0, %s82
    %s100 = sphi 0, %s100
    %s102 = sphi 0, %s100
    %s103 = sphi 0, %s102
    %s117 = sphi 0, %s103
    %s125 = sphi 0, %s127
    %s128 = sphi 0, %s125
    %s129 = sphi 0, %s128
    %s145 = sphi 0, %s129
  $region4: #{dgmn2_patch_embed_forward.6} parent=0 // loop_header_branch
    %13 = sbr.rel (%p11) target = $region8
  $region5: #{dgmn2_patch_embed_forward.6} parent=0 // loop_body
    %s15 = ssub.s32 %s10, 1
    %s16 = ssub.s32 %s10, 2
    %s23 = sadd.s32 1, %s18
    %p24 = scmp.ge.s32.totalorder %s23, 1
    %s25 = scalar_select %p24, 0, %s23
    %s26 = sadd.s32 1, %s17
    %s27 = scalar_select %p24, %s26, %s17
    %p28 = scmp.ge.s32.totalorder %s27, 2
    %s29 = scalar_select %p28, 0, %s27
    %s30 = ssub.s32 %s17, %s29
    %s31 = ssub.s32 %s18, %s25
    %s32 = sor.u32 %s30, %s31
    %p33 = scmp.eq.s32.totalorder %s32, 0
    %s35 = sadd.s32 %s34, 1
    %s36 = scalar_select %p33, %s34, %s35
    %p39 = pneg %p33
    %p40 = scmp.eq.s32.totalorder %s10, 1
    %p41 = por %p39, %p40
    %p42 = scmp.ne.s32.totalorder %s34, %s37
    %p43 = scmp.eq.s32.totalorder %s10, 0
    %p44 = por %p42, %p43
    %p45 = scmp.ne.s32.totalorder %s34, %s37
    %p46 = scmp.eq.s32.totalorder %s15, 1
    %p47 = por %p45, %p46
    %p48 = scmp.ne.s32.totalorder %s37, %s38
    %p49 = scmp.eq.s32.totalorder %s15, 0
    %p50 = por %p48, %p49
    %p51 = scmp.ne.s32.totalorder %s37, %s38
    %p52 = scmp.eq.s32.totalorder %s16, 1
    %p53 = por %p51, %p52
    %p55 = scmp.ne.s32.totalorder %s38, %s54
    %p56 = scmp.eq.s32.totalorder %s16, 0
    %p57 = por %p55, %p56
    %s59 = sadd.s32 %s58, 1
    %p62 = scmp.eq.s32.totalorder %s10, 1
    %p63 = scmp.ne.s32.totalorder %s58, %s60
    %p64 = scmp.eq.s32.totalorder %s10, 0
    %p65 = por %p63, %p64
    %p66 = scmp.ne.s32.totalorder %s58, %s60
    %p67 = scmp.eq.s32.totalorder %s15, 1
    %p68 = por %p66, %p67
    %p69 = scmp.ne.s32.totalorder %s60, %s61
    %p70 = scmp.eq.s32.totalorder %s15, 0
    %p71 = por %p69, %p70
    %p72 = scmp.ne.s32.totalorder %s60, %s61
    %p73 = scmp.eq.s32.totalorder %s16, 1
    %p74 = por %p72, %p73
    %p76 = scmp.ne.s32.totalorder %s61, %s75
    %p77 = scmp.eq.s32.totalorder %s16, 0
    %p78 = por %p76, %p77
    %s80 = sadd.s32 %s79, 1
    %p83 = scmp.eq.s32.totalorder %s10, 1
    %p84 = scmp.ne.s32.totalorder %s79, %s81
    %p85 = scmp.eq.s32.totalorder %s10, 0
    %p86 = por %p84, %p85
    %p87 = scmp.ne.s32.totalorder %s79, %s81
    %p88 = scmp.eq.s32.totalorder %s15, 1
    %p89 = por %p87, %p88
    %p90 = scmp.ne.s32.totalorder %s81, %s82
    %p91 = scmp.eq.s32.totalorder %s15, 0
    %p92 = por %p90, %p91
    %p93 = scmp.ne.s32.totalorder %s81, %s82
    %p94 = scmp.eq.s32.totalorder %s16, 1
    %p95 = por %p93, %p94
    %p97 = scmp.ne.s32.totalorder %s82, %s96
    %p98 = scmp.eq.s32.totalorder %s16, 0
    %p99 = por %p97, %p98
    %s101 = sadd.s32 %s100, 1
    %p104 = scmp.eq.s32.totalorder %s10, 1
    %p105 = scmp.ne.s32.totalorder %s100, %s102
    %p106 = scmp.eq.s32.totalorder %s10, 0
    %p107 = por %p105, %p106
    %p108 = scmp.ne.s32.totalorder %s100, %s102
    %p109 = scmp.eq.s32.totalorder %s15, 1
    %p110 = por %p108, %p109
    %p111 = scmp.ne.s32.totalorder %s102, %s103
    %p112 = scmp.eq.s32.totalorder %s15, 0
    %p113 = por %p111, %p112
    %p114 = scmp.ne.s32.totalorder %s102, %s103
    %p115 = scmp.eq.s32.totalorder %s16, 1
    %p116 = por %p114, %p115
    %p118 = scmp.ne.s32.totalorder %s103, %s117
    %p119 = scmp.eq.s32.totalorder %s16, 0
    %p120 = por %p118, %p119
    %s121 = ssub.s32 %s17, %s29
    %s122 = ssub.s32 %s18, %s25
    %s123 = sor.u32 %s121, %s122
    %p124 = scmp.eq.s32.totalorder %s123, 0
    %s126 = sadd.s32 %s125, 1
    %s127 = scalar_select %p124, %s125, %s126
    %p130 = pneg %p124
    %p131 = scmp.eq.s32.totalorder %s10, 1
    %p132 = por %p130, %p131
    %p133 = scmp.ne.s32.totalorder %s125, %s128
    %p134 = scmp.eq.s32.totalorder %s10, 0
    %p135 = por %p133, %p134
    %p136 = scmp.ne.s32.totalorder %s125, %s128
    %p137 = scmp.eq.s32.totalorder %s15, 1
    %p138 = por %p136, %p137
    %p139 = scmp.ne.s32.totalorder %s128, %s129
    %p140 = scmp.eq.s32.totalorder %s15, 0
    %p141 = por %p139, %p140
    %p142 = scmp.ne.s32.totalorder %s128, %s129
    %p143 = scmp.eq.s32.totalorder %s16, 1
    %p144 = por %p142, %p143
    %p146 = scmp.ne.s32.totalorder %s129, %s145
    %p147 = scmp.eq.s32.totalorder %s16, 0
    %p148 = por %p146, %p147
    %p149 = scmp.le.s32.totalorder 1, %s10
    %p150 = scmp.lt.s32.totalorder %s10, 3
    %p151 = pnand %p149, %p150
    %p152 = pneg %p151
    // Predicated region
    $region9: #{dgmn2_patch_embed_forward.6} parent=5 // pred_check
      _
    $region10: #{dgmn2_patch_embed_forward.6} parent=5 // pred_check_branch
      %154 = sbr.rel (%p151) target = $region12
    $region11: #{dgmn2_patch_embed_forward.6} parent=5 // pred_region
      %s155 = ssub.s32 %s10, 1
      // Predicated region
      $region13: #{dgmn2_patch_embed_forward.6} parent=11 // pred_check
        %p156 = pneg %p71
      $region14: #{dgmn2_patch_embed_forward.6} parent=11 // pred_check_branch
        %158 = sbr.rel (%p156) target = $region16
      $region15: #{dgmn2_patch_embed_forward.6} parent=11 // pred_region
        _
      $region16: #{dgmn2_patch_embed_forward.6} parent=11 // pred_fallthru
        _
      // Predicated region
      $region17: #{dgmn2_patch_embed_forward.6} parent=11 // pred_check
        %p159 = pneg %p92
      $region18: #{dgmn2_patch_embed_forward.6} parent=11 // pred_check_branch
        %161 = sbr.rel (%p159) target = $region20
      $region19: #{dgmn2_patch_embed_forward.6} parent=11 // pred_region
        _
      $region20: #{dgmn2_patch_embed_forward.6} parent=11 // pred_fallthru
        _
      // Predicated region
      $region21: #{dgmn2_patch_embed_forward.6} parent=11 // pred_check
        %p162 = pneg %p113
      $region22: #{dgmn2_patch_embed_forward.6} parent=11 // pred_check_branch
        %164 = sbr.rel (%p162) target = $region24
      $region23: #{dgmn2_patch_embed_forward.6} parent=11 // pred_region
        _
      $region24: #{dgmn2_patch_embed_forward.6} parent=11 // pred_fallthru
        _
    $region12: #{dgmn2_patch_embed_forward.6} parent=5 // pred_fallthru
      _
    %p165 = scmp.lt.s32.totalorder %s10, 2
    // Predicated region
    $region25: #{dgmn2_patch_embed_forward.6} parent=5 // pred_check
      %p166 = pneg %p165
    $region26: #{dgmn2_patch_embed_forward.6} parent=5 // pred_check_branch
      %168 = sbr.rel (%p166) target = $region28
    $region27: #{dgmn2_patch_embed_forward.6} parent=5 // pred_region
      // Predicated region
      $region29: #{dgmn2_patch_embed_forward.6} parent=27 // pred_check
        %p169 = pneg %p44
      $region30: #{dgmn2_patch_embed_forward.6} parent=27 // pred_check_branch
        %171 = sbr.rel (%p169) target = $region32
      $region31: #{dgmn2_patch_embed_forward.6} parent=27 // pred_region
        %s172 = smul.u32 8, %s18
        %p173 = scmp.lt.s32.totalorder %s17, 1
        %s174 = scalar_select %p173, %s17, 1
        %p175 = scmp.lt.s32.totalorder %s172, 7
        %s176 = scalar_select %p175, %s172, 7
        %s177 = smul.addr %s174, 32
        %s178 = sadd.s32 %s176, %s177
        %s179 = smul.addr %s178, 4
        %s180 = scalar_lea.vmem %s0, %s179
        %s181 = smul.u32 8, %s18
      $region32: #{dgmn2_patch_embed_forward.6} parent=27 // pred_fallthru
        _
    $region28: #{dgmn2_patch_embed_forward.6} parent=5 // pred_fallthru
      _
    %p182 = scmp.le.s32.totalorder 1, %s10
    %p183 = scmp.lt.s32.totalorder %s10, 3
    %p184 = pnand %p182, %p183
    %p185 = pneg %p184
    // Predicated region
    $region33: #{dgmn2_patch_embed_forward.6} parent=5 // pred_check
      _
    $region34: #{dgmn2_patch_embed_forward.6} parent=5 // pred_check_branch
      %187 = sbr.rel (%p184) target = $region36
    $region35: #{dgmn2_patch_embed_forward.6} parent=5 // pred_region
      %s188 = ssub.s32 %s10, 1
      %s189 = smul.u32 8, %s20
      %p190 = scmp.lt.s32.totalorder %s19, 1
      %s191 = scalar_select %p190, %s19, 1
      %p192 = scmp.lt.s32.totalorder %s189, 7
      %s193 = scalar_select %p192, %s189, 7
      %s194 = smul.addr %s191, 32
      %s195 = sadd.s32 %s193, %s194
      %s196 = smul.addr %s195, 4
      %s197 = scalar_lea.vmem %s0, %s196
      %p198 = pneg %p50
      %p199 = pneg %p47
      %p200 = pneg %p71
      %p201 = pneg %p68
      %p202 = pneg %p92
      %p203 = pneg %p89
      %p204 = pneg %p113
      %p205 = pneg %p110
      %p206 = pneg %p141
      %p207 = pneg %p138
      %s208 = smul.u32 8, %s20
      %p209 = scmp.lt.s32.totalorder %s19, 1
      %s210 = scalar_select %p209, %s19, 1
      %p211 = scmp.lt.s32.totalorder %s208, 7
      %s212 = scalar_select %p211, %s208, 7
      %s213 = smul.addr %s210, 8
      %s214 = sadd.s32 %s212, %s213
      %s215 = smul.addr %s214, 8
      %s216 = scalar_lea.vmem %s4, %s215
      %s217 = smul.u32 8, %s20
      %p218 = scmp.lt.s32.totalorder %s19, 1
      %s219 = scalar_select %p218, %s19, 1
      %p220 = scmp.lt.s32.totalorder %s217, 7
      %s221 = scalar_select %p220, %s217, 7
      %s222 = smul.addr %s219, 32
      %s223 = sadd.s32 %s221, %s222
      %s224 = smul.addr %s223, 4
      %s225 = scalar_lea.vmem %s0, %s224
      %s226 = smul.u32 8, %s20
      %s227 = smul.u32 8, %s20
      %p228 = scmp.lt.s32.totalorder %s19, 1
      %s229 = scalar_select %p228, %s19, 1
      %p230 = scmp.lt.s32.totalorder %s227, 7
      %s231 = scalar_select %p230, %s227, 7
      %s232 = smul.addr %s229, 8
      %s233 = sadd.s32 %s231, %s232
      %s234 = smul.addr %s233, 8
      %s235 = scalar_lea.vmem %s4, %s234
      %s236 = smul.u32 8, %s20
      %v238 = vld [vmem:[%s1] sm:$0xf]
      %v239 = vld [vmem:[%s225] sm:$0xff]
      %v240 = vld [vmem:[%s225 + $0x8] sm:$0xff]
      %v241 = vld [vmem:[%s225 + $0x10] sm:$0xff]
      %v242 = vld [vmem:[%s225 + $0x18] sm:$0xff]
      %v243 = vld [vmem:[%s225 + $0x20] sm:$0xff]
      %v244 = vld [vmem:[%s225 + $0x28] sm:$0xff]
      %v245 = vld [vmem:[%s225 + $0x30] sm:$0xff]
      %v246 = vld [vmem:[%s225 + $0x38] sm:$0xff]
      %v247 = vld [vmem:[%s225 + $0x40] sm:$0xff]
      %v248 = vld [vmem:[%s225 + $0x48] sm:$0xff]
      %v249 = vld [vmem:[%s225 + $0x50] sm:$0xff]
      %v250 = vld [vmem:[%s225 + $0x58] sm:$0xff]
      %v251 = vld [vmem:[%s225 + $0x60] sm:$0x33]
      %v252 = vld [vmem:[%s225 + $0x68] sm:$0x33]
      %v253 = vld [vmem:[%s225 + $0x70] sm:$0x33]
      %v254 = vld [vmem:[%s225 + $0x78] sm:$0x33]
      %v271 = vunpack.c.l.b16 %v239
      %v272 = vunpack.c.h.b16 %v239
      %v273 = vunpack.c.l.b16 %v240
      %v274 = vunpack.c.h.b16 %v240
      %v275 = vunpack.c.l.b16 %v241
      %v276 = vunpack.c.h.b16 %v241
      %v277 = vunpack.c.l.b16 %v242
      %v278 = vunpack.c.h.b16 %v242
      %v279 = vunpack.c.l.b16 %v243
      %v280 = vunpack.c.h.b16 %v243
      %v281 = vunpack.c.l.b16 %v244
      %v282 = vunpack.c.h.b16 %v244
      %v283 = vunpack.c.l.b16 %v245
      %v284 = vunpack.c.h.b16 %v245
      %v285 = vunpack.c.l.b16 %v246
      %v286 = vunpack.c.h.b16 %v246
      %v287 = vunpack.c.l.b16 %v247
      %v288 = vunpack.c.h.b16 %v247
      %v289 = vunpack.c.l.b16 %v248
      %v290 = vunpack.c.h.b16 %v248
      %v291 = vunpack.c.l.b16 %v249
      %v292 = vunpack.c.h.b16 %v249
      %v293 = vunpack.c.l.b16 %v250
      %v294 = vunpack.c.h.b16 %v250
      %v295 = vunpack.c.l.b16 %v251
      %v296 = vunpack.c.h.b16 %v251
      %v297 = vunpack.c.l.b16 %v252
      %v298 = vunpack.c.h.b16 %v252
      %v299 = vunpack.c.l.b16 %v253
      %v300 = vunpack.c.h.b16 %v253
      %v301 = vunpack.c.l.b16 %v254
      %v302 = vunpack.c.h.b16 %v254
      %v303 = vpack.c.b16 %v279, %v271
      %v304 = vpack.c.b16 %v280, %v272
      %v305 = vpack.c.b16 %v281, %v273
      %v306 = vpack.c.b16 %v282, %v274
      %v307 = vpack.c.b16 %v283, %v275
      %v308 = vpack.c.b16 %v284, %v276
      %v309 = vpack.c.b16 %v285, %v277
      %v310 = vpack.c.b16 %v286, %v278
      %v311 = vpack.c.b16 %v295, %v287
      %v312 = vpack.c.b16 %v296, %v288
      %v313 = vpack.c.b16 %v297, %v289
      %v314 = vpack.c.b16 %v298, %v290
      %v315 = vpack.c.b16 %v299, %v291
      %v316 = vpack.c.b16 %v300, %v292
      %v317 = vpack.c.b16 %v301, %v293
      %v318 = vpack.c.b16 %v302, %v294
      %vm327 = vcmask 220160
      %v329 = vsel %vm327, %v238, 0
      %vm331 = vcmask 1044480
      %vm332 = vcmask 1045504
      %v333 = vsel %vm331, 4294967295, 65535
      %v334 = vsel %vm332, %v333, 0
      %v336 = vand.u32 %v311, %v334
      %v339 = vand.u32 %v312, %v334
      %v342 = vand.u32 %v313, %v334
      %v345 = vand.u32 %v314, %v334
      %v348 = vand.u32 %v315, %v334
      %v351 = vand.u32 %v316, %v334
      %v354 = vand.u32 %v317, %v334
      %v357 = vand.u32 %v318, %v334
      %359 = vmatprep.subr.bf16.mxu0 0
      %360 = vmatpush1.bf16.msra.mxu0 0
      %361 = vmatprep.subr.bf16.mxu0 0
      %362 = vmatpush1.bf16.msra.mxu0 0
      %363 = vmatprep.subr.bf16.mxu0 0
      %364 = vmatpush1.bf16.msra.mxu0 0
      %365 = vmatprep.subr.bf16.mxu0 0
      %366 = vmatpush1.bf16.msra.mxu0 0
      %367 = vmatprep.subr.bf16.mxu0 0
      %368 = vmatpush1.bf16.msra.mxu0 0
      %369 = vmatprep.subr.bf16.mxu0 0
      %370 = vmatpush1.bf16.msra.mxu0 0
      %371 = vmatprep.subr.bf16.mxu0 %v339
      %372 = vmatpush1.bf16.msra.mxu0 %v336
      %373 = vmatprep.subr.bf16.mxu0 %v304
      %374 = vmatpush1.bf16.msra.mxu0 %v303
      %375 = vmatprep.subr.bf16.mxu0 0
      %376 = vmatpush2.bf16.msra.mxu0 0
      %377 = vmatprep.subr.bf16.mxu0 0
      %378 = vmatpush2.bf16.msra.mxu0 0
      %379 = vmatprep.subr.bf16.mxu0 0
      %380 = vmatpush2.bf16.msra.mxu0 0
      %381 = vmatprep.subr.bf16.mxu0 0
      %382 = vmatpush2.bf16.msra.mxu0 0
      %383 = vmatprep.subr.bf16.mxu0 0
      %384 = vmatpush2.bf16.msra.mxu0 0
      %385 = vmatprep.subr.bf16.mxu0 0
      %386 = vmatpush2.bf16.msra.mxu0 0
      %387 = vmatprep.subr.bf16.mxu0 0
      %388 = vmatpush2.bf16.msra.mxu0 0
      %389 = vmatprep.subr.bf16.mxu0 0
      %390 = vmatpush2.bf16.msra.mxu0 0
      %391 = vmatprep.mubr.bf16.mxu0 0
      %392 = vmatmul.mubr.bf16.gmra.mxu0 %v329
      %v393 = vpop.f32.mrf.mxu0
      %v394 = vadd.f32 0.0, %v393
      %v395 = vpop.f32.mrf.mxu0
      %v396 = vadd.f32 0.0, %v395
      %v397 = vpop.f32.mrf.mxu0
      %v398 = vpop.f32.mrf.mxu0
      %399 = vdwg.mxu0
      %400 = vmatprep.subr.bf16.mxu0 0
      %401 = vmatpush1.bf16.msra.mxu0 0
      %402 = vmatprep.subr.bf16.mxu0 0
      %403 = vmatpush1.bf16.msra.mxu0 0
      %404 = vmatprep.subr.bf16.mxu0 0
      %405 = vmatpush1.bf16.msra.mxu0 0
      %406 = vmatprep.subr.bf16.mxu0 0
      %407 = vmatpush1.bf16.msra.mxu0 0
      %408 = vmatprep.subr.bf16.mxu0 0
      %409 = vmatpush1.bf16.msra.mxu0 0
      %410 = vmatprep.subr.bf16.mxu0 0
      %411 = vmatpush1.bf16.msra.mxu0 0
      %412 = vmatprep.subr.bf16.mxu0 %v345
      %413 = vmatpush1.bf16.msra.mxu0 %v342
      %414 = vmatprep.subr.bf16.mxu0 %v306
      %415 = vmatpush1.bf16.msra.mxu0 %v305
      %416 = vmatprep.subr.bf16.mxu0 0
      %417 = vmatpush2.bf16.msra.mxu0 0
      %418 = vmatprep.subr.bf16.mxu0 0
      %419 = vmatpush2.bf16.msra.mxu0 0
      %420 = vmatprep.subr.bf16.mxu0 0
      %421 = vmatpush2.bf16.msra.mxu0 0
      %422 = vmatprep.subr.bf16.mxu0 0
      %423 = vmatpush2.bf16.msra.mxu0 0
      %424 = vmatprep.subr.bf16.mxu0 0
      %425 = vmatpush2.bf16.msra.mxu0 0
      %426 = vmatprep.subr.bf16.mxu0 0
      %427 = vmatpush2.bf16.msra.mxu0 0
      %428 = vmatprep.subr.bf16.mxu0 0
      %429 = vmatpush2.bf16.msra.mxu0 0
      %430 = vmatprep.subr.bf16.mxu0 0
      %431 = vmatpush2.bf16.msra.mxu0 0
      %432 = vmatprep.mubr.bf16.mxu0 0
      %433 = vmatmul.mubr.bf16.gmra.mxu0 %v329
      %v434 = vpop.f32.mrf.mxu0
      %v435 = vadd.f32 0.0, %v434
      %v436 = vpop.f32.mrf.mxu0
      %v437 = vadd.f32 0.0, %v436
      %v438 = vpop.f32.mrf.mxu0
      %v439 = vpop.f32.mrf.mxu0
      %440 = vdwg.mxu0
      %441 = vmatprep.subr.bf16.mxu0 0
      %442 = vmatpush1.bf16.msra.mxu0 0
      %443 = vmatprep.subr.bf16.mxu0 0
      %444 = vmatpush1.bf16.msra.mxu0 0
      %445 = vmatprep.subr.bf16.mxu0 0
      %446 = vmatpush1.bf16.msra.mxu0 0
      %447 = vmatprep.subr.bf16.mxu0 0
      %448 = vmatpush1.bf16.msra.mxu0 0
      %449 = vmatprep.subr.bf16.mxu0 0
      %450 = vmatpush1.bf16.msra.mxu0 0
      %451 = vmatprep.subr.bf16.mxu0 0
      %452 = vmatpush1.bf16.msra.mxu0 0
      %453 = vmatprep.subr.bf16.mxu0 %v351
      %454 = vmatpush1.bf16.msra.mxu0 %v348
      %455 = vmatprep.subr.bf16.mxu0 %v308
      %456 = vmatpush1.bf16.msra.mxu0 %v307
      %457 = vmatprep.subr.bf16.mxu0 0
      %458 = vmatpush2.bf16.msra.mxu0 0
      %459 = vmatprep.subr.bf16.mxu0 0
      %460 = vmatpush2.bf16.msra.mxu0 0
      %461 = vmatprep.subr.bf16.mxu0 0
      %462 = vmatpush2.bf16.msra.mxu0 0
      %463 = vmatprep.subr.bf16.mxu0 0
      %464 = vmatpush2.bf16.msra.mxu0 0
      %465 = vmatprep.subr.bf16.mxu0 0
      %466 = vmatpush2.bf16.msra.mxu0 0
      %467 = vmatprep.subr.bf16.mxu0 0
      %468 = vmatpush2.bf16.msra.mxu0 0
      %469 = vmatprep.subr.bf16.mxu0 0
      %470 = vmatpush2.bf16.msra.mxu0 0
      %471 = vmatprep.subr.bf16.mxu0 0
      %472 = vmatpush2.bf16.msra.mxu0 0
      %473 = vmatprep.mubr.bf16.mxu0 0
      %474 = vmatmul.mubr.bf16.gmra.mxu0 %v329
      %v475 = vpop.f32.mrf.mxu0
      %v476 = vadd.f32 0.0, %v475
      %v477 = vpop.f32.mrf.mxu0
      %v478 = vadd.f32 0.0, %v477
      %v479 = vpop.f32.mrf.mxu0
      %v480 = vpop.f32.mrf.mxu0
      %481 = vdwg.mxu0
      %482 = vmatprep.subr.bf16.mxu0 0
      %483 = vmatpush1.bf16.msra.mxu0 0
      %484 = vmatprep.subr.bf16.mxu0 0
      %485 = vmatpush1.bf16.msra.mxu0 0
      %486 = vmatprep.subr.bf16.mxu0 0
      %487 = vmatpush1.bf16.msra.mxu0 0
      %488 = vmatprep.subr.bf16.mxu0 0
      %489 = vmatpush1.bf16.msra.mxu0 0
      %490 = vmatprep.subr.bf16.mxu0 0
      %491 = vmatpush1.bf16.msra.mxu0 0
      %492 = vmatprep.subr.bf16.mxu0 0
      %493 = vmatpush1.bf16.msra.mxu0 0
      %494 = vmatprep.subr.bf16.mxu0 %v357
      %495 = vmatpush1.bf16.msra.mxu0 %v354
      %496 = vmatprep.subr.bf16.mxu0 %v310
      %497 = vmatpush1.bf16.msra.mxu0 %v309
      %498 = vmatprep.subr.bf16.mxu0 0
      %499 = vmatpush2.bf16.msra.mxu0 0
      %500 = vmatprep.subr.bf16.mxu0 0
      %501 = vmatpush2.bf16.msra.mxu0 0
      %502 = vmatprep.subr.bf16.mxu0 0
      %503 = vmatpush2.bf16.msra.mxu0 0
      %504 = vmatprep.subr.bf16.mxu0 0
      %505 = vmatpush2.bf16.msra.mxu0 0
      %506 = vmatprep.subr.bf16.mxu0 0
      %507 = vmatpush2.bf16.msra.mxu0 0
      %508 = vmatprep.subr.bf16.mxu0 0
      %509 = vmatpush2.bf16.msra.mxu0 0
      %510 = vmatprep.subr.bf16.mxu0 0
      %511 = vmatpush2.bf16.msra.mxu0 0
      %512 = vmatprep.subr.bf16.mxu0 0
      %513 = vmatpush2.bf16.msra.mxu0 0
      %514 = vmatprep.mubr.bf16.mxu0 0
      %515 = vmatmul.mubr.bf16.gmra.mxu0 %v329
      %v516 = vpop.f32.mrf.mxu0
      %v517 = vadd.f32 0.0, %v516
      %v518 = vpop.f32.mrf.mxu0
      %v519 = vadd.f32 0.0, %v518
      %v520 = vpop.f32.mrf.mxu0
      %v521 = vpop.f32.mrf.mxu0
      %522 = vdwg.mxu0
      %v523 = vld [vmem:[%s2] sm:$0xff]
      %525 = vset.pattern.permute.xlu0 0
      %526 = vperm.xlu0 %525, %v523
      %v527 = vpop.permute.xlu0 %526
      %v529 = vmul.f32 %v394, %v527
      %v530 = vmul.f32 %v396, %v527
      %v531 = vmul.f32 %v435, %v527
      %v532 = vmul.f32 %v437, %v527
      %v533 = vmul.f32 %v476, %v527
      %v534 = vmul.f32 %v478, %v527
      %v535 = vmul.f32 %v517, %v527
      %v536 = vmul.f32 %v519, %v527
      %v537 = vld [vmem:[%s3] sm:$0xff]
      %539 = vset.pattern.permute.xlu0 0
      %540 = vperm.xlu0 %539, %v537
      %v541 = vpop.permute.xlu0 %540
      %v543 = vadd.f32 %v529, %v541
      %v544 = vadd.f32 %v530, %v541
      %v545 = vadd.f32 %v531, %v541
      %v546 = vadd.f32 %v532, %v541
      %v547 = vadd.f32 %v533, %v541
      %v548 = vadd.f32 %v534, %v541
      %v549 = vadd.f32 %v535, %v541
      %v550 = vadd.f32 %v536, %v541
      %v551 = vmax.f32 %v543, 0.0
      %v552 = vmax.f32 %v544, 0.0
      %v553 = vmax.f32 %v545, 0.0
      %v554 = vmax.f32 %v546, 0.0
      %v555 = vmax.f32 %v547, 0.0
      %v556 = vmax.f32 %v548, 0.0
      %v557 = vmax.f32 %v549, 0.0
      %v558 = vmax.f32 %v550, 0.0
      %559 = vst [vmem:[%s235] sm:$0xff] %v551
      %560 = vst [vmem:[%s235 + $0x8] sm:$0xff] %v552
      %561 = vst [vmem:[%s235 + $0x10] sm:$0xff] %v553
      %562 = vst [vmem:[%s235 + $0x18] sm:$0xff] %v554
      %563 = vst [vmem:[%s235 + $0x20] sm:$0xff] %v555
      %564 = vst [vmem:[%s235 + $0x28] sm:$0xff] %v556
      %565 = vst [vmem:[%s235 + $0x30] sm:$0xff] %v557
      %566 = vst [vmem:[%s235 + $0x38] sm:$0xff] %v558
      %s567 = smul.u32 8, %s20
      %p568 = scmp.lt.s32.totalorder %s19, 1
      %s569 = scalar_select %p568, %s19, 1
      %p570 = scmp.lt.s32.totalorder %s567, 7
      %s571 = scalar_select %p570, %s567, 7
      %s572 = smul.addr %s569, 8
      %s573 = sadd.s32 %s571, %s572
      %s574 = smul.addr %s573, 8
      %s575 = scalar_lea.vmem %s4, %s574
      // Predicated region
      $region37: #{dgmn2_patch_embed_forward.6} parent=35 // pred_check
        %p576 = pneg %p138
      $region38: #{dgmn2_patch_embed_forward.6} parent=35 // pred_check_branch
        %578 = sbr.rel (%p576) target = $region40
      $region39: #{dgmn2_patch_embed_forward.6} parent=35 // pred_region
        %s579 = smul.u32 8, %s20
      $region40: #{dgmn2_patch_embed_forward.6} parent=35 // pred_fallthru
        _
    $region36: #{dgmn2_patch_embed_forward.6} parent=5 // pred_fallthru
      _
    %p580 = scmp.le.s32.totalorder 2, %s10
    // Predicated region
    $region41: #{dgmn2_patch_embed_forward.6} parent=5 // pred_check
      %p581 = pneg %p580
    $region42: #{dgmn2_patch_embed_forward.6} parent=5 // pred_check_branch
      %583 = sbr.rel (%p581) target = $region44
    $region43: #{dgmn2_patch_embed_forward.6} parent=5 // pred_region
      %s584 = ssub.s32 %s10, 2
      // Predicated region
      $region45: #{dgmn2_patch_embed_forward.6} parent=43 // pred_check
        %p585 = pneg %p144
      $region46: #{dgmn2_patch_embed_forward.6} parent=43 // pred_check_branch
        %587 = sbr.rel (%p585) target = $region48
      $region47: #{dgmn2_patch_embed_forward.6} parent=43 // pred_region
        %s588 = smul.u32 8, %s22
        %p589 = scmp.lt.s32.totalorder %s21, 1
        %s590 = scalar_select %p589, %s21, 1
        %p591 = scmp.lt.s32.totalorder %s588, 7
        %s592 = scalar_select %p591, %s588, 7
        %s593 = smul.addr %s590, 8
        %s594 = sadd.s32 %s592, %s593
        %s595 = smul.addr %s594, 8
        %s596 = scalar_lea.vmem %s4, %s595
      $region48: #{dgmn2_patch_embed_forward.6} parent=43 // pred_fallthru
        _
    $region44: #{dgmn2_patch_embed_forward.6} parent=5 // pred_fallthru
      _
  $region6: #{dgmn2_patch_embed_forward.6} parent=0 // loop_footer
    %s14 = sadd.s32 1, %s10
  $region7: #{dgmn2_patch_embed_forward.6} parent=0 // loop_footer_branch
    %9 = sbr.rel target = $region3
  $region8: #{dgmn2_patch_embed_forward.6} parent=0 // loop_exit
    _

// kernel: dgmn2_patch_embed_forward.7
$region0: #{dgmn2_patch_embed_forward.7}
  #allocation0 [shape = 'u32[]', space=smem, size = 0x4, offset = 0x4, fixed_abs, tag = 'smem constant byte address 0x4 - core index']
  #allocation1 [shape = 'u32[144,128]{1,0:T(1,128)}', space=vmem, size = 0x12000, scoped, tag = 'internal scratch']
  %s0 = inlined_call_operand.vmem [shape: bf16[2,72,1024], index: 0, kind: input, shape index: {}]
  %s1 = inlined_call_operand.vmem [shape: bf16[8,72], index: 1, kind: input, shape index: {}]
  %s2 = inlined_call_operand.vmem [shape: f32[8,1], index: 2, kind: input, shape index: {}]
  %s3 = inlined_call_operand.vmem [shape: f32[8,1], index: 3, kind: input, shape index: {}]
  %s4 = inlined_call_operand.vmem [shape: f32[2,8,1024], index: 4, kind: output, shape index: {}]
  %s5 = sld [smem:[#allocation0]]
  $region49: #{dgmn2_patch_embed_forward.7} parent=0
    _
  %s7 = ssub.s32 1, %s5
  %s8 = scalar_select 0, %s7, %s5
  loop: start=0, step=1, limit=4
  $region2: #{dgmn2_patch_embed_forward.7} parent=0 // loop_pre_header
    _
  $region3: #{dgmn2_patch_embed_forward.7} parent=0 // loop_header
    %s10 = sphi 0, %s14
    %p11 = scmp.ge.s32.totalorder %s10, 4
    %s17 = sphi 0, %s29
    %s18 = sphi 0, %s25
    %s19 = sphi 0, %s17
    %s20 = sphi 0, %s18
    %s21 = sphi 0, %s19
    %s22 = sphi 0, %s20
    %s34 = sphi 0, %s36
    %s37 = sphi 0, %s34
    %s38 = sphi 0, %s37
    %s54 = sphi 0, %s38
    %s58 = sphi 0, %s58
    %s60 = sphi 0, %s58
    %s61 = sphi 0, %s60
    %s75 = sphi 0, %s61
    %s79 = sphi 0, %s79
    %s81 = sphi 0, %s79
    %s82 = sphi 0, %s81
    %s96 = sphi 0, %s82
    %s100 = sphi 0, %s100
    %s102 = sphi 0, %s100
    %s103 = sphi 0, %s102
    %s117 = sphi 0, %s103
    %s125 = sphi 0, %s127
    %s128 = sphi 0, %s125
    %s129 = sphi 0, %s128
    %s145 = sphi 0, %s129
  $region4: #{dgmn2_patch_embed_forward.7} parent=0 // loop_header_branch
    %13 = sbr.rel (%p11) target = $region8
  $region5: #{dgmn2_patch_embed_forward.7} parent=0 // loop_body
    %s15 = ssub.s32 %s10, 1
    %s16 = ssub.s32 %s10, 2
    %s23 = sadd.s32 1, %s18
    %p24 = scmp.ge.s32.totalorder %s23, 1
    %s25 = scalar_select %p24, 0, %s23
    %s26 = sadd.s32 1, %s17
    %s27 = scalar_select %p24, %s26, %s17
    %p28 = scmp.ge.s32.totalorder %s27, 2
    %s29 = scalar_select %p28, 0, %s27
    %s30 = ssub.s32 %s17, %s29
    %s31 = ssub.s32 %s18, %s25
    %s32 = sor.u32 %s30, %s31
    %p33 = scmp.eq.s32.totalorder %s32, 0
    %s35 = sadd.s32 %s34, 1
    %s36 = scalar_select %p33, %s34, %s35
    %p39 = pneg %p33
    %p40 = scmp.eq.s32.totalorder %s10, 1
    %p41 = por %p39, %p40
    %p42 = scmp.ne.s32.totalorder %s34, %s37
    %p43 = scmp.eq.s32.totalorder %s10, 0
    %p44 = por %p42, %p43
    %p45 = scmp.ne.s32.totalorder %s34, %s37
    %p46 = scmp.eq.s32.totalorder %s15, 1
    %p47 = por %p45, %p46
    %p48 = scmp.ne.s32.totalorder %s37, %s38
    %p49 = scmp.eq.s32.totalorder %s15, 0
    %p50 = por %p48, %p49
    %p51 = scmp.ne.s32.totalorder %s37, %s38
    %p52 = scmp.eq.s32.totalorder %s16, 1
    %p53 = por %p51, %p52
    %p55 = scmp.ne.s32.totalorder %s38, %s54
    %p56 = scmp.eq.s32.totalorder %s16, 0
    %p57 = por %p55, %p56
    %s59 = sadd.s32 %s58, 1
    %p62 = scmp.eq.s32.totalorder %s10, 1
    %p63 = scmp.ne.s32.totalorder %s58, %s60
    %p64 = scmp.eq.s32.totalorder %s10, 0
    %p65 = por %p63, %p64
    %p66 = scmp.ne.s32.totalorder %s58, %s60
    %p67 = scmp.eq.s32.totalorder %s15, 1
    %p68 = por %p66, %p67
    %p69 = scmp.ne.s32.totalorder %s60, %s61
    %p70 = scmp.eq.s32.totalorder %s15, 0
    %p71 = por %p69, %p70
    %p72 = scmp.ne.s32.totalorder %s60, %s61
    %p73 = scmp.eq.s32.totalorder %s16, 1
    %p74 = por %p72, %p73
    %p76 = scmp.ne.s32.totalorder %s61, %s75
    %p77 = scmp.eq.s32.totalorder %s16, 0
    %p78 = por %p76, %p77
    %s80 = sadd.s32 %s79, 1
    %p83 = scmp.eq.s32.totalorder %s10, 1
    %p84 = scmp.ne.s32.totalorder %s79, %s81
    %p85 = scmp.eq.s32.totalorder %s10, 0
    %p86 = por %p84, %p85
    %p87 = scmp.ne.s32.totalorder %s79, %s81
    %p88 = scmp.eq.s32.totalorder %s15, 1
    %p89 = por %p87, %p88
    %p90 = scmp.ne.s32.totalorder %s81, %s82
    %p91 = scmp.eq.s32.totalorder %s15, 0
    %p92 = por %p90, %p91
    %p93 = scmp.ne.s32.totalorder %s81, %s82
    %p94 = scmp.eq.s32.totalorder %s16, 1
    %p95 = por %p93, %p94
    %p97 = scmp.ne.s32.totalorder %s82, %s96
    %p98 = scmp.eq.s32.totalorder %s16, 0
    %p99 = por %p97, %p98
    %s101 = sadd.s32 %s100, 1
    %p104 = scmp.eq.s32.totalorder %s10, 1
    %p105 = scmp.ne.s32.totalorder %s100, %s102
    %p106 = scmp.eq.s32.totalorder %s10, 0
    %p107 = por %p105, %p106
    %p108 = scmp.ne.s32.totalorder %s100, %s102
    %p109 = scmp.eq.s32.totalorder %s15, 1
    %p110 = por %p108, %p109
    %p111 = scmp.ne.s32.totalorder %s102, %s103
    %p112 = scmp.eq.s32.totalorder %s15, 0
    %p113 = por %p111, %p112
    %p114 = scmp.ne.s32.totalorder %s102, %s103
    %p115 = scmp.eq.s32.totalorder %s16, 1
    %p116 = por %p114, %p115
    %p118 = scmp.ne.s32.totalorder %s103, %s117
    %p119 = scmp.eq.s32.totalorder %s16, 0
    %p120 = por %p118, %p119
    %s121 = ssub.s32 %s17, %s29
    %s122 = ssub.s32 %s18, %s25
    %s123 = sor.u32 %s121, %s122
    %p124 = scmp.eq.s32.totalorder %s123, 0
    %s126 = sadd.s32 %s125, 1
    %s127 = scalar_select %p124, %s125, %s126
    %p130 = pneg %p124
    %p131 = scmp.eq.s32.totalorder %s10, 1
    %p132 = por %p130, %p131
    %p133 = scmp.ne.s32.totalorder %s125, %s128
    %p134 = scmp.eq.s32.totalorder %s10, 0
    %p135 = por %p133, %p134
    %p136 = scmp.ne.s32.totalorder %s125, %s128
    %p137 = scmp.eq.s32.totalorder %s15, 1
    %p138 = por %p136, %p137
    %p139 = scmp.ne.s32.totalorder %s128, %s129
    %p140 = scmp.eq.s32.totalorder %s15, 0
    %p141 = por %p139, %p140
    %p142 = scmp.ne.s32.totalorder %s128, %s129
    %p143 = scmp.eq.s32.totalorder %s16, 1
    %p144 = por %p142, %p143
    %p146 = scmp.ne.s32.totalorder %s129, %s145
    %p147 = scmp.eq.s32.totalorder %s16, 0
    %p148 = por %p146, %p147
    %p149 = scmp.le.s32.totalorder 1, %s10
    %p150 = scmp.lt.s32.totalorder %s10, 3
    %p151 = pnand %p149, %p150
    %p152 = pneg %p151
    // Predicated region
    $region9: #{dgmn2_patch_embed_forward.7} parent=5 // pred_check
      _
    $region10: #{dgmn2_patch_embed_forward.7} parent=5 // pred_check_branch
      %154 = sbr.rel (%p151) target = $region12
    $region11: #{dgmn2_patch_embed_forward.7} parent=5 // pred_region
      %s155 = ssub.s32 %s10, 1
      // Predicated region
      $region13: #{dgmn2_patch_embed_forward.7} parent=11 // pred_check
        %p156 = pneg %p71
      $region14: #{dgmn2_patch_embed_forward.7} parent=11 // pred_check_branch
        %158 = sbr.rel (%p156) target = $region16
      $region15: #{dgmn2_patch_embed_forward.7} parent=11 // pred_region
        _
      $region16: #{dgmn2_patch_embed_forward.7} parent=11 // pred_fallthru
        _
      // Predicated region
      $region17: #{dgmn2_patch_embed_forward.7} parent=11 // pred_check
        %p159 = pneg %p92
      $region18: #{dgmn2_patch_embed_forward.7} parent=11 // pred_check_branch
        %161 = sbr.rel (%p159) target = $region20
      $region19: #{dgmn2_patch_embed_forward.7} parent=11 // pred_region
        _
      $region20: #{dgmn2_patch_embed_forward.7} parent=11 // pred_fallthru
        _
      // Predicated region
      $region21: #{dgmn2_patch_embed_forward.7} parent=11 // pred_check
        %p162 = pneg %p113
      $region22: #{dgmn2_patch_embed_forward.7} parent=11 // pred_check_branch
        %164 = sbr.rel (%p162) target = $region24
      $region23: #{dgmn2_patch_embed_forward.7} parent=11 // pred_region
        _
      $region24: #{dgmn2_patch_embed_forward.7} parent=11 // pred_fallthru
        _
    $region12: #{dgmn2_patch_embed_forward.7} parent=5 // pred_fallthru
      _
    %p165 = scmp.lt.s32.totalorder %s10, 2
    // Predicated region
    $region25: #{dgmn2_patch_embed_forward.7} parent=5 // pred_check
      %p166 = pneg %p165
    $region26: #{dgmn2_patch_embed_forward.7} parent=5 // pred_check_branch
      %168 = sbr.rel (%p166) target = $region28
    $region27: #{dgmn2_patch_embed_forward.7} parent=5 // pred_region
      // Predicated region
      $region29: #{dgmn2_patch_embed_forward.7} parent=27 // pred_check
        %p169 = pneg %p44
      $region30: #{dgmn2_patch_embed_forward.7} parent=27 // pred_check_branch
        %171 = sbr.rel (%p169) target = $region32
      $region31: #{dgmn2_patch_embed_forward.7} parent=27 // pred_region
        %s172 = smul.u32 8, %s18
        %p173 = scmp.lt.s32.totalorder %s17, 1
        %s174 = scalar_select %p173, %s17, 1
        %p175 = scmp.lt.s32.totalorder %s172, 7
        %s176 = scalar_select %p175, %s172, 7
        %s177 = smul.addr %s174, 72
        %s178 = sadd.s32 %s176, %s177
        %s179 = smul.addr %s178, 4
        %s180 = scalar_lea.vmem %s0, %s179
        %s181 = smul.u32 8, %s18
      $region32: #{dgmn2_patch_embed_forward.7} parent=27 // pred_fallthru
        _
    $region28: #{dgmn2_patch_embed_forward.7} parent=5 // pred_fallthru
      _
    %p182 = scmp.le.s32.totalorder 1, %s10
    %p183 = scmp.lt.s32.totalorder %s10, 3
    %p184 = pnand %p182, %p183
    %p185 = pneg %p184
    // Predicated region
    $region33: #{dgmn2_patch_embed_forward.7} parent=5 // pred_check
      _
    $region34: #{dgmn2_patch_embed_forward.7} parent=5 // pred_check_branch
      %187 = sbr.rel (%p184) target = $region36
    $region35: #{dgmn2_patch_embed_forward.7} parent=5 // pred_region
      %s188 = ssub.s32 %s10, 1
      %s189 = smul.u32 8, %s20
      %p190 = scmp.lt.s32.totalorder %s19, 1
      %s191 = scalar_select %p190, %s19, 1
      %p192 = scmp.lt.s32.totalorder %s189, 7
      %s193 = scalar_select %p192, %s189, 7
      %s194 = smul.addr %s191, 72
      %s195 = sadd.s32 %s193, %s194
      %s196 = smul.addr %s195, 4
      %s197 = scalar_lea.vmem %s0, %s196
      %p198 = pneg %p50
      %p199 = pneg %p47
      %p200 = pneg %p71
      %p201 = pneg %p68
      %p202 = pneg %p92
      %p203 = pneg %p89
      %p204 = pneg %p113
      %p205 = pneg %p110
      %p206 = pneg %p141
      %p207 = pneg %p138
      %s208 = smul.u32 8, %s20
      %p209 = scmp.lt.s32.totalorder %s19, 1
      %s210 = scalar_select %p209, %s19, 1
      %p211 = scmp.lt.s32.totalorder %s208, 7
      %s212 = scalar_select %p211, %s208, 7
      %s213 = smul.addr %s210, 8
      %s214 = sadd.s32 %s212, %s213
      %s215 = smul.addr %s214, 8
      %s216 = scalar_lea.vmem %s4, %s215
      %s217 = smul.u32 8, %s20
      %p218 = scmp.lt.s32.totalorder %s19, 1
      %s219 = scalar_select %p218, %s19, 1
      %p220 = scmp.lt.s32.totalorder %s217, 7
      %s221 = scalar_select %p220, %s217, 7
      %s222 = smul.addr %s219, 72
      %s223 = sadd.s32 %s221, %s222
      %s224 = smul.addr %s223, 4
      %s225 = scalar_lea.vmem %s0, %s224
      %s226 = smul.u32 8, %s20
      %s227 = smul.u32 8, %s20
      %p228 = scmp.lt.s32.totalorder %s19, 1
      %s229 = scalar_select %p228, %s19, 1
      %p230 = scmp.lt.s32.totalorder %s227, 7
      %s231 = scalar_select %p230, %s227, 7
      %s232 = smul.addr %s229, 8
      %s233 = sadd.s32 %s231, %s232
      %s234 = smul.addr %s233, 8
      %s235 = scalar_lea.vmem %s4, %s234
      %s236 = smul.u32 8, %s20
      %v238 = vld [vmem:[%s1] sm:$0xf]
      %v239 = vld [vmem:[%s225] sm:$0xff]
      %v240 = vld [vmem:[%s225 + $0x8] sm:$0xff]
      %v241 = vld [vmem:[%s225 + $0x10] sm:$0xff]
      %v242 = vld [vmem:[%s225 + $0x18] sm:$0xff]
      %v243 = vld [vmem:[%s225 + $0x20] sm:$0xff]
      %v244 = vld [vmem:[%s225 + $0x28] sm:$0xff]
      %v245 = vld [vmem:[%s225 + $0x30] sm:$0xff]
      %v246 = vld [vmem:[%s225 + $0x38] sm:$0xff]
      %v247 = vld [vmem:[%s225 + $0x40] sm:$0xff]
      %v248 = vld [vmem:[%s225 + $0x48] sm:$0xff]
      %v249 = vld [vmem:[%s225 + $0x50] sm:$0xff]
      %v250 = vld [vmem:[%s225 + $0x58] sm:$0xff]
      %v251 = vld [vmem:[%s225 + $0x60] sm:$0xff]
      %v252 = vld [vmem:[%s225 + $0x68] sm:$0xff]
      %v253 = vld [vmem:[%s225 + $0x70] sm:$0xff]
      %v254 = vld [vmem:[%s225 + $0x78] sm:$0xff]
      %v255 = vld [vmem:[%s225 + $0x80] sm:$0xff]
      %v256 = vld [vmem:[%s225 + $0x88] sm:$0xff]
      %v257 = vld [vmem:[%s225 + $0x90] sm:$0xff]
      %v258 = vld [vmem:[%s225 + $0x98] sm:$0xff]
      %v259 = vld [vmem:[%s225 + $0xa0] sm:$0xff]
      %v260 = vld [vmem:[%s225 + $0xa8] sm:$0xff]
      %v261 = vld [vmem:[%s225 + $0xb0] sm:$0xff]
      %v262 = vld [vmem:[%s225 + $0xb8] sm:$0xff]
      %v263 = vld [vmem:[%s225 + $0xc0] sm:$0xff]
      %v264 = vld [vmem:[%s225 + $0xc8] sm:$0xff]
      %v265 = vld [vmem:[%s225 + $0xd0] sm:$0xff]
      %v266 = vld [vmem:[%s225 + $0xd8] sm:$0xff]
      %v267 = vld [vmem:[%s225 + $0xe0] sm:$0xff]
      %v268 = vld [vmem:[%s225 + $0xe8] sm:$0xff]
      %v269 = vld [vmem:[%s225 + $0xf0] sm:$0xff]
      %v270 = vld [vmem:[%s225 + $0xf8] sm:$0xff]
      %v271 = vld [vmem:[%s225 + $0x100] sm:$0xff]
      %v272 = vld [vmem:[%s225 + $0x108] sm:$0xff]
      %v273 = vld [vmem:[%s225 + $0x110] sm:$0xff]
      %v274 = vld [vmem:[%s225 + $0x118] sm:$0xff]
      %v311 = vunpack.c.l.b16 %v239
      %v312 = vunpack.c.h.b16 %v239
      %v313 = vunpack.c.l.b16 %v240
      %v314 = vunpack.c.h.b16 %v240
      %v315 = vunpack.c.l.b16 %v241
      %v316 = vunpack.c.h.b16 %v241
      %v317 = vunpack.c.l.b16 %v242
      %v318 = vunpack.c.h.b16 %v242
      %v319 = vunpack.c.l.b16 %v243
      %v320 = vunpack.c.h.b16 %v243
      %v321 = vunpack.c.l.b16 %v244
      %v322 = vunpack.c.h.b16 %v244
      %v323 = vunpack.c.l.b16 %v245
      %v324 = vunpack.c.h.b16 %v245
      %v325 = vunpack.c.l.b16 %v246
      %v326 = vunpack.c.h.b16 %v246
      %v327 = vunpack.c.l.b16 %v247
      %v328 = vunpack.c.h.b16 %v247
      %v329 = vunpack.c.l.b16 %v248
      %v330 = vunpack.c.h.b16 %v248
      %v331 = vunpack.c.l.b16 %v249
      %v332 = vunpack.c.h.b16 %v249
      %v333 = vunpack.c.l.b16 %v250
      %v334 = vunpack.c.h.b16 %v250
      %v335 = vunpack.c.l.b16 %v251
      %v336 = vunpack.c.h.b16 %v251
      %v337 = vunpack.c.l.b16 %v252
      %v338 = vunpack.c.h.b16 %v252
      %v339 = vunpack.c.l.b16 %v253
      %v340 = vunpack.c.h.b16 %v253
      %v341 = vunpack.c.l.b16 %v254
      %v342 = vunpack.c.h.b16 %v254
      %v343 = vunpack.c.l.b16 %v255
      %v344 = vunpack.c.h.b16 %v255
      %v345 = vunpack.c.l.b16 %v256
      %v346 = vunpack.c.h.b16 %v256
      %v347 = vunpack.c.l.b16 %v257
      %v348 = vunpack.c.h.b16 %v257
      %v349 = vunpack.c.l.b16 %v258
      %v350 = vunpack.c.h.b16 %v258
      %v351 = vunpack.c.l.b16 %v259
      %v352 = vunpack.c.h.b16 %v259
      %v353 = vunpack.c.l.b16 %v260
      %v354 = vunpack.c.h.b16 %v260
      %v355 = vunpack.c.l.b16 %v261
      %v356 = vunpack.c.h.b16 %v261
      %v357 = vunpack.c.l.b16 %v262
      %v358 = vunpack.c.h.b16 %v262
      %v359 = vunpack.c.l.b16 %v263
      %v360 = vunpack.c.h.b16 %v263
      %v361 = vunpack.c.l.b16 %v264
      %v362 = vunpack.c.h.b16 %v264
      %v363 = vunpack.c.l.b16 %v265
      %v364 = vunpack.c.h.b16 %v265
      %v365 = vunpack.c.l.b16 %v266
      %v366 = vunpack.c.h.b16 %v266
      %v367 = vunpack.c.l.b16 %v267
      %v368 = vunpack.c.h.b16 %v267
      %v369 = vunpack.c.l.b16 %v268
      %v370 = vunpack.c.h.b16 %v268
      %v371 = vunpack.c.l.b16 %v269
      %v372 = vunpack.c.h.b16 %v269
      %v373 = vunpack.c.l.b16 %v270
      %v374 = vunpack.c.h.b16 %v270
      %v375 = vunpack.c.l.b16 %v271
      %v376 = vunpack.c.h.b16 %v271
      %v377 = vunpack.c.l.b16 %v272
      %v378 = vunpack.c.h.b16 %v272
      %v379 = vunpack.c.l.b16 %v273
      %v380 = vunpack.c.h.b16 %v273
      %v381 = vunpack.c.l.b16 %v274
      %v382 = vunpack.c.h.b16 %v274
      %v383 = vpack.c.b16 %v319, %v311
      %v384 = vpack.c.b16 %v320, %v312
      %v385 = vpack.c.b16 %v321, %v313
      %v386 = vpack.c.b16 %v322, %v314
      %v387 = vpack.c.b16 %v323, %v315
      %v388 = vpack.c.b16 %v324, %v316
      %v389 = vpack.c.b16 %v325, %v317
      %v390 = vpack.c.b16 %v326, %v318
      %v391 = vpack.c.b16 %v335, %v327
      %v392 = vpack.c.b16 %v336, %v328
      %v393 = vpack.c.b16 %v337, %v329
      %v394 = vpack.c.b16 %v338, %v330
      %v395 = vpack.c.b16 %v339, %v331
      %v396 = vpack.c.b16 %v340, %v332
      %v397 = vpack.c.b16 %v341, %v333
      %v398 = vpack.c.b16 %v342, %v334
      %v399 = vpack.c.b16 %v351, %v343
      %v400 = vpack.c.b16 %v352, %v344
      %v401 = vpack.c.b16 %v353, %v345
      %v402 = vpack.c.b16 %v354, %v346
      %v403 = vpack.c.b16 %v355, %v347
      %v404 = vpack.c.b16 %v356, %v348
      %v405 = vpack.c.b16 %v357, %v349
      %v406 = vpack.c.b16 %v358, %v350
      %v407 = vpack.c.b16 %v367, %v359
      %v408 = vpack.c.b16 %v368, %v360
      %v409 = vpack.c.b16 %v369, %v361
      %v410 = vpack.c.b16 %v370, %v362
      %v411 = vpack.c.b16 %v371, %v363
      %v412 = vpack.c.b16 %v372, %v364
      %v413 = vpack.c.b16 %v373, %v365
      %v414 = vpack.c.b16 %v374, %v366
      %v415 = vpack.c.b16 %v375, %v375
      %v416 = vpack.c.b16 %v376, %v376
      %v417 = vpack.c.b16 %v377, %v377
      %v418 = vpack.c.b16 %v378, %v378
      %v419 = vpack.c.b16 %v379, %v379
      %v420 = vpack.c.b16 %v380, %v380
      %v421 = vpack.c.b16 %v381, %v381
      %v422 = vpack.c.b16 %v382, %v382
      %vm455 = vcmask 588800
      %v457 = vsel %vm455, %v238, 0
      %vm459 = vcmask 1043456
      %v461 = vsel %vm459, %v415, 0
      %v464 = vsel %vm459, %v416, 0
      %v467 = vsel %vm459, %v417, 0
      %v470 = vsel %vm459, %v418, 0
      %v473 = vsel %vm459, %v419, 0
      %v476 = vsel %vm459, %v420, 0
      %v479 = vsel %vm459, %v421, 0
      %v482 = vsel %vm459, %v422, 0
      %484 = vmatprep.subr.bf16.mxu0 0
      %485 = vmatpush1.bf16.msra.mxu0 0
      %486 = vmatprep.subr.bf16.mxu0 0
      %487 = vmatpush1.bf16.msra.mxu0 0
      %488 = vmatprep.subr.bf16.mxu0 0
      %489 = vmatpush1.bf16.msra.mxu0 0
      %490 = vmatprep.subr.bf16.mxu0 %v464
      %491 = vmatpush1.bf16.msra.mxu0 %v461
      %492 = vmatprep.subr.bf16.mxu0 %v408
      %493 = vmatpush1.bf16.msra.mxu0 %v407
      %494 = vmatprep.subr.bf16.mxu0 %v400
      %495 = vmatpush1.bf16.msra.mxu0 %v399
      %496 = vmatprep.subr.bf16.mxu0 %v392
      %497 = vmatpush1.bf16.msra.mxu0 %v391
      %498 = vmatprep.subr.bf16.mxu0 %v384
      %499 = vmatpush1.bf16.msra.mxu0 %v383
      %500 = vmatprep.subr.bf16.mxu0 0
      %501 = vmatpush2.bf16.msra.mxu0 0
      %502 = vmatprep.subr.bf16.mxu0 0
      %503 = vmatpush2.bf16.msra.mxu0 0
      %504 = vmatprep.subr.bf16.mxu0 0
      %505 = vmatpush2.bf16.msra.mxu0 0
      %506 = vmatprep.subr.bf16.mxu0 0
      %507 = vmatpush2.bf16.msra.mxu0 0
      %508 = vmatprep.subr.bf16.mxu0 0
      %509 = vmatpush2.bf16.msra.mxu0 0
      %510 = vmatprep.subr.bf16.mxu0 0
      %511 = vmatpush2.bf16.msra.mxu0 0
      %512 = vmatprep.subr.bf16.mxu0 0
      %513 = vmatpush2.bf16.msra.mxu0 0
      %514 = vmatprep.subr.bf16.mxu0 0
      %515 = vmatpush2.bf16.msra.mxu0 0
      %516 = vmatprep.mubr.bf16.mxu0 0
      %517 = vmatmul.mubr.bf16.gmra.mxu0 %v457
      %v518 = vpop.f32.mrf.mxu0
      %v519 = vadd.f32 0.0, %v518
      %v520 = vpop.f32.mrf.mxu0
      %v521 = vadd.f32 0.0, %v520
      %v522 = vpop.f32.mrf.mxu0
      %v523 = vpop.f32.mrf.mxu0
      %524 = vdwg.mxu0
      %525 = vmatprep.subr.bf16.mxu0 0
      %526 = vmatpush1.bf16.msra.mxu0 0
      %527 = vmatprep.subr.bf16.mxu0 0
      %528 = vmatpush1.bf16.msra.mxu0 0
      %529 = vmatprep.subr.bf16.mxu0 0
      %530 = vmatpush1.bf16.msra.mxu0 0
      %531 = vmatprep.subr.bf16.mxu0 %v470
      %532 = vmatpush1.bf16.msra.mxu0 %v467
      %533 = vmatprep.subr.bf16.mxu0 %v410
      %534 = vmatpush1.bf16.msra.mxu0 %v409
      %535 = vmatprep.subr.bf16.mxu0 %v402
      %536 = vmatpush1.bf16.msra.mxu0 %v401
      %537 = vmatprep.subr.bf16.mxu0 %v394
      %538 = vmatpush1.bf16.msra.mxu0 %v393
      %539 = vmatprep.subr.bf16.mxu0 %v386
      %540 = vmatpush1.bf16.msra.mxu0 %v385
      %541 = vmatprep.subr.bf16.mxu0 0
      %542 = vmatpush2.bf16.msra.mxu0 0
      %543 = vmatprep.subr.bf16.mxu0 0
      %544 = vmatpush2.bf16.msra.mxu0 0
      %545 = vmatprep.subr.bf16.mxu0 0
      %546 = vmatpush2.bf16.msra.mxu0 0
      %547 = vmatprep.subr.bf16.mxu0 0
      %548 = vmatpush2.bf16.msra.mxu0 0
      %549 = vmatprep.subr.bf16.mxu0 0
      %550 = vmatpush2.bf16.msra.mxu0 0
      %551 = vmatprep.subr.bf16.mxu0 0
      %552 = vmatpush2.bf16.msra.mxu0 0
      %553 = vmatprep.subr.bf16.mxu0 0
      %554 = vmatpush2.bf16.msra.mxu0 0
      %555 = vmatprep.subr.bf16.mxu0 0
      %556 = vmatpush2.bf16.msra.mxu0 0
      %557 = vmatprep.mubr.bf16.mxu0 0
      %558 = vmatmul.mubr.bf16.gmra.mxu0 %v457
      %v559 = vpop.f32.mrf.mxu0
      %v560 = vadd.f32 0.0, %v559
      %v561 = vpop.f32.mrf.mxu0
      %v562 = vadd.f32 0.0, %v561
      %v563 = vpop.f32.mrf.mxu0
      %v564 = vpop.f32.mrf.mxu0
      %565 = vdwg.mxu0
      %566 = vmatprep.subr.bf16.mxu0 0
      %567 = vmatpush1.bf16.msra.mxu0 0
      %568 = vmatprep.subr.bf16.mxu0 0
      %569 = vmatpush1.bf16.msra.mxu0 0
      %570 = vmatprep.subr.bf16.mxu0 0
      %571 = vmatpush1.bf16.msra.mxu0 0
      %572 = vmatprep.subr.bf16.mxu0 %v476
      %573 = vmatpush1.bf16.msra.mxu0 %v473
      %574 = vmatprep.subr.bf16.mxu0 %v412
      %575 = vmatpush1.bf16.msra.mxu0 %v411
      %576 = vmatprep.subr.bf16.mxu0 %v404
      %577 = vmatpush1.bf16.msra.mxu0 %v403
      %578 = vmatprep.subr.bf16.mxu0 %v396
      %579 = vmatpush1.bf16.msra.mxu0 %v395
      %580 = vmatprep.subr.bf16.mxu0 %v388
      %581 = vmatpush1.bf16.msra.mxu0 %v387
      %582 = vmatprep.subr.bf16.mxu0 0
      %583 = vmatpush2.bf16.msra.mxu0 0
      %584 = vmatprep.subr.bf16.mxu0 0
      %585 = vmatpush2.bf16.msra.mxu0 0
      %586 = vmatprep.subr.bf16.mxu0 0
      %587 = vmatpush2.bf16.msra.mxu0 0
      %588 = vmatprep.subr.bf16.mxu0 0
      %589 = vmatpush2.bf16.msra.mxu0 0
      %590 = vmatprep.subr.bf16.mxu0 0
      %591 = vmatpush2.bf16.msra.mxu0 0
      %592 = vmatprep.subr.bf16.mxu0 0
      %593 = vmatpush2.bf16.msra.mxu0 0
      %594 = vmatprep.subr.bf16.mxu0 0
      %595 = vmatpush2.bf16.msra.mxu0 0
      %596 = vmatprep.subr.bf16.mxu0 0
      %597 = vmatpush2.bf16.msra.mxu0 0
      %598 = vmatprep.mubr.bf16.mxu0 0
      %599 = vmatmul.mubr.bf16.gmra.mxu0 %v457
      %v600 = vpop.f32.mrf.mxu0
      %v601 = vadd.f32 0.0, %v600
      %v602 = vpop.f32.mrf.mxu0
      %v603 = vadd.f32 0.0, %v602
      %v604 = vpop.f32.mrf.mxu0
      %v605 = vpop.f32.mrf.mxu0
      %606 = vdwg.mxu0
      %607 = vmatprep.subr.bf16.mxu0 0
      %608 = vmatpush1.bf16.msra.mxu0 0
      %609 = vmatprep.subr.bf16.mxu0 0
      %610 = vmatpush1.bf16.msra.mxu0 0
      %611 = vmatprep.subr.bf16.mxu0 0
      %612 = vmatpush1.bf16.msra.mxu0 0
      %613 = vmatprep.subr.bf16.mxu0 %v482
      %614 = vmatpush1.bf16.msra.mxu0 %v479
      %615 = vmatprep.subr.bf16.mxu0 %v414
      %616 = vmatpush1.bf16.msra.mxu0 %v413
      %617 = vmatprep.subr.bf16.mxu0 %v406
      %618 = vmatpush1.bf16.msra.mxu0 %v405
      %619 = vmatprep.subr.bf16.mxu0 %v398
      %620 = vmatpush1.bf16.msra.mxu0 %v397
      %621 = vmatprep.subr.bf16.mxu0 %v390
      %622 = vmatpush1.bf16.msra.mxu0 %v389
      %623 = vmatprep.subr.bf16.mxu0 0
      %624 = vmatpush2.bf16.msra.mxu0 0
      %625 = vmatprep.subr.bf16.mxu0 0
      %626 = vmatpush2.bf16.msra.mxu0 0
      %627 = vmatprep.subr.bf16.mxu0 0
      %628 = vmatpush2.bf16.msra.mxu0 0
      %629 = vmatprep.subr.bf16.mxu0 0
      %630 = vmatpush2.bf16.msra.mxu0 0
      %631 = vmatprep.subr.bf16.mxu0 0
      %632 = vmatpush2.bf16.msra.mxu0 0
      %633 = vmatprep.subr.bf16.mxu0 0
      %634 = vmatpush2.bf16.msra.mxu0 0
      %635 = vmatprep.subr.bf16.mxu0 0
      %636 = vmatpush2.bf16.msra.mxu0 0
      %637 = vmatprep.subr.bf16.mxu0 0
      %638 = vmatpush2.bf16.msra.mxu0 0
      %639 = vmatprep.mubr.bf16.mxu0 0
      %640 = vmatmul.mubr.bf16.gmra.mxu0 %v457
      %v641 = vpop.f32.mrf.mxu0
      %v642 = vadd.f32 0.0, %v641
      %v643 = vpop.f32.mrf.mxu0
      %v644 = vadd.f32 0.0, %v643
      %v645 = vpop.f32.mrf.mxu0
      %v646 = vpop.f32.mrf.mxu0
      %647 = vdwg.mxu0
      %v648 = vld [vmem:[%s2] sm:$0xff]
      %650 = vset.pattern.permute.xlu0 0
      %651 = vperm.xlu0 %650, %v648
      %v652 = vpop.permute.xlu0 %651
      %v654 = vmul.f32 %v519, %v652
      %v655 = vmul.f32 %v521, %v652
      %v656 = vmul.f32 %v560, %v652
      %v657 = vmul.f32 %v562, %v652
      %v658 = vmul.f32 %v601, %v652
      %v659 = vmul.f32 %v603, %v652
      %v660 = vmul.f32 %v642, %v652
      %v661 = vmul.f32 %v644, %v652
      %v662 = vld [vmem:[%s3] sm:$0xff]
      %664 = vset.pattern.permute.xlu0 0
      %665 = vperm.xlu0 %664, %v662
      %v666 = vpop.permute.xlu0 %665
      %v668 = vadd.f32 %v654, %v666
      %v669 = vadd.f32 %v655, %v666
      %v670 = vadd.f32 %v656, %v666
      %v671 = vadd.f32 %v657, %v666
      %v672 = vadd.f32 %v658, %v666
      %v673 = vadd.f32 %v659, %v666
      %v674 = vadd.f32 %v660, %v666
      %v675 = vadd.f32 %v661, %v666
      %v676 = vmax.f32 %v668, 0.0
      %v677 = vmax.f32 %v669, 0.0
      %v678 = vmax.f32 %v670, 0.0
      %v679 = vmax.f32 %v671, 0.0
      %v680 = vmax.f32 %v672, 0.0
      %v681 = vmax.f32 %v673, 0.0
      %v682 = vmax.f32 %v674, 0.0
      %v683 = vmax.f32 %v675, 0.0
      %684 = vst [vmem:[%s235] sm:$0xff] %v676
      %685 = vst [vmem:[%s235 + $0x8] sm:$0xff] %v677
      %686 = vst [vmem:[%s235 + $0x10] sm:$0xff] %v678
      %687 = vst [vmem:[%s235 + $0x18] sm:$0xff] %v679
      %688 = vst [vmem:[%s235 + $0x20] sm:$0xff] %v680
      %689 = vst [vmem:[%s235 + $0x28] sm:$0xff] %v681
      %690 = vst [vmem:[%s235 + $0x30] sm:$0xff] %v682
      %691 = vst [vmem:[%s235 + $0x38] sm:$0xff] %v683
      %s692 = smul.u32 8, %s20
      %p693 = scmp.lt.s32.totalorder %s19, 1
      %s694 = scalar_select %p693, %s19, 1
      %p695 = scmp.lt.s32.totalorder %s692, 7
      %s696 = scalar_select %p695, %s692, 7
      %s697 = smul.addr %s694, 8
      %s698 = sadd.s32 %s696, %s697
      %s699 = smul.addr %s698, 8
      %s700 = scalar_lea.vmem %s4, %s699
      // Predicated region
      $region37: #{dgmn2_patch_embed_forward.7} parent=35 // pred_check
        %p701 = pneg %p138
      $region38: #{dgmn2_patch_embed_forward.7} parent=35 // pred_check_branch
        %703 = sbr.rel (%p701) target = $region40
      $region39: #{dgmn2_patch_embed_forward.7} parent=35 // pred_region
        %s704 = smul.u32 8, %s20
      $region40: #{dgmn2_patch_embed_forward.7} parent=35 // pred_fallthru
        _
    $region36: #{dgmn2_patch_embed_forward.7} parent=5 // pred_fallthru
      _
    %p705 = scmp.le.s32.totalorder 2, %s10
    // Predicated region
    $region41: #{dgmn2_patch_embed_forward.7} parent=5 // pred_check
      %p706 = pneg %p705
    $region42: #{dgmn2_patch_embed_forward.7} parent=5 // pred_check_branch
      %708 = sbr.rel (%p706) target = $region44
    $region43: #{dgmn2_patch_embed_forward.7} parent=5 // pred_region
      %s709 = ssub.s32 %s10, 2
      // Predicated region
      $region45: #{dgmn2_patch_embed_forward.7} parent=43 // pred_check
        %p710 = pneg %p144
      $region46: #{dgmn2_patch_embed_forward.7} parent=43 // pred_check_branch
        %712 = sbr.rel (%p710) target = $region48
      $region47: #{dgmn2_patch_embed_forward.7} parent=43 // pred_region
        %s713 = smul.u32 8, %s22
        %p714 = scmp.lt.s32.totalorder %s21, 1
        %s715 = scalar_select %p714, %s21, 1
        %p716 = scmp.lt.s32.totalorder %s713, 7
        %s717 = scalar_select %p716, %s713, 7
        %s718 = smul.addr %s715, 8
        %s719 = sadd.s32 %s717, %s718
        %s720 = smul.addr %s719, 8
        %s721 = scalar_lea.vmem %s4, %s720
      $region48: #{dgmn2_patch_embed_forward.7} parent=43 // pred_fallthru
        _
    $region44: #{dgmn2_patch_embed_forward.7} parent=5 // pred_fallthru
      _
  $region6: #{dgmn2_patch_embed_forward.7} parent=0 // loop_footer
    %s14 = sadd.s32 1, %s10
  $region7: #{dgmn2_patch_embed_forward.7} parent=0 // loop_footer_branch
    %9 = sbr.rel target = $region3
  $region8: #{dgmn2_patch_embed_forward.7} parent=0 // loop_exit
    _

// kernel: dgmn2_patch_embed_forward.8
$region0: #{dgmn2_patch_embed_forward.8}
  #allocation0 [shape = 'u32[]', space=smem, size = 0x4, offset = 0x4, fixed_abs, tag = 'smem constant byte address 0x4 - core index']
  #allocation1 [shape = 'u32[144,128]{1,0:T(1,128)}', space=vmem, size = 0x12000, scoped, tag = 'internal scratch']
  %s0 = inlined_call_operand.vmem [shape: bf16[2,72,256], index: 0, kind: input, shape index: {}]
  %s1 = inlined_call_operand.vmem [shape: bf16[16,72], index: 1, kind: input, shape index: {}]
  %s2 = inlined_call_operand.vmem [shape: f32[16,1], index: 2, kind: input, shape index: {}]
  %s3 = inlined_call_operand.vmem [shape: f32[16,1], index: 3, kind: input, shape index: {}]
  %s4 = inlined_call_operand.vmem [shape: f32[2,16,256], index: 4, kind: output, shape index: {}]
  %s5 = sld [smem:[#allocation0]]
  $region49: #{dgmn2_patch_embed_forward.8} parent=0
    _
  %s7 = ssub.s32 1, %s5
  %s8 = scalar_select 0, %s7, %s5
  loop: start=0, step=1, limit=4
  $region2: #{dgmn2_patch_embed_forward.8} parent=0 // loop_pre_header
    _
  $region3: #{dgmn2_patch_embed_forward.8} parent=0 // loop_header
    %s10 = sphi 0, %s14
    %p11 = scmp.ge.s32.totalorder %s10, 4
    %s17 = sphi 0, %s29
    %s18 = sphi 0, %s25
    %s19 = sphi 0, %s17
    %s20 = sphi 0, %s18
    %s21 = sphi 0, %s19
    %s22 = sphi 0, %s20
    %s34 = sphi 0, %s36
    %s37 = sphi 0, %s34
    %s38 = sphi 0, %s37
    %s54 = sphi 0, %s38
    %s58 = sphi 0, %s58
    %s60 = sphi 0, %s58
    %s61 = sphi 0, %s60
    %s75 = sphi 0, %s61
    %s79 = sphi 0, %s79
    %s81 = sphi 0, %s79
    %s82 = sphi 0, %s81
    %s96 = sphi 0, %s82
    %s100 = sphi 0, %s100
    %s102 = sphi 0, %s100
    %s103 = sphi 0, %s102
    %s117 = sphi 0, %s103
    %s125 = sphi 0, %s127
    %s128 = sphi 0, %s125
    %s129 = sphi 0, %s128
    %s145 = sphi 0, %s129
  $region4: #{dgmn2_patch_embed_forward.8} parent=0 // loop_header_branch
    %13 = sbr.rel (%p11) target = $region8
  $region5: #{dgmn2_patch_embed_forward.8} parent=0 // loop_body
    %s15 = ssub.s32 %s10, 1
    %s16 = ssub.s32 %s10, 2
    %s23 = sadd.s32 1, %s18
    %p24 = scmp.ge.s32.totalorder %s23, 1
    %s25 = scalar_select %p24, 0, %s23
    %s26 = sadd.s32 1, %s17
    %s27 = scalar_select %p24, %s26, %s17
    %p28 = scmp.ge.s32.totalorder %s27, 2
    %s29 = scalar_select %p28, 0, %s27
    %s30 = ssub.s32 %s17, %s29
    %s31 = ssub.s32 %s18, %s25
    %s32 = sor.u32 %s30, %s31
    %p33 = scmp.eq.s32.totalorder %s32, 0
    %s35 = sadd.s32 %s34, 1
    %s36 = scalar_select %p33, %s34, %s35
    %p39 = pneg %p33
    %p40 = scmp.eq.s32.totalorder %s10, 1
    %p41 = por %p39, %p40
    %p42 = scmp.ne.s32.totalorder %s34, %s37
    %p43 = scmp.eq.s32.totalorder %s10, 0
    %p44 = por %p42, %p43
    %p45 = scmp.ne.s32.totalorder %s34, %s37
    %p46 = scmp.eq.s32.totalorder %s15, 1
    %p47 = por %p45, %p46
    %p48 = scmp.ne.s32.totalorder %s37, %s38
    %p49 = scmp.eq.s32.totalorder %s15, 0
    %p50 = por %p48, %p49
    %p51 = scmp.ne.s32.totalorder %s37, %s38
    %p52 = scmp.eq.s32.totalorder %s16, 1
    %p53 = por %p51, %p52
    %p55 = scmp.ne.s32.totalorder %s38, %s54
    %p56 = scmp.eq.s32.totalorder %s16, 0
    %p57 = por %p55, %p56
    %s59 = sadd.s32 %s58, 1
    %p62 = scmp.eq.s32.totalorder %s10, 1
    %p63 = scmp.ne.s32.totalorder %s58, %s60
    %p64 = scmp.eq.s32.totalorder %s10, 0
    %p65 = por %p63, %p64
    %p66 = scmp.ne.s32.totalorder %s58, %s60
    %p67 = scmp.eq.s32.totalorder %s15, 1
    %p68 = por %p66, %p67
    %p69 = scmp.ne.s32.totalorder %s60, %s61
    %p70 = scmp.eq.s32.totalorder %s15, 0
    %p71 = por %p69, %p70
    %p72 = scmp.ne.s32.totalorder %s60, %s61
    %p73 = scmp.eq.s32.totalorder %s16, 1
    %p74 = por %p72, %p73
    %p76 = scmp.ne.s32.totalorder %s61, %s75
    %p77 = scmp.eq.s32.totalorder %s16, 0
    %p78 = por %p76, %p77
    %s80 = sadd.s32 %s79, 1
    %p83 = scmp.eq.s32.totalorder %s10, 1
    %p84 = scmp.ne.s32.totalorder %s79, %s81
    %p85 = scmp.eq.s32.totalorder %s10, 0
    %p86 = por %p84, %p85
    %p87 = scmp.ne.s32.totalorder %s79, %s81
    %p88 = scmp.eq.s32.totalorder %s15, 1
    %p89 = por %p87, %p88
    %p90 = scmp.ne.s32.totalorder %s81, %s82
    %p91 = scmp.eq.s32.totalorder %s15, 0
    %p92 = por %p90, %p91
    %p93 = scmp.ne.s32.totalorder %s81, %s82
    %p94 = scmp.eq.s32.totalorder %s16, 1
    %p95 = por %p93, %p94
    %p97 = scmp.ne.s32.totalorder %s82, %s96
    %p98 = scmp.eq.s32.totalorder %s16, 0
    %p99 = por %p97, %p98
    %s101 = sadd.s32 %s100, 1
    %p104 = scmp.eq.s32.totalorder %s10, 1
    %p105 = scmp.ne.s32.totalorder %s100, %s102
    %p106 = scmp.eq.s32.totalorder %s10, 0
    %p107 = por %p105, %p106
    %p108 = scmp.ne.s32.totalorder %s100, %s102
    %p109 = scmp.eq.s32.totalorder %s15, 1
    %p110 = por %p108, %p109
    %p111 = scmp.ne.s32.totalorder %s102, %s103
    %p112 = scmp.eq.s32.totalorder %s15, 0
    %p113 = por %p111, %p112
    %p114 = scmp.ne.s32.totalorder %s102, %s103
    %p115 = scmp.eq.s32.totalorder %s16, 1
    %p116 = por %p114, %p115
    %p118 = scmp.ne.s32.totalorder %s103, %s117
    %p119 = scmp.eq.s32.totalorder %s16, 0
    %p120 = por %p118, %p119
    %s121 = ssub.s32 %s17, %s29
    %s122 = ssub.s32 %s18, %s25
    %s123 = sor.u32 %s121, %s122
    %p124 = scmp.eq.s32.totalorder %s123, 0
    %s126 = sadd.s32 %s125, 1
    %s127 = scalar_select %p124, %s125, %s126
    %p130 = pneg %p124
    %p131 = scmp.eq.s32.totalorder %s10, 1
    %p132 = por %p130, %p131
    %p133 = scmp.ne.s32.totalorder %s125, %s128
    %p134 = scmp.eq.s32.totalorder %s10, 0
    %p135 = por %p133, %p134
    %p136 = scmp.ne.s32.totalorder %s125, %s128
    %p137 = scmp.eq.s32.totalorder %s15, 1
    %p138 = por %p136, %p137
    %p139 = scmp.ne.s32.totalorder %s128, %s129
    %p140 = scmp.eq.s32.totalorder %s15, 0
    %p141 = por %p139, %p140
    %p142 = scmp.ne.s32.totalorder %s128, %s129
    %p143 = scmp.eq.s32.totalorder %s16, 1
    %p144 = por %p142, %p143
    %p146 = scmp.ne.s32.totalorder %s129, %s145
    %p147 = scmp.eq.s32.totalorder %s16, 0
    %p148 = por %p146, %p147
    %p149 = scmp.le.s32.totalorder 1, %s10
    %p150 = scmp.lt.s32.totalorder %s10, 3
    %p151 = pnand %p149, %p150
    %p152 = pneg %p151
    // Predicated region
    $region9: #{dgmn2_patch_embed_forward.8} parent=5 // pred_check
      _
    $region10: #{dgmn2_patch_embed_forward.8} parent=5 // pred_check_branch
      %154 = sbr.rel (%p151) target = $region12
    $region11: #{dgmn2_patch_embed_forward.8} parent=5 // pred_region
      %s155 = ssub.s32 %s10, 1
      // Predicated region
      $region13: #{dgmn2_patch_embed_forward.8} parent=11 // pred_check
        %p156 = pneg %p71
      $region14: #{dgmn2_patch_embed_forward.8} parent=11 // pred_check_branch
        %158 = sbr.rel (%p156) target = $region16
      $region15: #{dgmn2_patch_embed_forward.8} parent=11 // pred_region
        _
      $region16: #{dgmn2_patch_embed_forward.8} parent=11 // pred_fallthru
        _
      // Predicated region
      $region17: #{dgmn2_patch_embed_forward.8} parent=11 // pred_check
        %p159 = pneg %p92
      $region18: #{dgmn2_patch_embed_forward.8} parent=11 // pred_check_branch
        %161 = sbr.rel (%p159) target = $region20
      $region19: #{dgmn2_patch_embed_forward.8} parent=11 // pred_region
        _
      $region20: #{dgmn2_patch_embed_forward.8} parent=11 // pred_fallthru
        _
      // Predicated region
      $region21: #{dgmn2_patch_embed_forward.8} parent=11 // pred_check
        %p162 = pneg %p113
      $region22: #{dgmn2_patch_embed_forward.8} parent=11 // pred_check_branch
        %164 = sbr.rel (%p162) target = $region24
      $region23: #{dgmn2_patch_embed_forward.8} parent=11 // pred_region
        _
      $region24: #{dgmn2_patch_embed_forward.8} parent=11 // pred_fallthru
        _
    $region12: #{dgmn2_patch_embed_forward.8} parent=5 // pred_fallthru
      _
    %p165 = scmp.lt.s32.totalorder %s10, 2
    // Predicated region
    $region25: #{dgmn2_patch_embed_forward.8} parent=5 // pred_check
      %p166 = pneg %p165
    $region26: #{dgmn2_patch_embed_forward.8} parent=5 // pred_check_branch
      %168 = sbr.rel (%p166) target = $region28
    $region27: #{dgmn2_patch_embed_forward.8} parent=5 // pred_region
      // Predicated region
      $region29: #{dgmn2_patch_embed_forward.8} parent=27 // pred_check
        %p169 = pneg %p44
      $region30: #{dgmn2_patch_embed_forward.8} parent=27 // pred_check_branch
        %171 = sbr.rel (%p169) target = $region32
      $region31: #{dgmn2_patch_embed_forward.8} parent=27 // pred_region
        %s172 = smul.u32 2, %s18
        %p173 = scmp.lt.s32.totalorder %s17, 1
        %s174 = scalar_select %p173, %s17, 1
        %p175 = scmp.lt.s32.totalorder %s172, 1
        %s176 = scalar_select %p175, %s172, 1
        %s177 = smul.addr %s174, 18
        %s178 = sadd.s32 %s176, %s177
        %s179 = smul.addr %s178, 4
        %s180 = scalar_lea.vmem %s0, %s179
        %s181 = smul.u32 2, %s18
      $region32: #{dgmn2_patch_embed_forward.8} parent=27 // pred_fallthru
        _
    $region28: #{dgmn2_patch_embed_forward.8} parent=5 // pred_fallthru
      _
    %p182 = scmp.le.s32.totalorder 1, %s10
    %p183 = scmp.lt.s32.totalorder %s10, 3
    %p184 = pnand %p182, %p183
    %p185 = pneg %p184
    // Predicated region
    $region33: #{dgmn2_patch_embed_forward.8} parent=5 // pred_check
      _
    $region34: #{dgmn2_patch_embed_forward.8} parent=5 // pred_check_branch
      %187 = sbr.rel (%p184) target = $region36
    $region35: #{dgmn2_patch_embed_forward.8} parent=5 // pred_region
      %s188 = ssub.s32 %s10, 1
      %s189 = smul.u32 2, %s20
      %p190 = scmp.lt.s32.totalorder %s19, 1
      %s191 = scalar_select %p190, %s19, 1
      %p192 = scmp.lt.s32.totalorder %s189, 1
      %s193 = scalar_select %p192, %s189, 1
      %s194 = smul.addr %s191, 18
      %s195 = sadd.s32 %s193, %s194
      %s196 = smul.addr %s195, 4
      %s197 = scalar_lea.vmem %s0, %s196
      %p198 = pneg %p50
      %p199 = pneg %p47
      %p200 = pneg %p71
      %p201 = pneg %p68
      %p202 = pneg %p92
      %p203 = pneg %p89
      %p204 = pneg %p113
      %p205 = pneg %p110
      %p206 = pneg %p141
      %p207 = pneg %p138
      %s208 = smul.u32 2, %s20
      %p209 = scmp.lt.s32.totalorder %s19, 1
      %s210 = scalar_select %p209, %s19, 1
      %p211 = scmp.lt.s32.totalorder %s208, 1
      %s212 = scalar_select %p211, %s208, 1
      %s213 = smul.addr %s210, 4
      %s214 = sadd.s32 %s212, %s213
      %s215 = smul.addr %s214, 8
      %s216 = scalar_lea.vmem %s4, %s215
      %s217 = smul.u32 2, %s20
      %p218 = scmp.lt.s32.totalorder %s19, 1
      %s219 = scalar_select %p218, %s19, 1
      %p220 = scmp.lt.s32.totalorder %s217, 1
      %s221 = scalar_select %p220, %s217, 1
      %s222 = smul.addr %s219, 18
      %s223 = sadd.s32 %s221, %s222
      %s224 = smul.addr %s223, 4
      %s225 = scalar_lea.vmem %s0, %s224
      %s226 = smul.u32 2, %s20
      %s227 = smul.u32 2, %s20
      %p228 = scmp.lt.s32.totalorder %s19, 1
      %s229 = scalar_select %p228, %s19, 1
      %p230 = scmp.lt.s32.totalorder %s227, 1
      %s231 = scalar_select %p230, %s227, 1
      %s232 = smul.addr %s229, 4
      %s233 = sadd.s32 %s231, %s232
      %s234 = smul.addr %s233, 8
      %s235 = scalar_lea.vmem %s4, %s234
      %s236 = smul.u32 2, %s20
      %v238 = vld [vmem:[%s1] sm:$0xf]
      %v239 = vld [vmem:[%s1 + $0x4] sm:$0xf]
      %v240 = vld [vmem:[%s225] sm:$0xff]
      %v241 = vld [vmem:[%s225 + $0x8] sm:$0xff]
      %v242 = vld [vmem:[%s225 + $0x10] sm:$0xff]
      %v243 = vld [vmem:[%s225 + $0x18] sm:$0xff]
      %v244 = vld [vmem:[%s225 + $0x20] sm:$0xff]
      %v245 = vld [vmem:[%s225 + $0x28] sm:$0xff]
      %v246 = vld [vmem:[%s225 + $0x30] sm:$0xff]
      %v247 = vld [vmem:[%s225 + $0x38] sm:$0xff]
      %v248 = vld [vmem:[%s225 + $0x40] sm:$0xff]
      %v251 = vunpack.c.l.b16 %v238
      %v252 = vunpack.c.l.b16 %v239
      %v253 = vpack.c.b16 %v252, %v251
      %v263 = vunpack.c.l.b16 %v240
      %v264 = vunpack.c.h.b16 %v240
      %v265 = vunpack.c.l.b16 %v241
      %v266 = vunpack.c.h.b16 %v241
      %v267 = vunpack.c.l.b16 %v242
      %v268 = vunpack.c.h.b16 %v242
      %v269 = vunpack.c.l.b16 %v243
      %v270 = vunpack.c.h.b16 %v243
      %v271 = vunpack.c.l.b16 %v244
      %v272 = vunpack.c.h.b16 %v244
      %v273 = vunpack.c.l.b16 %v245
      %v274 = vunpack.c.h.b16 %v245
      %v275 = vunpack.c.l.b16 %v246
      %v276 = vunpack.c.h.b16 %v246
      %v277 = vunpack.c.l.b16 %v247
      %v278 = vunpack.c.h.b16 %v247
      %v279 = vunpack.c.l.b16 %v248
      %v280 = vunpack.c.h.b16 %v248
      %v281 = vpack.c.b16 %v265, %v263
      %v282 = vpack.c.b16 %v266, %v264
      %v283 = vpack.c.b16 %v269, %v267
      %v284 = vpack.c.b16 %v270, %v268
      %v285 = vpack.c.b16 %v273, %v271
      %v286 = vpack.c.b16 %v274, %v272
      %v287 = vpack.c.b16 %v277, %v275
      %v288 = vpack.c.b16 %v278, %v276
      %v289 = vpack.c.b16 %v279, %v279
      %v290 = vpack.c.b16 %v280, %v280
      %vm299 = vcmask 588800
      %v301 = vsel %vm299, %v253, 0
      %vm303 = vcmask 1043456
      %v305 = vsel %vm303, %v289, 0
      %v308 = vsel %vm303, %v290, 0
      %310 = vmatprep.subr.bf16.mxu0 0
      %311 = vmatpush1.bf16.msra.mxu0 0
      %312 = vmatprep.subr.bf16.mxu0 0
      %313 = vmatpush1.bf16.msra.mxu0 0
      %314 = vmatprep.subr.bf16.mxu0 0
      %315 = vmatpush1.bf16.msra.mxu0 0
      %316 = vmatprep.subr.bf16.mxu0 %v308
      %317 = vmatpush1.bf16.msra.mxu0 %v305
      %318 = vmatprep.subr.bf16.mxu0 %v288
      %319 = vmatpush1.bf16.msra.mxu0 %v287
      %320 = vmatprep.subr.bf16.mxu0 %v286
      %321 = vmatpush1.bf16.msra.mxu0 %v285
      %322 = vmatprep.subr.bf16.mxu0 %v284
      %323 = vmatpush1.bf16.msra.mxu0 %v283
      %324 = vmatprep.subr.bf16.mxu0 %v282
      %325 = vmatpush1.bf16.msra.mxu0 %v281
      %326 = vmatprep.subr.bf16.mxu0 0
      %327 = vmatpush2.bf16.msra.mxu0 0
      %328 = vmatprep.subr.bf16.mxu0 0
      %329 = vmatpush2.bf16.msra.mxu0 0
      %330 = vmatprep.subr.bf16.mxu0 0
      %331 = vmatpush2.bf16.msra.mxu0 0
      %332 = vmatprep.subr.bf16.mxu0 0
      %333 = vmatpush2.bf16.msra.mxu0 0
      %334 = vmatprep.subr.bf16.mxu0 0
      %335 = vmatpush2.bf16.msra.mxu0 0
      %336 = vmatprep.subr.bf16.mxu0 0
      %337 = vmatpush2.bf16.msra.mxu0 0
      %338 = vmatprep.subr.bf16.mxu0 0
      %339 = vmatpush2.bf16.msra.mxu0 0
      %340 = vmatprep.subr.bf16.mxu0 0
      %341 = vmatpush2.bf16.msra.mxu0 0
      %342 = vmatprep.mubr.bf16.mxu0 0
      %343 = vmatmul.mubr.bf16.gmra.mxu0 %v301
      %v344 = vpop.f32.mrf.mxu0
      %v345 = vadd.f32 0.0, %v344
      %v346 = vpop.f32.mrf.mxu0
      %v347 = vadd.f32 0.0, %v346
      %v348 = vpop.f32.mrf.mxu0
      %v349 = vadd.f32 0.0, %v348
      %v350 = vpop.f32.mrf.mxu0
      %v351 = vadd.f32 0.0, %v350
      %352 = vdwg.mxu0
      %v353 = vld [vmem:[%s2] sm:$0xff]
      %v354 = vld [vmem:[%s2 + $0x8] sm:$0xff]
      %356 = vset.pattern.permute.xlu0 0
      %357 = vperm.xlu0 %356, %v353
      %v358 = vpop.permute.xlu0 %357
      %361 = vset.pattern.permute.xlu0 0
      %362 = vperm.xlu0 %361, %v354
      %v363 = vpop.permute.xlu0 %362
      %v365 = vmul.f32 %v345, %v358
      %v366 = vmul.f32 %v347, %v358
      %v367 = vmul.f32 %v349, %v363
      %v368 = vmul.f32 %v351, %v363
      %v369 = vld [vmem:[%s3] sm:$0xff]
      %v370 = vld [vmem:[%s3 + $0x8] sm:$0xff]
      %372 = vset.pattern.permute.xlu0 0
      %373 = vperm.xlu0 %372, %v369
      %v374 = vpop.permute.xlu0 %373
      %377 = vset.pattern.permute.xlu0 0
      %378 = vperm.xlu0 %377, %v370
      %v379 = vpop.permute.xlu0 %378
      %v381 = vadd.f32 %v365, %v374
      %v382 = vadd.f32 %v366, %v374
      %v383 = vadd.f32 %v367, %v379
      %v384 = vadd.f32 %v368, %v379
      %v385 = vmax.f32 %v381, 0.0
      %v386 = vmax.f32 %v382, 0.0
      %v387 = vmax.f32 %v383, 0.0
      %v388 = vmax.f32 %v384, 0.0
      %389 = vst [vmem:[%s235] sm:$0xff] %v385
      %390 = vst [vmem:[%s235 + $0x8] sm:$0xff] %v386
      %391 = vst [vmem:[%s235 + $0x10] sm:$0xff] %v387
      %392 = vst [vmem:[%s235 + $0x18] sm:$0xff] %v388
      %s393 = smul.u32 2, %s20
      %p394 = scmp.lt.s32.totalorder %s19, 1
      %s395 = scalar_select %p394, %s19, 1
      %p396 = scmp.lt.s32.totalorder %s393, 1
      %s397 = scalar_select %p396, %s393, 1
      %s398 = smul.addr %s395, 4
      %s399 = sadd.s32 %s397, %s398
      %s400 = smul.addr %s399, 8
      %s401 = scalar_lea.vmem %s4, %s400
      // Predicated region
      $region37: #{dgmn2_patch_embed_forward.8} parent=35 // pred_check
        %p402 = pneg %p138
      $region38: #{dgmn2_patch_embed_forward.8} parent=35 // pred_check_branch
        %404 = sbr.rel (%p402) target = $region40
      $region39: #{dgmn2_patch_embed_forward.8} parent=35 // pred_region
        %s405 = smul.u32 2, %s20
      $region40: #{dgmn2_patch_embed_forward.8} parent=35 // pred_fallthru
        _
    $region36: #{dgmn2_patch_embed_forward.8} parent=5 // pred_fallthru
      _
    %p406 = scmp.le.s32.totalorder 2, %s10
    // Predicated region
    $region41: #{dgmn2_patch_embed_forward.8} parent=5 // pred_check
      %p407 = pneg %p406
    $region42: #{dgmn2_patch_embed_forward.8} parent=5 // pred_check_branch
      %409 = sbr.rel (%p407) target = $region44
    $region43: #{dgmn2_patch_embed_forward.8} parent=5 // pred_region
      %s410 = ssub.s32 %s10, 2
      // Predicated region
      $region45: #{dgmn2_patch_embed_forward.8} parent=43 // pred_check
        %p411 = pneg %p144
      $region46: #{dgmn2_patch_embed_forward.8} parent=43 // pred_check_branch
        %413 = sbr.rel (%p411) target = $region48
      $region47: #{dgmn2_patch_embed_forward.8} parent=43 // pred_region
        %s414 = smul.u32 2, %s22
        %p415 = scmp.lt.s32.totalorder %s21, 1
        %s416 = scalar_select %p415, %s21, 1
        %p417 = scmp.lt.s32.totalorder %s414, 1
        %s418 = scalar_select %p417, %s414, 1
        %s419 = smul.addr %s416, 4
        %s420 = sadd.s32 %s418, %s419
        %s421 = smul.addr %s420, 8
        %s422 = scalar_lea.vmem %s4, %s421
      $region48: #{dgmn2_patch_embed_forward.8} parent=43 // pred_fallthru
        _
    $region44: #{dgmn2_patch_embed_forward.8} parent=5 // pred_fallthru
      _
  $region6: #{dgmn2_patch_embed_forward.8} parent=0 // loop_footer
    %s14 = sadd.s32 1, %s10
  $region7: #{dgmn2_patch_embed_forward.8} parent=0 // loop_footer_branch
    %9 = sbr.rel target = $region3
  $region8: #{dgmn2_patch_embed_forward.8} parent=0 // loop_exit
    _

// kernel: dgmn2_patch_embed_forward.9
$region0: #{dgmn2_patch_embed_forward.9}
  #allocation0 [shape = 'u32[]', space=smem, size = 0x4, offset = 0x4, fixed_abs, tag = 'smem constant byte address 0x4 - core index']
  #allocation1 [shape = 'u32[144,128]{1,0:T(1,128)}', space=vmem, size = 0x12000, scoped, tag = 'internal scratch']
  %s0 = inlined_call_operand.vmem [shape: bf16[2,144,64], index: 0, kind: input, shape index: {}]
  %s1 = inlined_call_operand.vmem [shape: bf16[32,144], index: 1, kind: input, shape index: {}]
  %s2 = inlined_call_operand.vmem [shape: f32[32,1], index: 2, kind: input, shape index: {}]
  %s3 = inlined_call_operand.vmem [shape: f32[32,1], index: 3, kind: input, shape index: {}]
  %s4 = inlined_call_operand.vmem [shape: f32[2,32,64], index: 4, kind: output, shape index: {}]
  %s5 = sld [smem:[#allocation0]]
  $region49: #{dgmn2_patch_embed_forward.9} parent=0
    _
  %s7 = ssub.s32 1, %s5
  %s8 = scalar_select 0, %s7, %s5
  loop: start=0, step=1, limit=4
  $region2: #{dgmn2_patch_embed_forward.9} parent=0 // loop_pre_header
    _
  $region3: #{dgmn2_patch_embed_forward.9} parent=0 // loop_header
    %s10 = sphi 0, %s14
    %p11 = scmp.ge.s32.totalorder %s10, 4
    %s17 = sphi 0, %s29
    %s18 = sphi 0, %s25
    %s19 = sphi 0, %s17
    %s20 = sphi 0, %s18
    %s21 = sphi 0, %s19
    %s22 = sphi 0, %s20
    %s34 = sphi 0, %s36
    %s37 = sphi 0, %s34
    %s38 = sphi 0, %s37
    %s54 = sphi 0, %s38
    %s58 = sphi 0, %s58
    %s60 = sphi 0, %s58
    %s61 = sphi 0, %s60
    %s75 = sphi 0, %s61
    %s79 = sphi 0, %s79
    %s81 = sphi 0, %s79
    %s82 = sphi 0, %s81
    %s96 = sphi 0, %s82
    %s100 = sphi 0, %s100
    %s102 = sphi 0, %s100
    %s103 = sphi 0, %s102
    %s117 = sphi 0, %s103
    %s125 = sphi 0, %s127
    %s128 = sphi 0, %s125
    %s129 = sphi 0, %s128
    %s145 = sphi 0, %s129
  $region4: #{dgmn2_patch_embed_forward.9} parent=0 // loop_header_branch
    %13 = sbr.rel (%p11) target = $region8
  $region5: #{dgmn2_patch_embed_forward.9} parent=0 // loop_body
    %s15 = ssub.s32 %s10, 1
    %s16 = ssub.s32 %s10, 2
    %s23 = sadd.s32 1, %s18
    %p24 = scmp.ge.s32.totalorder %s23, 1
    %s25 = scalar_select %p24, 0, %s23
    %s26 = sadd.s32 1, %s17
    %s27 = scalar_select %p24, %s26, %s17
    %p28 = scmp.ge.s32.totalorder %s27, 2
    %s29 = scalar_select %p28, 0, %s27
    %s30 = ssub.s32 %s17, %s29
    %s31 = ssub.s32 %s18, %s25
    %s32 = sor.u32 %s30, %s31
    %p33 = scmp.eq.s32.totalorder %s32, 0
    %s35 = sadd.s32 %s34, 1
    %s36 = scalar_select %p33, %s34, %s35
    %p39 = pneg %p33
    %p40 = scmp.eq.s32.totalorder %s10, 1
    %p41 = por %p39, %p40
    %p42 = scmp.ne.s32.totalorder %s34, %s37
    %p43 = scmp.eq.s32.totalorder %s10, 0
    %p44 = por %p42, %p43
    %p45 = scmp.ne.s32.totalorder %s34, %s37
    %p46 = scmp.eq.s32.totalorder %s15, 1
    %p47 = por %p45, %p46
    %p48 = scmp.ne.s32.totalorder %s37, %s38
    %p49 = scmp.eq.s32.totalorder %s15, 0
    %p50 = por %p48, %p49
    %p51 = scmp.ne.s32.totalorder %s37, %s38
    %p52 = scmp.eq.s32.totalorder %s16, 1
    %p53 = por %p51, %p52
    %p55 = scmp.ne.s32.totalorder %s38, %s54
    %p56 = scmp.eq.s32.totalorder %s16, 0
    %p57 = por %p55, %p56
    %s59 = sadd.s32 %s58, 1
    %p62 = scmp.eq.s32.totalorder %s10, 1
    %p63 = scmp.ne.s32.totalorder %s58, %s60
    %p64 = scmp.eq.s32.totalorder %s10, 0
    %p65 = por %p63, %p64
    %p66 = scmp.ne.s32.totalorder %s58, %s60
    %p67 = scmp.eq.s32.totalorder %s15, 1
    %p68 = por %p66, %p67
    %p69 = scmp.ne.s32.totalorder %s60, %s61
    %p70 = scmp.eq.s32.totalorder %s15, 0
    %p71 = por %p69, %p70
    %p72 = scmp.ne.s32.totalorder %s60, %s61
    %p73 = scmp.eq.s32.totalorder %s16, 1
    %p74 = por %p72, %p73
    %p76 = scmp.ne.s32.totalorder %s61, %s75
    %p77 = scmp.eq.s32.totalorder %s16, 0
    %p78 = por %p76, %p77
    %s80 = sadd.s32 %s79, 1
    %p83 = scmp.eq.s32.totalorder %s10, 1
    %p84 = scmp.ne.s32.totalorder %s79, %s81
    %p85 = scmp.eq.s32.totalorder %s10, 0
    %p86 = por %p84, %p85
    %p87 = scmp.ne.s32.totalorder %s79, %s81
    %p88 = scmp.eq.s32.totalorder %s15, 1
    %p89 = por %p87, %p88
    %p90 = scmp.ne.s32.totalorder %s81, %s82
    %p91 = scmp.eq.s32.totalorder %s15, 0
    %p92 = por %p90, %p91
    %p93 = scmp.ne.s32.totalorder %s81, %s82
    %p94 = scmp.eq.s32.totalorder %s16, 1
    %p95 = por %p93, %p94
    %p97 = scmp.ne.s32.totalorder %s82, %s96
    %p98 = scmp.eq.s32.totalorder %s16, 0
    %p99 = por %p97, %p98
    %s101 = sadd.s32 %s100, 1
    %p104 = scmp.eq.s32.totalorder %s10, 1
    %p105 = scmp.ne.s32.totalorder %s100, %s102
    %p106 = scmp.eq.s32.totalorder %s10, 0
    %p107 = por %p105, %p106
    %p108 = scmp.ne.s32.totalorder %s100, %s102
    %p109 = scmp.eq.s32.totalorder %s15, 1
    %p110 = por %p108, %p109
    %p111 = scmp.ne.s32.totalorder %s102, %s103
    %p112 = scmp.eq.s32.totalorder %s15, 0
    %p113 = por %p111, %p112
    %p114 = scmp.ne.s32.totalorder %s102, %s103
    %p115 = scmp.eq.s32.totalorder %s16, 1
    %p116 = por %p114, %p115
    %p118 = scmp.ne.s32.totalorder %s103, %s117
    %p119 = scmp.eq.s32.totalorder %s16, 0
    %p120 = por %p118, %p119
    %s121 = ssub.s32 %s17, %s29
    %s122 = ssub.s32 %s18, %s25
    %s123 = sor.u32 %s121, %s122
    %p124 = scmp.eq.s32.totalorder %s123, 0
    %s126 = sadd.s32 %s125, 1
    %s127 = scalar_select %p124, %s125, %s126
    %p130 = pneg %p124
    %p131 = scmp.eq.s32.totalorder %s10, 1
    %p132 = por %p130, %p131
    %p133 = scmp.ne.s32.totalorder %s125, %s128
    %p134 = scmp.eq.s32.totalorder %s10, 0
    %p135 = por %p133, %p134
    %p136 = scmp.ne.s32.totalorder %s125, %s128
    %p137 = scmp.eq.s32.totalorder %s15, 1
    %p138 = por %p136, %p137
    %p139 = scmp.ne.s32.totalorder %s128, %s129
    %p140 = scmp.eq.s32.totalorder %s15, 0
    %p141 = por %p139, %p140
    %p142 = scmp.ne.s32.totalorder %s128, %s129
    %p143 = scmp.eq.s32.totalorder %s16, 1
    %p144 = por %p142, %p143
    %p146 = scmp.ne.s32.totalorder %s129, %s145
    %p147 = scmp.eq.s32.totalorder %s16, 0
    %p148 = por %p146, %p147
    %p149 = scmp.le.s32.totalorder 1, %s10
    %p150 = scmp.lt.s32.totalorder %s10, 3
    %p151 = pnand %p149, %p150
    %p152 = pneg %p151
    // Predicated region
    $region9: #{dgmn2_patch_embed_forward.9} parent=5 // pred_check
      _
    $region10: #{dgmn2_patch_embed_forward.9} parent=5 // pred_check_branch
      %154 = sbr.rel (%p151) target = $region12
    $region11: #{dgmn2_patch_embed_forward.9} parent=5 // pred_region
      %s155 = ssub.s32 %s10, 1
      // Predicated region
      $region13: #{dgmn2_patch_embed_forward.9} parent=11 // pred_check
        %p156 = pneg %p71
      $region14: #{dgmn2_patch_embed_forward.9} parent=11 // pred_check_branch
        %158 = sbr.rel (%p156) target = $region16
      $region15: #{dgmn2_patch_embed_forward.9} parent=11 // pred_region
        _
      $region16: #{dgmn2_patch_embed_forward.9} parent=11 // pred_fallthru
        _
      // Predicated region
      $region17: #{dgmn2_patch_embed_forward.9} parent=11 // pred_check
        %p159 = pneg %p92
      $region18: #{dgmn2_patch_embed_forward.9} parent=11 // pred_check_branch
        %161 = sbr.rel (%p159) target = $region20
      $region19: #{dgmn2_patch_embed_forward.9} parent=11 // pred_region
        _
      $region20: #{dgmn2_patch_embed_forward.9} parent=11 // pred_fallthru
        _
      // Predicated region
      $region21: #{dgmn2_patch_embed_forward.9} parent=11 // pred_check
        %p162 = pneg %p113
      $region22: #{dgmn2_patch_embed_forward.9} parent=11 // pred_check_branch
        %164 = sbr.rel (%p162) target = $region24
      $region23: #{dgmn2_patch_embed_forward.9} parent=11 // pred_region
        _
      $region24: #{dgmn2_patch_embed_forward.9} parent=11 // pred_fallthru
        _
    $region12: #{dgmn2_patch_embed_forward.9} parent=5 // pred_fallthru
      _
    %p165 = scmp.lt.s32.totalorder %s10, 2
    // Predicated region
    $region25: #{dgmn2_patch_embed_forward.9} parent=5 // pred_check
      %p166 = pneg %p165
    $region26: #{dgmn2_patch_embed_forward.9} parent=5 // pred_check_branch
      %168 = sbr.rel (%p166) target = $region28
    $region27: #{dgmn2_patch_embed_forward.9} parent=5 // pred_region
      // Predicated region
      $region29: #{dgmn2_patch_embed_forward.9} parent=27 // pred_check
        %p169 = pneg %p44
      $region30: #{dgmn2_patch_embed_forward.9} parent=27 // pred_check_branch
        %171 = sbr.rel (%p169) target = $region32
      $region31: #{dgmn2_patch_embed_forward.9} parent=27 // pred_region
        %p172 = scmp.lt.s32.totalorder %s17, 1
        %s173 = scalar_select %p172, %s17, 1
        %p174 = scmp.lt.s32.totalorder %s18, 0
        %s175 = scalar_select %p174, %s18, 0
        %s176 = smul.addr %s173, 18
        %s177 = sadd.s32 %s175, %s176
        %s178 = smul.addr %s177, 4
        %s179 = scalar_lea.vmem %s0, %s178
      $region32: #{dgmn2_patch_embed_forward.9} parent=27 // pred_fallthru
        _
    $region28: #{dgmn2_patch_embed_forward.9} parent=5 // pred_fallthru
      _
    %p180 = scmp.le.s32.totalorder 1, %s10
    %p181 = scmp.lt.s32.totalorder %s10, 3
    %p182 = pnand %p180, %p181
    %p183 = pneg %p182
    // Predicated region
    $region33: #{dgmn2_patch_embed_forward.9} parent=5 // pred_check
      _
    $region34: #{dgmn2_patch_embed_forward.9} parent=5 // pred_check_branch
      %185 = sbr.rel (%p182) target = $region36
    $region35: #{dgmn2_patch_embed_forward.9} parent=5 // pred_region
      %s186 = ssub.s32 %s10, 1
      %p187 = scmp.lt.s32.totalorder %s19, 1
      %s188 = scalar_select %p187, %s19, 1
      %p189 = scmp.lt.s32.totalorder %s20, 0
      %s190 = scalar_select %p189, %s20, 0
      %s191 = smul.addr %s188, 18
      %s192 = sadd.s32 %s190, %s191
      %s193 = smul.addr %s192, 4
      %s194 = scalar_lea.vmem %s0, %s193
      %p195 = pneg %p50
      %p196 = pneg %p47
      %p197 = pneg %p71
      %p198 = pneg %p68
      %p199 = pneg %p92
      %p200 = pneg %p89
      %p201 = pneg %p113
      %p202 = pneg %p110
      %p203 = pneg %p141
      %p204 = pneg %p138
      %p205 = scmp.lt.s32.totalorder %s19, 1
      %s206 = scalar_select %p205, %s19, 1
      %p207 = scmp.lt.s32.totalorder %s20, 0
      %s208 = scalar_select %p207, %s20, 0
      %s209 = smul.addr %s206, 4
      %s210 = sadd.s32 %s208, %s209
      %s211 = smul.addr %s210, 8
      %s212 = scalar_lea.vmem %s4, %s211
      %p213 = scmp.lt.s32.totalorder %s19, 1
      %s214 = scalar_select %p213, %s19, 1
      %p215 = scmp.lt.s32.totalorder %s20, 0
      %s216 = scalar_select %p215, %s20, 0
      %s217 = smul.addr %s214, 18
      %s218 = sadd.s32 %s216, %s217
      %s219 = smul.addr %s218, 4
      %s220 = scalar_lea.vmem %s0, %s219
      %p221 = scmp.lt.s32.totalorder %s19, 1
      %s222 = scalar_select %p221, %s19, 1
      %p223 = scmp.lt.s32.totalorder %s20, 0
      %s224 = scalar_select %p223, %s20, 0
      %s225 = smul.addr %s222, 4
      %s226 = sadd.s32 %s224, %s225
      %s227 = smul.addr %s226, 8
      %s228 = scalar_lea.vmem %s4, %s227
      %v230 = vld [vmem:[%s1] sm:$0xff]
      %v231 = vld [vmem:[%s1 + $0x8] sm:$0xff]
      %v232 = vld [vmem:[%s1 + $0x10] sm:$0xff]
      %v233 = vld [vmem:[%s1 + $0x18] sm:$0xff]
      %v234 = vld [vmem:[%s220] sm:$0xf]
      %v235 = vld [vmem:[%s220 + $0x4] sm:$0xf]
      %v236 = vld [vmem:[%s220 + $0x8] sm:$0xf]
      %v237 = vld [vmem:[%s220 + $0xc] sm:$0xf]
      %v238 = vld [vmem:[%s220 + $0x10] sm:$0xf]
      %v239 = vld [vmem:[%s220 + $0x14] sm:$0xf]
      %v240 = vld [vmem:[%s220 + $0x18] sm:$0xf]
      %v241 = vld [vmem:[%s220 + $0x1c] sm:$0xf]
      %v242 = vld [vmem:[%s220 + $0x20] sm:$0xf]
      %v243 = vld [vmem:[%s220 + $0x24] sm:$0xf]
      %v244 = vld [vmem:[%s220 + $0x28] sm:$0xf]
      %v245 = vld [vmem:[%s220 + $0x2c] sm:$0xf]
      %v246 = vld [vmem:[%s220 + $0x30] sm:$0xf]
      %v247 = vld [vmem:[%s220 + $0x34] sm:$0xf]
      %v248 = vld [vmem:[%s220 + $0x38] sm:$0xf]
      %v249 = vld [vmem:[%s220 + $0x3c] sm:$0xf]
      %v250 = vld [vmem:[%s220 + $0x40] sm:$0xf]
      %v251 = vld [vmem:[%s220 + $0x44] sm:$0xf]
      %v256 = vunpack.c.l.b16 %v230
      %v257 = vunpack.c.h.b16 %v230
      %v258 = vunpack.c.l.b16 %v231
      %v259 = vunpack.c.h.b16 %v231
      %v260 = vunpack.c.l.b16 %v232
      %v261 = vunpack.c.h.b16 %v232
      %v262 = vunpack.c.l.b16 %v233
      %v263 = vunpack.c.h.b16 %v233
      %v264 = vpack.c.b16 %v258, %v256
      %v265 = vpack.c.b16 %v259, %v257
      %v266 = vpack.c.b16 %v262, %v260
      %v267 = vpack.c.b16 %v263, %v261
      %v288 = vunpack.c.l.b16 %v234
      %v289 = vunpack.c.l.b16 %v235
      %v290 = vunpack.c.l.b16 %v236
      %v291 = vunpack.c.l.b16 %v237
      %v292 = vunpack.c.l.b16 %v238
      %v293 = vunpack.c.l.b16 %v239
      %v294 = vunpack.c.l.b16 %v240
      %v295 = vunpack.c.l.b16 %v241
      %v296 = vunpack.c.l.b16 %v242
      %v297 = vunpack.c.l.b16 %v243
      %v298 = vunpack.c.l.b16 %v244
      %v299 = vunpack.c.l.b16 %v245
      %v300 = vunpack.c.l.b16 %v246
      %v301 = vunpack.c.l.b16 %v247
      %v302 = vunpack.c.l.b16 %v248
      %v303 = vunpack.c.l.b16 %v249
      %v304 = vunpack.c.l.b16 %v250
      %v305 = vunpack.c.l.b16 %v251
      %v306 = vpack.c.b16 %v289, %v288
      %v307 = vpack.c.b16 %v291, %v290
      %v308 = vpack.c.b16 %v293, %v292
      %v309 = vpack.c.b16 %v295, %v294
      %v310 = vpack.c.b16 %v297, %v296
      %v311 = vpack.c.b16 %v299, %v298
      %v312 = vpack.c.b16 %v301, %v300
      %v313 = vpack.c.b16 %v303, %v302
      %v314 = vpack.c.b16 %v305, %v304
      %vm324 = vcmask 130048
      %v326 = vsel %vm324, %v265, 0
      %v329 = vsel %vm324, %v267, 0
      %331 = vmatprep.subr.bf16.mxu0 0
      %332 = vmatpush1.bf16.msra.mxu0 %v313
      %333 = vmatprep.subr.bf16.mxu0 0
      %334 = vmatpush1.bf16.msra.mxu0 %v312
      %335 = vmatprep.subr.bf16.mxu0 0
      %336 = vmatpush1.bf16.msra.mxu0 %v311
      %337 = vmatprep.subr.bf16.mxu0 0
      %338 = vmatpush1.bf16.msra.mxu0 %v310
      %339 = vmatprep.subr.bf16.mxu0 0
      %340 = vmatpush1.bf16.msra.mxu0 %v309
      %341 = vmatprep.subr.bf16.mxu0 0
      %342 = vmatpush1.bf16.msra.mxu0 %v308
      %343 = vmatprep.subr.bf16.mxu0 0
      %344 = vmatpush1.bf16.msra.mxu0 %v307
      %345 = vmatprep.subr.bf16.mxu0 0
      %346 = vmatpush1.bf16.msra.mxu0 %v306
      %347 = vmatprep.subr.bf16.mxu0 0
      %348 = vmatpush2.bf16.msra.mxu0 0
      %349 = vmatprep.subr.bf16.mxu0 0
      %350 = vmatpush2.bf16.msra.mxu0 0
      %351 = vmatprep.subr.bf16.mxu0 0
      %352 = vmatpush2.bf16.msra.mxu0 0
      %353 = vmatprep.subr.bf16.mxu0 0
      %354 = vmatpush2.bf16.msra.mxu0 0
      %355 = vmatprep.subr.bf16.mxu0 0
      %356 = vmatpush2.bf16.msra.mxu0 0
      %357 = vmatprep.subr.bf16.mxu0 0
      %358 = vmatpush2.bf16.msra.mxu0 0
      %359 = vmatprep.subr.bf16.mxu0 0
      %360 = vmatpush2.bf16.msra.mxu0 0
      %361 = vmatprep.subr.bf16.mxu0 0
      %362 = vmatpush2.bf16.msra.mxu0 %v314
      %363 = vmatprep.mubr.bf16.mxu0 %v326
      %364 = vmatmul.mubr.bf16.gmra.mxu0 %v264
      %v365 = vpop.f32.mrf.mxu0
      %v366 = vadd.f32 0.0, %v365
      %v367 = vpop.f32.mrf.mxu0
      %v368 = vpop.f32.mrf.mxu0
      %v369 = vadd.f32 0.0, %v368
      %v370 = vpop.f32.mrf.mxu0
      %371 = vmatprep.mubr.bf16.mxu0 %v329
      %372 = vmatmul.mubr.bf16.gmra.mxu0 %v266
      %v373 = vpop.f32.mrf.mxu0
      %v374 = vadd.f32 0.0, %v373
      %v375 = vpop.f32.mrf.mxu0
      %v376 = vpop.f32.mrf.mxu0
      %v377 = vadd.f32 0.0, %v376
      %v378 = vpop.f32.mrf.mxu0
      %379 = vdwg.mxu0
      %v380 = vld [vmem:[%s2] sm:$0xff]
      %v381 = vld [vmem:[%s2 + $0x8] sm:$0xff]
      %v382 = vld [vmem:[%s2 + $0x10] sm:$0xff]
      %v383 = vld [vmem:[%s2 + $0x18] sm:$0xff]
      %385 = vset.pattern.permute.xlu0 0
      %386 = vperm.xlu0 %385, %v380
      %v387 = vpop.permute.xlu0 %386
      %390 = vset.pattern.permute.xlu0 0
      %391 = vperm.xlu0 %390, %v381
      %v392 = vpop.permute.xlu0 %391
      %395 = vset.pattern.permute.xlu0 0
      %396 = vperm.xlu0 %395, %v382
      %v397 = vpop.permute.xlu0 %396
      %400 = vset.pattern.permute.xlu0 0
      %401 = vperm.xlu0 %400, %v383
      %v402 = vpop.permute.xlu0 %401
      %v404 = vmul.f32 %v366, %v387
      %v405 = vmul.f32 %v369, %v392
      %v406 = vmul.f32 %v374, %v397
      %v407 = vmul.f32 %v377, %v402
      %v408 = vld [vmem:[%s3] sm:$0xff]
      %v409 = vld [vmem:[%s3 + $0x8] sm:$0xff]
      %v410 = vld [vmem:[%s3 + $0x10] sm:$0xff]
      %v411 = vld [vmem:[%s3 + $0x18] sm:$0xff]
      %413 = vset.pattern.permute.xlu0 0
      %414 = vperm.xlu0 %413, %v408
      %v415 = vpop.permute.xlu0 %414
      %418 = vset.pattern.permute.xlu0 0
      %419 = vperm.xlu0 %418, %v409
      %v420 = vpop.permute.xlu0 %419
      %423 = vset.pattern.permute.xlu0 0
      %424 = vperm.xlu0 %423, %v410
      %v425 = vpop.permute.xlu0 %424
      %428 = vset.pattern.permute.xlu0 0
      %429 = vperm.xlu0 %428, %v411
      %v430 = vpop.permute.xlu0 %429
      %v432 = vadd.f32 %v404, %v415
      %v433 = vadd.f32 %v405, %v420
      %v434 = vadd.f32 %v406, %v425
      %v435 = vadd.f32 %v407, %v430
      %v436 = vmax.f32 %v432, 0.0
      %v437 = vmax.f32 %v433, 0.0
      %v438 = vmax.f32 %v434, 0.0
      %v439 = vmax.f32 %v435, 0.0
      %vm440 = vcmask 523264
      %441 = vst.msk [vmem:[%s228] sm:$0xff] %vm440, %v436
      %442 = vst.msk [vmem:[%s228 + $0x8] sm:$0xff] %vm440, %v437
      %443 = vst.msk [vmem:[%s228 + $0x10] sm:$0xff] %vm440, %v438
      %444 = vst.msk [vmem:[%s228 + $0x18] sm:$0xff] %vm440, %v439
      %p445 = scmp.lt.s32.totalorder %s19, 1
      %s446 = scalar_select %p445, %s19, 1
      %p447 = scmp.lt.s32.totalorder %s20, 0
      %s448 = scalar_select %p447, %s20, 0
      %s449 = smul.addr %s446, 4
      %s450 = sadd.s32 %s448, %s449
      %s451 = smul.addr %s450, 8
      %s452 = scalar_lea.vmem %s4, %s451
      // Predicated region
      $region37: #{dgmn2_patch_embed_forward.9} parent=35 // pred_check
        %p453 = pneg %p138
      $region38: #{dgmn2_patch_embed_forward.9} parent=35 // pred_check_branch
        %455 = sbr.rel (%p453) target = $region40
      $region39: #{dgmn2_patch_embed_forward.9} parent=35 // pred_region
        _
      $region40: #{dgmn2_patch_embed_forward.9} parent=35 // pred_fallthru
        _
    $region36: #{dgmn2_patch_embed_forward.9} parent=5 // pred_fallthru
      _
    %p456 = scmp.le.s32.totalorder 2, %s10
    // Predicated region
    $region41: #{dgmn2_patch_embed_forward.9} parent=5 // pred_check
      %p457 = pneg %p456
    $region42: #{dgmn2_patch_embed_forward.9} parent=5 // pred_check_branch
      %459 = sbr.rel (%p457) target = $region44
    $region43: #{dgmn2_patch_embed_forward.9} parent=5 // pred_region
      %s460 = ssub.s32 %s10, 2
      // Predicated region
      $region45: #{dgmn2_patch_embed_forward.9} parent=43 // pred_check
        %p461 = pneg %p144
      $region46: #{dgmn2_patch_embed_forward.9} parent=43 // pred_check_branch
        %463 = sbr.rel (%p461) target = $region48
      $region47: #{dgmn2_patch_embed_forward.9} parent=43 // pred_region
        %p464 = scmp.lt.s32.totalorder %s21, 1
        %s465 = scalar_select %p464, %s21, 1
        %p466 = scmp.lt.s32.totalorder %s22, 0
        %s467 = scalar_select %p466, %s22, 0
        %s468 = smul.addr %s465, 4
        %s469 = sadd.s32 %s467, %s468
        %s470 = smul.addr %s469, 8
        %s471 = scalar_lea.vmem %s4, %s470
      $region48: #{dgmn2_patch_embed_forward.9} parent=43 // pred_fallthru
        _
    $region44: #{dgmn2_patch_embed_forward.9} parent=5 // pred_fallthru
      _
  $region6: #{dgmn2_patch_embed_forward.9} parent=0 // loop_footer
    %s14 = sadd.s32 1, %s10
  $region7: #{dgmn2_patch_embed_forward.9} parent=0 // loop_footer_branch
    %9 = sbr.rel target = $region3
  $region8: #{dgmn2_patch_embed_forward.9} parent=0 // loop_exit
    _

// kernel: dgmn2_patch_embed_forward.10
$region0: #{dgmn2_patch_embed_forward.10}
  #allocation0 [shape = 'u32[]', space=smem, size = 0x4, offset = 0x4, fixed_abs, tag = 'smem constant byte address 0x4 - core index']
  #allocation1 [shape = 'u32[144,128]{1,0:T(1,128)}', space=vmem, size = 0x12000, scoped, tag = 'internal scratch']
  %s0 = inlined_call_operand.vmem [shape: bf16[2,288,16], index: 0, kind: input, shape index: {}]
  %s1 = inlined_call_operand.vmem [shape: bf16[64,288], index: 1, kind: input, shape index: {}]
  %s2 = inlined_call_operand.vmem [shape: f32[64,1], index: 2, kind: input, shape index: {}]
  %s3 = inlined_call_operand.vmem [shape: f32[64,1], index: 3, kind: input, shape index: {}]
  %s4 = inlined_call_operand.vmem [shape: f32[2,64,16], index: 4, kind: output, shape index: {}]
  %s5 = sld [smem:[#allocation0]]
  $region49: #{dgmn2_patch_embed_forward.10} parent=0
    _
  %s7 = ssub.s32 1, %s5
  %s8 = scalar_select 0, %s7, %s5
  loop: start=0, step=1, limit=4
  $region2: #{dgmn2_patch_embed_forward.10} parent=0 // loop_pre_header
    _
  $region3: #{dgmn2_patch_embed_forward.10} parent=0 // loop_header
    %s10 = sphi 0, %s14
    %p11 = scmp.ge.s32.totalorder %s10, 4
    %s17 = sphi 0, %s29
    %s18 = sphi 0, %s25
    %s19 = sphi 0, %s17
    %s20 = sphi 0, %s18
    %s21 = sphi 0, %s19
    %s22 = sphi 0, %s20
    %s34 = sphi 0, %s36
    %s37 = sphi 0, %s34
    %s38 = sphi 0, %s37
    %s54 = sphi 0, %s38
    %s58 = sphi 0, %s58
    %s60 = sphi 0, %s58
    %s61 = sphi 0, %s60
    %s75 = sphi 0, %s61
    %s79 = sphi 0, %s79
    %s81 = sphi 0, %s79
    %s82 = sphi 0, %s81
    %s96 = sphi 0, %s82
    %s100 = sphi 0, %s100
    %s102 = sphi 0, %s100
    %s103 = sphi 0, %s102
    %s117 = sphi 0, %s103
    %s125 = sphi 0, %s127
    %s128 = sphi 0, %s125
    %s129 = sphi 0, %s128
    %s145 = sphi 0, %s129
  $region4: #{dgmn2_patch_embed_forward.10} parent=0 // loop_header_branch
    %13 = sbr.rel (%p11) target = $region8
  $region5: #{dgmn2_patch_embed_forward.10} parent=0 // loop_body
    %s15 = ssub.s32 %s10, 1
    %s16 = ssub.s32 %s10, 2
    %s23 = sadd.s32 1, %s18
    %p24 = scmp.ge.s32.totalorder %s23, 1
    %s25 = scalar_select %p24, 0, %s23
    %s26 = sadd.s32 1, %s17
    %s27 = scalar_select %p24, %s26, %s17
    %p28 = scmp.ge.s32.totalorder %s27, 2
    %s29 = scalar_select %p28, 0, %s27
    %s30 = ssub.s32 %s17, %s29
    %s31 = ssub.s32 %s18, %s25
    %s32 = sor.u32 %s30, %s31
    %p33 = scmp.eq.s32.totalorder %s32, 0
    %s35 = sadd.s32 %s34, 1
    %s36 = scalar_select %p33, %s34, %s35
    %p39 = pneg %p33
    %p40 = scmp.eq.s32.totalorder %s10, 1
    %p41 = por %p39, %p40
    %p42 = scmp.ne.s32.totalorder %s34, %s37
    %p43 = scmp.eq.s32.totalorder %s10, 0
    %p44 = por %p42, %p43
    %p45 = scmp.ne.s32.totalorder %s34, %s37
    %p46 = scmp.eq.s32.totalorder %s15, 1
    %p47 = por %p45, %p46
    %p48 = scmp.ne.s32.totalorder %s37, %s38
    %p49 = scmp.eq.s32.totalorder %s15, 0
    %p50 = por %p48, %p49
    %p51 = scmp.ne.s32.totalorder %s37, %s38
    %p52 = scmp.eq.s32.totalorder %s16, 1
    %p53 = por %p51, %p52
    %p55 = scmp.ne.s32.totalorder %s38, %s54
    %p56 = scmp.eq.s32.totalorder %s16, 0
    %p57 = por %p55, %p56
    %s59 = sadd.s32 %s58, 1
    %p62 = scmp.eq.s32.totalorder %s10, 1
    %p63 = scmp.ne.s32.totalorder %s58, %s60
    %p64 = scmp.eq.s32.totalorder %s10, 0
    %p65 = por %p63, %p64
    %p66 = scmp.ne.s32.totalorder %s58, %s60
    %p67 = scmp.eq.s32.totalorder %s15, 1
    %p68 = por %p66, %p67
    %p69 = scmp.ne.s32.totalorder %s60, %s61
    %p70 = scmp.eq.s32.totalorder %s15, 0
    %p71 = por %p69, %p70
    %p72 = scmp.ne.s32.totalorder %s60, %s61
    %p73 = scmp.eq.s32.totalorder %s16, 1
    %p74 = por %p72, %p73
    %p76 = scmp.ne.s32.totalorder %s61, %s75
    %p77 = scmp.eq.s32.totalorder %s16, 0
    %p78 = por %p76, %p77
    %s80 = sadd.s32 %s79, 1
    %p83 = scmp.eq.s32.totalorder %s10, 1
    %p84 = scmp.ne.s32.totalorder %s79, %s81
    %p85 = scmp.eq.s32.totalorder %s10, 0
    %p86 = por %p84, %p85
    %p87 = scmp.ne.s32.totalorder %s79, %s81
    %p88 = scmp.eq.s32.totalorder %s15, 1
    %p89 = por %p87, %p88
    %p90 = scmp.ne.s32.totalorder %s81, %s82
    %p91 = scmp.eq.s32.totalorder %s15, 0
    %p92 = por %p90, %p91
    %p93 = scmp.ne.s32.totalorder %s81, %s82
    %p94 = scmp.eq.s32.totalorder %s16, 1
    %p95 = por %p93, %p94
    %p97 = scmp.ne.s32.totalorder %s82, %s96
    %p98 = scmp.eq.s32.totalorder %s16, 0
    %p99 = por %p97, %p98
    %s101 = sadd.s32 %s100, 1
    %p104 = scmp.eq.s32.totalorder %s10, 1
    %p105 = scmp.ne.s32.totalorder %s100, %s102
    %p106 = scmp.eq.s32.totalorder %s10, 0
    %p107 = por %p105, %p106
    %p108 = scmp.ne.s32.totalorder %s100, %s102
    %p109 = scmp.eq.s32.totalorder %s15, 1
    %p110 = por %p108, %p109
    %p111 = scmp.ne.s32.totalorder %s102, %s103
    %p112 = scmp.eq.s32.totalorder %s15, 0
    %p113 = por %p111, %p112
    %p114 = scmp.ne.s32.totalorder %s102, %s103
    %p115 = scmp.eq.s32.totalorder %s16, 1
    %p116 = por %p114, %p115
    %p118 = scmp.ne.s32.totalorder %s103, %s117
    %p119 = scmp.eq.s32.totalorder %s16, 0
    %p120 = por %p118, %p119
    %s121 = ssub.s32 %s17, %s29
    %s122 = ssub.s32 %s18, %s25
    %s123 = sor.u32 %s121, %s122
    %p124 = scmp.eq.s32.totalorder %s123, 0
    %s126 = sadd.s32 %s125, 1
    %s127 = scalar_select %p124, %s125, %s126
    %p130 = pneg %p124
    %p131 = scmp.eq.s32.totalorder %s10, 1
    %p132 = por %p130, %p131
    %p133 = scmp.ne.s32.totalorder %s125, %s128
    %p134 = scmp.eq.s32.totalorder %s10, 0
    %p135 = por %p133, %p134
    %p136 = scmp.ne.s32.totalorder %s125, %s128
    %p137 = scmp.eq.s32.totalorder %s15, 1
    %p138 = por %p136, %p137
    %p139 = scmp.ne.s32.totalorder %s128, %s129
    %p140 = scmp.eq.s32.totalorder %s15, 0
    %p141 = por %p139, %p140
    %p142 = scmp.ne.s32.totalorder %s128, %s129
    %p143 = scmp.eq.s32.totalorder %s16, 1
    %p144 = por %p142, %p143
    %p146 = scmp.ne.s32.totalorder %s129, %s145
    %p147 = scmp.eq.s32.totalorder %s16, 0
    %p148 = por %p146, %p147
    %p149 = scmp.le.s32.totalorder 1, %s10
    %p150 = scmp.lt.s32.totalorder %s10, 3
    %p151 = pnand %p149, %p150
    %p152 = pneg %p151
    // Predicated region
    $region9: #{dgmn2_patch_embed_forward.10} parent=5 // pred_check
      _
    $region10: #{dgmn2_patch_embed_forward.10} parent=5 // pred_check_branch
      %154 = sbr.rel (%p151) target = $region12
    $region11: #{dgmn2_patch_embed_forward.10} parent=5 // pred_region
      %s155 = ssub.s32 %s10, 1
      // Predicated region
      $region13: #{dgmn2_patch_embed_forward.10} parent=11 // pred_check
        %p156 = pneg %p71
      $region14: #{dgmn2_patch_embed_forward.10} parent=11 // pred_check_branch
        %158 = sbr.rel (%p156) target = $region16
      $region15: #{dgmn2_patch_embed_forward.10} parent=11 // pred_region
        _
      $region16: #{dgmn2_patch_embed_forward.10} parent=11 // pred_fallthru
        _
      // Predicated region
      $region17: #{dgmn2_patch_embed_forward.10} parent=11 // pred_check
        %p159 = pneg %p92
      $region18: #{dgmn2_patch_embed_forward.10} parent=11 // pred_check_branch
        %161 = sbr.rel (%p159) target = $region20
      $region19: #{dgmn2_patch_embed_forward.10} parent=11 // pred_region
        _
      $region20: #{dgmn2_patch_embed_forward.10} parent=11 // pred_fallthru
        _
      // Predicated region
      $region21: #{dgmn2_patch_embed_forward.10} parent=11 // pred_check
        %p162 = pneg %p113
      $region22: #{dgmn2_patch_embed_forward.10} parent=11 // pred_check_branch
        %164 = sbr.rel (%p162) target = $region24
      $region23: #{dgmn2_patch_embed_forward.10} parent=11 // pred_region
        _
      $region24: #{dgmn2_patch_embed_forward.10} parent=11 // pred_fallthru
        _
    $region12: #{dgmn2_patch_embed_forward.10} parent=5 // pred_fallthru
      _
    %p165 = scmp.lt.s32.totalorder %s10, 2
    // Predicated region
    $region25: #{dgmn2_patch_embed_forward.10} parent=5 // pred_check
      %p166 = pneg %p165
    $region26: #{dgmn2_patch_embed_forward.10} parent=5 // pred_check_branch
      %168 = sbr.rel (%p166) target = $region28
    $region27: #{dgmn2_patch_embed_forward.10} parent=5 // pred_region
      // Predicated region
      $region29: #{dgmn2_patch_embed_forward.10} parent=27 // pred_check
        %p169 = pneg %p44
      $region30: #{dgmn2_patch_embed_forward.10} parent=27 // pred_check_branch
        %171 = sbr.rel (%p169) target = $region32
      $region31: #{dgmn2_patch_embed_forward.10} parent=27 // pred_region
        %p172 = scmp.lt.s32.totalorder %s17, 1
        %s173 = scalar_select %p172, %s17, 1
        %p174 = scmp.lt.s32.totalorder %s18, 0
        %s175 = scalar_select %p174, %s18, 0
        %s176 = smul.addr %s173, 36
        %s177 = sadd.s32 %s175, %s176
        %s178 = smul.addr %s177, 4
        %s179 = scalar_lea.vmem %s0, %s178
      $region32: #{dgmn2_patch_embed_forward.10} parent=27 // pred_fallthru
        _
    $region28: #{dgmn2_patch_embed_forward.10} parent=5 // pred_fallthru
      _
    %p180 = scmp.le.s32.totalorder 1, %s10
    %p181 = scmp.lt.s32.totalorder %s10, 3
    %p182 = pnand %p180, %p181
    %p183 = pneg %p182
    // Predicated region
    $region33: #{dgmn2_patch_embed_forward.10} parent=5 // pred_check
      _
    $region34: #{dgmn2_patch_embed_forward.10} parent=5 // pred_check_branch
      %185 = sbr.rel (%p182) target = $region36
    $region35: #{dgmn2_patch_embed_forward.10} parent=5 // pred_region
      %s186 = ssub.s32 %s10, 1
      %p187 = scmp.lt.s32.totalorder %s19, 1
      %s188 = scalar_select %p187, %s19, 1
      %p189 = scmp.lt.s32.totalorder %s20, 0
      %s190 = scalar_select %p189, %s20, 0
      %s191 = smul.addr %s188, 36
      %s192 = sadd.s32 %s190, %s191
      %s193 = smul.addr %s192, 4
      %s194 = scalar_lea.vmem %s0, %s193
      %p195 = pneg %p50
      %p196 = pneg %p47
      %p197 = pneg %p71
      %p198 = pneg %p68
      %p199 = pneg %p92
      %p200 = pneg %p89
      %p201 = pneg %p113
      %p202 = pneg %p110
      %p203 = pneg %p141
      %p204 = pneg %p138
      %p205 = scmp.lt.s32.totalorder %s19, 1
      %s206 = scalar_select %p205, %s19, 1
      %p207 = scmp.lt.s32.totalorder %s20, 0
      %s208 = scalar_select %p207, %s20, 0
      %s209 = smul.addr %s206, 8
      %s210 = sadd.s32 %s208, %s209
      %s211 = smul.addr %s210, 8
      %s212 = scalar_lea.vmem %s4, %s211
      %p213 = scmp.lt.s32.totalorder %s19, 1
      %s214 = scalar_select %p213, %s19, 1
      %p215 = scmp.lt.s32.totalorder %s20, 0
      %s216 = scalar_select %p215, %s20, 0
      %s217 = smul.addr %s214, 36
      %s218 = sadd.s32 %s216, %s217
      %s219 = smul.addr %s218, 4
      %s220 = scalar_lea.vmem %s0, %s219
      %p221 = scmp.lt.s32.totalorder %s19, 1
      %s222 = scalar_select %p221, %s19, 1
      %p223 = scmp.lt.s32.totalorder %s20, 0
      %s224 = scalar_select %p223, %s20, 0
      %s225 = smul.addr %s222, 8
      %s226 = sadd.s32 %s224, %s225
      %s227 = smul.addr %s226, 8
      %s228 = scalar_lea.vmem %s4, %s227
      %v230 = vld [vmem:[%s1] sm:$0xff]
      %v231 = vld [vmem:[%s1 + $0x8] sm:$0xf]
      %v232 = vld [vmem:[%s1 + $0xc] sm:$0xff]
      %v233 = vld [vmem:[%s1 + $0x14] sm:$0xf]
      %v234 = vld [vmem:[%s1 + $0x18] sm:$0xff]
      %v235 = vld [vmem:[%s1 + $0x20] sm:$0xf]
      %v236 = vld [vmem:[%s1 + $0x24] sm:$0xff]
      %v237 = vld [vmem:[%s1 + $0x2c] sm:$0xf]
      %v238 = vld [vmem:[%s1 + $0x30] sm:$0xff]
      %v239 = vld [vmem:[%s1 + $0x38] sm:$0xf]
      %v240 = vld [vmem:[%s1 + $0x3c] sm:$0xff]
      %v241 = vld [vmem:[%s1 + $0x44] sm:$0xf]
      %v242 = vld [vmem:[%s1 + $0x48] sm:$0xff]
      %v243 = vld [vmem:[%s1 + $0x50] sm:$0xf]
      %v244 = vld [vmem:[%s1 + $0x54] sm:$0xff]
      %v245 = vld [vmem:[%s1 + $0x5c] sm:$0xf]
      %v246 = vld [vmem:[%s220] sm:$0xf]
      %v247 = vld [vmem:[%s220 + $0x4] sm:$0xf]
      %v248 = vld [vmem:[%s220 + $0x8] sm:$0xf]
      %v249 = vld [vmem:[%s220 + $0xc] sm:$0xf]
      %v250 = vld [vmem:[%s220 + $0x10] sm:$0xf]
      %v251 = vld [vmem:[%s220 + $0x14] sm:$0xf]
      %v252 = vld [vmem:[%s220 + $0x18] sm:$0xf]
      %v253 = vld [vmem:[%s220 + $0x1c] sm:$0xf]
      %v254 = vld [vmem:[%s220 + $0x20] sm:$0xf]
      %v255 = vld [vmem:[%s220 + $0x24] sm:$0xf]
      %v256 = vld [vmem:[%s220 + $0x28] sm:$0xf]
      %v257 = vld [vmem:[%s220 + $0x2c] sm:$0xf]
      %v258 = vld [vmem:[%s220 + $0x30] sm:$0xf]
      %v259 = vld [vmem:[%s220 + $0x34] sm:$0xf]
      %v260 = vld [vmem:[%s220 + $0x38] sm:$0xf]
      %v261 = vld [vmem:[%s220 + $0x3c] sm:$0xf]
      %v262 = vld [vmem:[%s220 + $0x40] sm:$0xf]
      %v263 = vld [vmem:[%s220 + $0x44] sm:$0xf]
      %v264 = vld [vmem:[%s220 + $0x48] sm:$0xf]
      %v265 = vld [vmem:[%s220 + $0x4c] sm:$0xf]
      %v266 = vld [vmem:[%s220 + $0x50] sm:$0xf]
      %v267 = vld [vmem:[%s220 + $0x54] sm:$0xf]
      %v268 = vld [vmem:[%s220 + $0x58] sm:$0xf]
      %v269 = vld [vmem:[%s220 + $0x5c] sm:$0xf]
      %v270 = vld [vmem:[%s220 + $0x60] sm:$0xf]
      %v271 = vld [vmem:[%s220 + $0x64] sm:$0xf]
      %v272 = vld [vmem:[%s220 + $0x68] sm:$0xf]
      %v273 = vld [vmem:[%s220 + $0x6c] sm:$0xf]
      %v274 = vld [vmem:[%s220 + $0x70] sm:$0xf]
      %v275 = vld [vmem:[%s220 + $0x74] sm:$0xf]
      %v276 = vld [vmem:[%s220 + $0x78] sm:$0xf]
      %v277 = vld [vmem:[%s220 + $0x7c] sm:$0xf]
      %v278 = vld [vmem:[%s220 + $0x80] sm:$0xf]
      %v279 = vld [vmem:[%s220 + $0x84] sm:$0xf]
      %v280 = vld [vmem:[%s220 + $0x88] sm:$0xf]
      %v281 = vld [vmem:[%s220 + $0x8c] sm:$0xf]
      %v298 = vunpack.c.l.b16 %v230
      %v299 = vunpack.c.h.b16 %v230
      %v300 = vunpack.c.l.b16 %v231
      %v301 = vunpack.c.l.b16 %v232
      %v302 = vunpack.c.h.b16 %v232
      %v303 = vunpack.c.l.b16 %v233
      %v304 = vunpack.c.l.b16 %v234
      %v305 = vunpack.c.h.b16 %v234
      %v306 = vunpack.c.l.b16 %v235
      %v307 = vunpack.c.l.b16 %v236
      %v308 = vunpack.c.h.b16 %v236
      %v309 = vunpack.c.l.b16 %v237
      %v310 = vunpack.c.l.b16 %v238
      %v311 = vunpack.c.h.b16 %v238
      %v312 = vunpack.c.l.b16 %v239
      %v313 = vunpack.c.l.b16 %v240
      %v314 = vunpack.c.h.b16 %v240
      %v315 = vunpack.c.l.b16 %v241
      %v316 = vunpack.c.l.b16 %v242
      %v317 = vunpack.c.h.b16 %v242
      %v318 = vunpack.c.l.b16 %v243
      %v319 = vunpack.c.l.b16 %v244
      %v320 = vunpack.c.h.b16 %v244
      %v321 = vunpack.c.l.b16 %v245
      %v322 = vpack.c.b16 %v301, %v298
      %v323 = vpack.c.b16 %v302, %v299
      %v324 = vpack.c.b16 %v303, %v300
      %v325 = vpack.c.b16 %v307, %v304
      %v326 = vpack.c.b16 %v308, %v305
      %v327 = vpack.c.b16 %v309, %v306
      %v328 = vpack.c.b16 %v313, %v310
      %v329 = vpack.c.b16 %v314, %v311
      %v330 = vpack.c.b16 %v315, %v312
      %v331 = vpack.c.b16 %v319, %v316
      %v332 = vpack.c.b16 %v320, %v317
      %v333 = vpack.c.b16 %v321, %v318
      %v378 = vunpack.c.l.b16 %v246
      %v379 = vunpack.c.l.b16 %v247
      %v380 = vunpack.c.l.b16 %v248
      %v381 = vunpack.c.l.b16 %v249
      %v382 = vunpack.c.l.b16 %v250
      %v383 = vunpack.c.l.b16 %v251
      %v384 = vunpack.c.l.b16 %v252
      %v385 = vunpack.c.l.b16 %v253
      %v386 = vunpack.c.l.b16 %v254
      %v387 = vunpack.c.l.b16 %v255
      %v388 = vunpack.c.l.b16 %v256
      %v389 = vunpack.c.l.b16 %v257
      %v390 = vunpack.c.l.b16 %v258
      %v391 = vunpack.c.l.b16 %v259
      %v392 = vunpack.c.l.b16 %v260
      %v393 = vunpack.c.l.b16 %v261
      %v394 = vunpack.c.l.b16 %v262
      %v395 = vunpack.c.l.b16 %v263
      %v396 = vunpack.c.l.b16 %v264
      %v397 = vunpack.c.l.b16 %v265
      %v398 = vunpack.c.l.b16 %v266
      %v399 = vunpack.c.l.b16 %v267
      %v400 = vunpack.c.l.b16 %v268
      %v401 = vunpack.c.l.b16 %v269
      %v402 = vunpack.c.l.b16 %v270
      %v403 = vunpack.c.l.b16 %v271
      %v404 = vunpack.c.l.b16 %v272
      %v405 = vunpack.c.l.b16 %v273
      %v406 = vunpack.c.l.b16 %v274
      %v407 = vunpack.c.l.b16 %v275
      %v408 = vunpack.c.l.b16 %v276
      %v409 = vunpack.c.l.b16 %v277
      %v410 = vunpack.c.l.b16 %v278
      %v411 = vunpack.c.l.b16 %v279
      %v412 = vunpack.c.l.b16 %v280
      %v413 = vunpack.c.l.b16 %v281
      %v414 = vpack.c.b16 %v379, %v378
      %v415 = vpack.c.b16 %v381, %v380
      %v416 = vpack.c.b16 %v383, %v382
      %v417 = vpack.c.b16 %v385, %v384
      %v418 = vpack.c.b16 %v387, %v386
      %v419 = vpack.c.b16 %v389, %v388
      %v420 = vpack.c.b16 %v391, %v390
      %v421 = vpack.c.b16 %v393, %v392
      %v422 = vpack.c.b16 %v395, %v394
      %v423 = vpack.c.b16 %v397, %v396
      %v424 = vpack.c.b16 %v399, %v398
      %v425 = vpack.c.b16 %v401, %v400
      %v426 = vpack.c.b16 %v403, %v402
      %v427 = vpack.c.b16 %v405, %v404
      %v428 = vpack.c.b16 %v407, %v406
      %v429 = vpack.c.b16 %v409, %v408
      %v430 = vpack.c.b16 %v411, %v410
      %v431 = vpack.c.b16 %v413, %v412
      %vm450 = vcmask 261120
      %v452 = vsel %vm450, %v324, 0
      %v455 = vsel %vm450, %v327, 0
      %v458 = vsel %vm450, %v330, 0
      %v461 = vsel %vm450, %v333, 0
      %463 = vmatprep.subr.bf16.mxu0 0
      %464 = vmatpush1.bf16.msra.mxu0 %v421
      %465 = vmatprep.subr.bf16.mxu0 0
      %466 = vmatpush1.bf16.msra.mxu0 %v420
      %467 = vmatprep.subr.bf16.mxu0 0
      %468 = vmatpush1.bf16.msra.mxu0 %v419
      %469 = vmatprep.subr.bf16.mxu0 0
      %470 = vmatpush1.bf16.msra.mxu0 %v418
      %471 = vmatprep.subr.bf16.mxu0 0
      %472 = vmatpush1.bf16.msra.mxu0 %v417
      %473 = vmatprep.subr.bf16.mxu0 0
      %474 = vmatpush1.bf16.msra.mxu0 %v416
      %475 = vmatprep.subr.bf16.mxu0 0
      %476 = vmatpush1.bf16.msra.mxu0 %v415
      %477 = vmatprep.subr.bf16.mxu0 0
      %478 = vmatpush1.bf16.msra.mxu0 %v414
      %479 = vmatprep.subr.bf16.mxu0 0
      %480 = vmatpush2.bf16.msra.mxu0 %v429
      %481 = vmatprep.subr.bf16.mxu0 0
      %482 = vmatpush2.bf16.msra.mxu0 %v428
      %483 = vmatprep.subr.bf16.mxu0 0
      %484 = vmatpush2.bf16.msra.mxu0 %v427
      %485 = vmatprep.subr.bf16.mxu0 0
      %486 = vmatpush2.bf16.msra.mxu0 %v426
      %487 = vmatprep.subr.bf16.mxu0 0
      %488 = vmatpush2.bf16.msra.mxu0 %v425
      %489 = vmatprep.subr.bf16.mxu0 0
      %490 = vmatpush2.bf16.msra.mxu0 %v424
      %491 = vmatprep.subr.bf16.mxu0 0
      %492 = vmatpush2.bf16.msra.mxu0 %v423
      %493 = vmatprep.subr.bf16.mxu0 0
      %494 = vmatpush2.bf16.msra.mxu0 %v422
      %495 = vmatprep.mubr.bf16.mxu0 %v323
      %496 = vmatmul.mubr.bf16.gmra.mxu0 %v322
      %v497 = vpop.f32.mrf.mxu0
      %v498 = vadd.f32 0.0, %v497
      %v499 = vpop.f32.mrf.mxu0
      %v500 = vpop.f32.mrf.mxu0
      %v501 = vadd.f32 0.0, %v500
      %v502 = vpop.f32.mrf.mxu0
      %503 = vmatprep.mubr.bf16.mxu0 %v326
      %504 = vmatmul.mubr.bf16.gmra.mxu0 %v325
      %v505 = vpop.f32.mrf.mxu0
      %v506 = vadd.f32 0.0, %v505
      %v507 = vpop.f32.mrf.mxu0
      %v508 = vpop.f32.mrf.mxu0
      %v509 = vadd.f32 0.0, %v508
      %v510 = vpop.f32.mrf.mxu0
      %511 = vmatprep.mubr.bf16.mxu0 %v329
      %512 = vmatmul.mubr.bf16.gmra.mxu0 %v328
      %v513 = vpop.f32.mrf.mxu0
      %v514 = vadd.f32 0.0, %v513
      %v515 = vpop.f32.mrf.mxu0
      %v516 = vpop.f32.mrf.mxu0
      %v517 = vadd.f32 0.0, %v516
      %v518 = vpop.f32.mrf.mxu0
      %519 = vmatprep.mubr.bf16.mxu0 %v332
      %520 = vmatmul.mubr.bf16.gmra.mxu0 %v331
      %v521 = vpop.f32.mrf.mxu0
      %v522 = vadd.f32 0.0, %v521
      %v523 = vpop.f32.mrf.mxu0
      %v524 = vpop.f32.mrf.mxu0
      %v525 = vadd.f32 0.0, %v524
      %v526 = vpop.f32.mrf.mxu0
      %527 = vdwg.mxu0
      %528 = vmatprep.subr.bf16.mxu0 0
      %529 = vmatpush1.bf16.msra.mxu0 0
      %530 = vmatprep.subr.bf16.mxu0 0
      %531 = vmatpush1.bf16.msra.mxu0 0
      %532 = vmatprep.subr.bf16.mxu0 0
      %533 = vmatpush1.bf16.msra.mxu0 0
      %534 = vmatprep.subr.bf16.mxu0 0
      %535 = vmatpush1.bf16.msra.mxu0 0
      %536 = vmatprep.subr.bf16.mxu0 0
      %537 = vmatpush1.bf16.msra.mxu0 0
      %538 = vmatprep.subr.bf16.mxu0 0
      %539 = vmatpush1.bf16.msra.mxu0 0
      %540 = vmatprep.subr.bf16.mxu0 0
      %541 = vmatpush1.bf16.msra.mxu0 %v431
      %542 = vmatprep.subr.bf16.mxu0 0
      %543 = vmatpush1.bf16.msra.mxu0 %v430
      %544 = vmatprep.subr.bf16.mxu0 0
      %545 = vmatpush2.bf16.msra.mxu0 0
      %546 = vmatprep.subr.bf16.mxu0 0
      %547 = vmatpush2.bf16.msra.mxu0 0
      %548 = vmatprep.subr.bf16.mxu0 0
      %549 = vmatpush2.bf16.msra.mxu0 0
      %550 = vmatprep.subr.bf16.mxu0 0
      %551 = vmatpush2.bf16.msra.mxu0 0
      %552 = vmatprep.subr.bf16.mxu0 0
      %553 = vmatpush2.bf16.msra.mxu0 0
      %554 = vmatprep.subr.bf16.mxu0 0
      %555 = vmatpush2.bf16.msra.mxu0 0
      %556 = vmatprep.subr.bf16.mxu0 0
      %557 = vmatpush2.bf16.msra.mxu0 0
      %558 = vmatprep.subr.bf16.mxu0 0
      %559 = vmatpush2.bf16.msra.mxu0 0
      %560 = vmatprep.mubr.bf16.mxu0 0
      %561 = vmatmul.mubr.bf16.gmra.mxu0 %v452
      %v562 = vpop.f32.mrf.mxu0
      %v563 = vadd.f32 %v498, %v562
      %v564 = vpop.f32.mrf.mxu0
      %v565 = vpop.f32.mrf.mxu0
      %v566 = vadd.f32 %v501, %v565
      %v567 = vpop.f32.mrf.mxu0
      %568 = vmatprep.mubr.bf16.mxu0 0
      %569 = vmatmul.mubr.bf16.gmra.mxu0 %v455
      %v570 = vpop.f32.mrf.mxu0
      %v571 = vadd.f32 %v506, %v570
      %v572 = vpop.f32.mrf.mxu0
      %v573 = vpop.f32.mrf.mxu0
      %v574 = vadd.f32 %v509, %v573
      %v575 = vpop.f32.mrf.mxu0
      %576 = vmatprep.mubr.bf16.mxu0 0
      %577 = vmatmul.mubr.bf16.gmra.mxu0 %v458
      %v578 = vpop.f32.mrf.mxu0
      %v579 = vadd.f32 %v514, %v578
      %v580 = vpop.f32.mrf.mxu0
      %v581 = vpop.f32.mrf.mxu0
      %v582 = vadd.f32 %v517, %v581
      %v583 = vpop.f32.mrf.mxu0
      %584 = vmatprep.mubr.bf16.mxu0 0
      %585 = vmatmul.mubr.bf16.gmra.mxu0 %v461
      %v586 = vpop.f32.mrf.mxu0
      %v587 = vadd.f32 %v522, %v586
      %v588 = vpop.f32.mrf.mxu0
      %v589 = vpop.f32.mrf.mxu0
      %v590 = vadd.f32 %v525, %v589
      %v591 = vpop.f32.mrf.mxu0
      %592 = vdwg.mxu0
      %v593 = vld [vmem:[%s2] sm:$0xff]
      %v594 = vld [vmem:[%s2 + $0x8] sm:$0xff]
      %v595 = vld [vmem:[%s2 + $0x10] sm:$0xff]
      %v596 = vld [vmem:[%s2 + $0x18] sm:$0xff]
      %v597 = vld [vmem:[%s2 + $0x20] sm:$0xff]
      %v598 = vld [vmem:[%s2 + $0x28] sm:$0xff]
      %v599 = vld [vmem:[%s2 + $0x30] sm:$0xff]
      %v600 = vld [vmem:[%s2 + $0x38] sm:$0xff]
      %602 = vset.pattern.permute.xlu0 0
      %603 = vperm.xlu0 %602, %v593
      %v604 = vpop.permute.xlu0 %603
      %607 = vset.pattern.permute.xlu0 0
      %608 = vperm.xlu0 %607, %v594
      %v609 = vpop.permute.xlu0 %608
      %612 = vset.pattern.permute.xlu0 0
      %613 = vperm.xlu0 %612, %v595
      %v614 = vpop.permute.xlu0 %613
      %617 = vset.pattern.permute.xlu0 0
      %618 = vperm.xlu0 %617, %v596
      %v619 = vpop.permute.xlu0 %618
      %622 = vset.pattern.permute.xlu0 0
      %623 = vperm.xlu0 %622, %v597
      %v624 = vpop.permute.xlu0 %623
      %627 = vset.pattern.permute.xlu0 0
      %628 = vperm.xlu0 %627, %v598
      %v629 = vpop.permute.xlu0 %628
      %632 = vset.pattern.permute.xlu0 0
      %633 = vperm.xlu0 %632, %v599
      %v634 = vpop.permute.xlu0 %633
      %637 = vset.pattern.permute.xlu0 0
      %638 = vperm.xlu0 %637, %v600
      %v639 = vpop.permute.xlu0 %638
      %v641 = vmul.f32 %v563, %v604
      %v642 = vmul.f32 %v566, %v609
      %v643 = vmul.f32 %v571, %v614
      %v644 = vmul.f32 %v574, %v619
      %v645 = vmul.f32 %v579, %v624
      %v646 = vmul.f32 %v582, %v629
      %v647 = vmul.f32 %v587, %v634
      %v648 = vmul.f32 %v590, %v639
      %v649 = vld [vmem:[%s3] sm:$0xff]
      %v650 = vld [vmem:[%s3 + $0x8] sm:$0xff]
      %v651 = vld [vmem:[%s3 + $0x10] sm:$0xff]
      %v652 = vld [vmem:[%s3 + $0x18] sm:$0xff]
      %v653 = vld [vmem:[%s3 + $0x20] sm:$0xff]
      %v654 = vld [vmem:[%s3 + $0x28] sm:$0xff]
      %v655 = vld [vmem:[%s3 + $0x30] sm:$0xff]
      %v656 = vld [vmem:[%s3 + $0x38] sm:$0xff]
      %658 = vset.pattern.permute.xlu0 0
      %659 = vperm.xlu0 %658, %v649
      %v660 = vpop.permute.xlu0 %659
      %663 = vset.pattern.permute.xlu0 0
      %664 = vperm.xlu0 %663, %v650
      %v665 = vpop.permute.xlu0 %664
      %668 = vset.pattern.permute.xlu0 0
      %669 = vperm.xlu0 %668, %v651
      %v670 = vpop.permute.xlu0 %669
      %673 = vset.pattern.permute.xlu0 0
      %674 = vperm.xlu0 %673, %v652
      %v675 = vpop.permute.xlu0 %674
      %678 = vset.pattern.permute.xlu0 0
      %679 = vperm.xlu0 %678, %v653
      %v680 = vpop.permute.xlu0 %679
      %683 = vset.pattern.permute.xlu0 0
      %684 = vperm.xlu0 %683, %v654
      %v685 = vpop.permute.xlu0 %684
      %688 = vset.pattern.permute.xlu0 0
      %689 = vperm.xlu0 %688, %v655
      %v690 = vpop.permute.xlu0 %689
      %693 = vset.pattern.permute.xlu0 0
      %694 = vperm.xlu0 %693, %v656
      %v695 = vpop.permute.xlu0 %694
      %v697 = vadd.f32 %v641, %v660
      %v698 = vadd.f32 %v642, %v665
      %v699 = vadd.f32 %v643, %v670
      %v700 = vadd.f32 %v644, %v675
      %v701 = vadd.f32 %v645, %v680
      %v702 = vadd.f32 %v646, %v685
      %v703 = vadd.f32 %v647, %v690
      %v704 = vadd.f32 %v648, %v695
      %v705 = vmax.f32 %v697, 0.0
      %v706 = vmax.f32 %v698, 0.0
      %v707 = vmax.f32 %v699, 0.0
      %v708 = vmax.f32 %v700, 0.0
      %v709 = vmax.f32 %v701, 0.0
      %v710 = vmax.f32 %v702, 0.0
      %v711 = vmax.f32 %v703, 0.0
      %v712 = vmax.f32 %v704, 0.0
      %vm713 = vcmask 130048
      %714 = vst.msk [vmem:[%s228] sm:$0xff] %vm713, %v705
      %715 = vst.msk [vmem:[%s228 + $0x8] sm:$0xff] %vm713, %v706
      %716 = vst.msk [vmem:[%s228 + $0x10] sm:$0xff] %vm713, %v707
      %717 = vst.msk [vmem:[%s228 + $0x18] sm:$0xff] %vm713, %v708
      %718 = vst.msk [vmem:[%s228 + $0x20] sm:$0xff] %vm713, %v709
      %719 = vst.msk [vmem:[%s228 + $0x28] sm:$0xff] %vm713, %v710
      %720 = vst.msk [vmem:[%s228 + $0x30] sm:$0xff] %vm713, %v711
      %721 = vst.msk [vmem:[%s228 + $0x38] sm:$0xff] %vm713, %v712
      %p722 = scmp.lt.s32.totalorder %s19, 1
      %s723 = scalar_select %p722, %s19, 1
      %p724 = scmp.lt.s32.totalorder %s20, 0
      %s725 = scalar_select %p724, %s20, 0
      %s726 = smul.addr %s723, 8
      %s727 = sadd.s32 %s725, %s726
      %s728 = smul.addr %s727, 8
      %s729 = scalar_lea.vmem %s4, %s728
      // Predicated region
      $region37: #{dgmn2_patch_embed_forward.10} parent=35 // pred_check
        %p730 = pneg %p138
      $region38: #{dgmn2_patch_embed_forward.10} parent=35 // pred_check_branch
        %732 = sbr.rel (%p730) target = $region40
      $region39: #{dgmn2_patch_embed_forward.10} parent=35 // pred_region
        _
      $region40: #{dgmn2_patch_embed_forward.10} parent=35 // pred_fallthru
        _
    $region36: #{dgmn2_patch_embed_forward.10} parent=5 // pred_fallthru
      _
    %p733 = scmp.le.s32.totalorder 2, %s10
    // Predicated region
    $region41: #{dgmn2_patch_embed_forward.10} parent=5 // pred_check
      %p734 = pneg %p733
    $region42: #{dgmn2_patch_embed_forward.10} parent=5 // pred_check_branch
      %736 = sbr.rel (%p734) target = $region44
    $region43: #{dgmn2_patch_embed_forward.10} parent=5 // pred_region
      %s737 = ssub.s32 %s10, 2
      // Predicated region
      $region45: #{dgmn2_patch_embed_forward.10} parent=43 // pred_check
        %p738 = pneg %p144
      $region46: #{dgmn2_patch_embed_forward.10} parent=43 // pred_check_branch
        %740 = sbr.rel (%p738) target = $region48
      $region47: #{dgmn2_patch_embed_forward.10} parent=43 // pred_region
        %p741 = scmp.lt.s32.totalorder %s21, 1
        %s742 = scalar_select %p741, %s21, 1
        %p743 = scmp.lt.s32.totalorder %s22, 0
        %s744 = scalar_select %p743, %s22, 0
        %s745 = smul.addr %s742, 8
        %s746 = sadd.s32 %s744, %s745
        %s747 = smul.addr %s746, 8
        %s748 = scalar_lea.vmem %s4, %s747
      $region48: #{dgmn2_patch_embed_forward.10} parent=43 // pred_fallthru
        _
    $region44: #{dgmn2_patch_embed_forward.10} parent=5 // pred_fallthru
      _
  $region6: #{dgmn2_patch_embed_forward.10} parent=0 // loop_footer
    %s14 = sadd.s32 1, %s10
  $region7: #{dgmn2_patch_embed_forward.10} parent=0 // loop_footer_branch
    %9 = sbr.rel target = $region3
  $region8: #{dgmn2_patch_embed_forward.10} parent=0 // loop_exit
    _

// kernel: dgmn2_patch_embed_forward.11
$region0: #{dgmn2_patch_embed_forward.11}
  #allocation0 [shape = 'u32[]', space=smem, size = 0x4, offset = 0x4, fixed_abs, tag = 'smem constant byte address 0x4 - core index']
  #allocation1 [shape = 'u32[144,128]{1,0:T(1,128)}', space=vmem, size = 0x12000, scoped, tag = 'internal scratch']
  %s0 = inlined_call_operand.vmem [shape: bf16[2,576,4], index: 0, kind: input, shape index: {}]
  %s1 = inlined_call_operand.vmem [shape: bf16[128,576], index: 1, kind: input, shape index: {}]
  %s2 = inlined_call_operand.vmem [shape: f32[128,1], index: 2, kind: input, shape index: {}]
  %s3 = inlined_call_operand.vmem [shape: f32[128,1], index: 3, kind: input, shape index: {}]
  %s4 = inlined_call_operand.vmem [shape: f32[2,128,4], index: 4, kind: output, shape index: {}]
  %s5 = sld [smem:[#allocation0]]
  $region49: #{dgmn2_patch_embed_forward.11} parent=0
    _
  %s7 = ssub.s32 1, %s5
  %s8 = scalar_select 0, %s7, %s5
  loop: start=0, step=1, limit=4
  $region2: #{dgmn2_patch_embed_forward.11} parent=0 // loop_pre_header
    _
  $region3: #{dgmn2_patch_embed_forward.11} parent=0 // loop_header
    %s10 = sphi 0, %s14
    %p11 = scmp.ge.s32.totalorder %s10, 4
    %s17 = sphi 0, %s29
    %s18 = sphi 0, %s25
    %s19 = sphi 0, %s17
    %s20 = sphi 0, %s18
    %s21 = sphi 0, %s19
    %s22 = sphi 0, %s20
    %s34 = sphi 0, %s36
    %s37 = sphi 0, %s34
    %s38 = sphi 0, %s37
    %s54 = sphi 0, %s38
    %s58 = sphi 0, %s58
    %s60 = sphi 0, %s58
    %s61 = sphi 0, %s60
    %s75 = sphi 0, %s61
    %s79 = sphi 0, %s79
    %s81 = sphi 0, %s79
    %s82 = sphi 0, %s81
    %s96 = sphi 0, %s82
    %s100 = sphi 0, %s100
    %s102 = sphi 0, %s100
    %s103 = sphi 0, %s102
    %s117 = sphi 0, %s103
    %s125 = sphi 0, %s127
    %s128 = sphi 0, %s125
    %s129 = sphi 0, %s128
    %s145 = sphi 0, %s129
  $region4: #{dgmn2_patch_embed_forward.11} parent=0 // loop_header_branch
    %13 = sbr.rel (%p11) target = $region8
  $region5: #{dgmn2_patch_embed_forward.11} parent=0 // loop_body
    %s15 = ssub.s32 %s10, 1
    %s16 = ssub.s32 %s10, 2
    %s23 = sadd.s32 1, %s18
    %p24 = scmp.ge.s32.totalorder %s23, 1
    %s25 = scalar_select %p24, 0, %s23
    %s26 = sadd.s32 1, %s17
    %s27 = scalar_select %p24, %s26, %s17
    %p28 = scmp.ge.s32.totalorder %s27, 2
    %s29 = scalar_select %p28, 0, %s27
    %s30 = ssub.s32 %s17, %s29
    %s31 = ssub.s32 %s18, %s25
    %s32 = sor.u32 %s30, %s31
    %p33 = scmp.eq.s32.totalorder %s32, 0
    %s35 = sadd.s32 %s34, 1
    %s36 = scalar_select %p33, %s34, %s35
    %p39 = pneg %p33
    %p40 = scmp.eq.s32.totalorder %s10, 1
    %p41 = por %p39, %p40
    %p42 = scmp.ne.s32.totalorder %s34, %s37
    %p43 = scmp.eq.s32.totalorder %s10, 0
    %p44 = por %p42, %p43
    %p45 = scmp.ne.s32.totalorder %s34, %s37
    %p46 = scmp.eq.s32.totalorder %s15, 1
    %p47 = por %p45, %p46
    %p48 = scmp.ne.s32.totalorder %s37, %s38
    %p49 = scmp.eq.s32.totalorder %s15, 0
    %p50 = por %p48, %p49
    %p51 = scmp.ne.s32.totalorder %s37, %s38
    %p52 = scmp.eq.s32.totalorder %s16, 1
    %p53 = por %p51, %p52
    %p55 = scmp.ne.s32.totalorder %s38, %s54
    %p56 = scmp.eq.s32.totalorder %s16, 0
    %p57 = por %p55, %p56
    %s59 = sadd.s32 %s58, 1
    %p62 = scmp.eq.s32.totalorder %s10, 1
    %p63 = scmp.ne.s32.totalorder %s58, %s60
    %p64 = scmp.eq.s32.totalorder %s10, 0
    %p65 = por %p63, %p64
    %p66 = scmp.ne.s32.totalorder %s58, %s60
    %p67 = scmp.eq.s32.totalorder %s15, 1
    %p68 = por %p66, %p67
    %p69 = scmp.ne.s32.totalorder %s60, %s61
    %p70 = scmp.eq.s32.totalorder %s15, 0
    %p71 = por %p69, %p70
    %p72 = scmp.ne.s32.totalorder %s60, %s61
    %p73 = scmp.eq.s32.totalorder %s16, 1
    %p74 = por %p72, %p73
    %p76 = scmp.ne.s32.totalorder %s61, %s75
    %p77 = scmp.eq.s32.totalorder %s16, 0
    %p78 = por %p76, %p77
    %s80 = sadd.s32 %s79, 1
    %p83 = scmp.eq.s32.totalorder %s10, 1
    %p84 = scmp.ne.s32.totalorder %s79, %s81
    %p85 = scmp.eq.s32.totalorder %s10, 0
    %p86 = por %p84, %p85
    %p87 = scmp.ne.s32.totalorder %s79, %s81
    %p88 = scmp.eq.s32.totalorder %s15, 1
    %p89 = por %p87, %p88
    %p90 = scmp.ne.s32.totalorder %s81, %s82
    %p91 = scmp.eq.s32.totalorder %s15, 0
    %p92 = por %p90, %p91
    %p93 = scmp.ne.s32.totalorder %s81, %s82
    %p94 = scmp.eq.s32.totalorder %s16, 1
    %p95 = por %p93, %p94
    %p97 = scmp.ne.s32.totalorder %s82, %s96
    %p98 = scmp.eq.s32.totalorder %s16, 0
    %p99 = por %p97, %p98
    %s101 = sadd.s32 %s100, 1
    %p104 = scmp.eq.s32.totalorder %s10, 1
    %p105 = scmp.ne.s32.totalorder %s100, %s102
    %p106 = scmp.eq.s32.totalorder %s10, 0
    %p107 = por %p105, %p106
    %p108 = scmp.ne.s32.totalorder %s100, %s102
    %p109 = scmp.eq.s32.totalorder %s15, 1
    %p110 = por %p108, %p109
    %p111 = scmp.ne.s32.totalorder %s102, %s103
    %p112 = scmp.eq.s32.totalorder %s15, 0
    %p113 = por %p111, %p112
    %p114 = scmp.ne.s32.totalorder %s102, %s103
    %p115 = scmp.eq.s32.totalorder %s16, 1
    %p116 = por %p114, %p115
    %p118 = scmp.ne.s32.totalorder %s103, %s117
    %p119 = scmp.eq.s32.totalorder %s16, 0
    %p120 = por %p118, %p119
    %s121 = ssub.s32 %s17, %s29
    %s122 = ssub.s32 %s18, %s25
    %s123 = sor.u32 %s121, %s122
    %p124 = scmp.eq.s32.totalorder %s123, 0
    %s126 = sadd.s32 %s125, 1
    %s127 = scalar_select %p124, %s125, %s126
    %p130 = pneg %p124
    %p131 = scmp.eq.s32.totalorder %s10, 1
    %p132 = por %p130, %p131
    %p133 = scmp.ne.s32.totalorder %s125, %s128
    %p134 = scmp.eq.s32.totalorder %s10, 0
    %p135 = por %p133, %p134
    %p136 = scmp.ne.s32.totalorder %s125, %s128
    %p137 = scmp.eq.s32.totalorder %s15, 1
    %p138 = por %p136, %p137
    %p139 = scmp.ne.s32.totalorder %s128, %s129
    %p140 = scmp.eq.s32.totalorder %s15, 0
    %p141 = por %p139, %p140
    %p142 = scmp.ne.s32.totalorder %s128, %s129
    %p143 = scmp.eq.s32.totalorder %s16, 1
    %p144 = por %p142, %p143
    %p146 = scmp.ne.s32.totalorder %s129, %s145
    %p147 = scmp.eq.s32.totalorder %s16, 0
    %p148 = por %p146, %p147
    %p149 = scmp.le.s32.totalorder 1, %s10
    %p150 = scmp.lt.s32.totalorder %s10, 3
    %p151 = pnand %p149, %p150
    %p152 = pneg %p151
    // Predicated region
    $region9: #{dgmn2_patch_embed_forward.11} parent=5 // pred_check
      _
    $region10: #{dgmn2_patch_embed_forward.11} parent=5 // pred_check_branch
      %154 = sbr.rel (%p151) target = $region12
    $region11: #{dgmn2_patch_embed_forward.11} parent=5 // pred_region
      %s155 = ssub.s32 %s10, 1
      // Predicated region
      $region13: #{dgmn2_patch_embed_forward.11} parent=11 // pred_check
        %p156 = pneg %p71
      $region14: #{dgmn2_patch_embed_forward.11} parent=11 // pred_check_branch
        %158 = sbr.rel (%p156) target = $region16
      $region15: #{dgmn2_patch_embed_forward.11} parent=11 // pred_region
        _
      $region16: #{dgmn2_patch_embed_forward.11} parent=11 // pred_fallthru
        _
      // Predicated region
      $region17: #{dgmn2_patch_embed_forward.11} parent=11 // pred_check
        %p159 = pneg %p92
      $region18: #{dgmn2_patch_embed_forward.11} parent=11 // pred_check_branch
        %161 = sbr.rel (%p159) target = $region20
      $region19: #{dgmn2_patch_embed_forward.11} parent=11 // pred_region
        _
      $region20: #{dgmn2_patch_embed_forward.11} parent=11 // pred_fallthru
        _
      // Predicated region
      $region21: #{dgmn2_patch_embed_forward.11} parent=11 // pred_check
        %p162 = pneg %p113
      $region22: #{dgmn2_patch_embed_forward.11} parent=11 // pred_check_branch
        %164 = sbr.rel (%p162) target = $region24
      $region23: #{dgmn2_patch_embed_forward.11} parent=11 // pred_region
        _
      $region24: #{dgmn2_patch_embed_forward.11} parent=11 // pred_fallthru
        _
    $region12: #{dgmn2_patch_embed_forward.11} parent=5 // pred_fallthru
      _
    %p165 = scmp.lt.s32.totalorder %s10, 2
    // Predicated region
    $region25: #{dgmn2_patch_embed_forward.11} parent=5 // pred_check
      %p166 = pneg %p165
    $region26: #{dgmn2_patch_embed_forward.11} parent=5 // pred_check_branch
      %168 = sbr.rel (%p166) target = $region28
    $region27: #{dgmn2_patch_embed_forward.11} parent=5 // pred_region
      // Predicated region
      $region29: #{dgmn2_patch_embed_forward.11} parent=27 // pred_check
        %p169 = pneg %p44
      $region30: #{dgmn2_patch_embed_forward.11} parent=27 // pred_check_branch
        %171 = sbr.rel (%p169) target = $region32
      $region31: #{dgmn2_patch_embed_forward.11} parent=27 // pred_region
        %p172 = scmp.lt.s32.totalorder %s17, 1
        %s173 = scalar_select %p172, %s17, 1
        %p174 = scmp.lt.s32.totalorder %s18, 0
        %s175 = scalar_select %p174, %s18, 0
        %s176 = smul.addr %s173, 72
        %s177 = sadd.s32 %s175, %s176
        %s178 = smul.addr %s177, 4
        %s179 = scalar_lea.vmem %s0, %s178
      $region32: #{dgmn2_patch_embed_forward.11} parent=27 // pred_fallthru
        _
    $region28: #{dgmn2_patch_embed_forward.11} parent=5 // pred_fallthru
      _
    %p180 = scmp.le.s32.totalorder 1, %s10
    %p181 = scmp.lt.s32.totalorder %s10, 3
    %p182 = pnand %p180, %p181
    %p183 = pneg %p182
    // Predicated region
    $region33: #{dgmn2_patch_embed_forward.11} parent=5 // pred_check
      _
    $region34: #{dgmn2_patch_embed_forward.11} parent=5 // pred_check_branch
      %185 = sbr.rel (%p182) target = $region36
    $region35: #{dgmn2_patch_embed_forward.11} parent=5 // pred_region
      %s186 = ssub.s32 %s10, 1
      %p187 = scmp.lt.s32.totalorder %s19, 1
      %s188 = scalar_select %p187, %s19, 1
      %p189 = scmp.lt.s32.totalorder %s20, 0
      %s190 = scalar_select %p189, %s20, 0
      %s191 = smul.addr %s188, 72
      %s192 = sadd.s32 %s190, %s191
      %s193 = smul.addr %s192, 4
      %s194 = scalar_lea.vmem %s0, %s193
      %p195 = pneg %p50
      %p196 = pneg %p47
      %p197 = pneg %p71
      %p198 = pneg %p68
      %p199 = pneg %p92
      %p200 = pneg %p89
      %p201 = pneg %p113
      %p202 = pneg %p110
      %p203 = pneg %p141
      %p204 = pneg %p138
      %p205 = scmp.lt.s32.totalorder %s19, 1
      %s206 = scalar_select %p205, %s19, 1
      %p207 = scmp.lt.s32.totalorder %s20, 0
      %s208 = scalar_select %p207, %s20, 0
      %s209 = smul.addr %s206, 16
      %s210 = sadd.s32 %s208, %s209
      %s211 = smul.addr %s210, 8
      %s212 = scalar_lea.vmem %s4, %s211
      %p213 = scmp.lt.s32.totalorder %s19, 1
      %s214 = scalar_select %p213, %s19, 1
      %p215 = scmp.lt.s32.totalorder %s20, 0
      %s216 = scalar_select %p215, %s20, 0
      %s217 = smul.addr %s214, 72
      %s218 = sadd.s32 %s216, %s217
      %s219 = smul.addr %s218, 4
      %s220 = scalar_lea.vmem %s0, %s219
      %p221 = scmp.lt.s32.totalorder %s19, 1
      %s222 = scalar_select %p221, %s19, 1
      %p223 = scmp.lt.s32.totalorder %s20, 0
      %s224 = scalar_select %p223, %s20, 0
      %s225 = smul.addr %s222, 16
      %s226 = sadd.s32 %s224, %s225
      %s227 = smul.addr %s226, 8
      %s228 = scalar_lea.vmem %s4, %s227
      %v230 = vld [vmem:[%s1] sm:$0xff]
      %v231 = vld [vmem:[%s1 + $0x8] sm:$0xff]
      %v232 = vld [vmem:[%s1 + $0x10] sm:$0xf]
      %v233 = vld [vmem:[%s1 + $0x14] sm:$0xff]
      %v234 = vld [vmem:[%s1 + $0x1c] sm:$0xff]
      %v235 = vld [vmem:[%s1 + $0x24] sm:$0xf]
      %v236 = vld [vmem:[%s1 + $0x28] sm:$0xff]
      %v237 = vld [vmem:[%s1 + $0x30] sm:$0xff]
      %v238 = vld [vmem:[%s1 + $0x38] sm:$0xf]
      %v239 = vld [vmem:[%s1 + $0x3c] sm:$0xff]
      %v240 = vld [vmem:[%s1 + $0x44] sm:$0xff]
      %v241 = vld [vmem:[%s1 + $0x4c] sm:$0xf]
      %v242 = vld [vmem:[%s1 + $0x50] sm:$0xff]
      %v243 = vld [vmem:[%s1 + $0x58] sm:$0xff]
      %v244 = vld [vmem:[%s1 + $0x60] sm:$0xf]
      %v245 = vld [vmem:[%s1 + $0x64] sm:$0xff]
      %v246 = vld [vmem:[%s1 + $0x6c] sm:$0xff]
      %v247 = vld [vmem:[%s1 + $0x74] sm:$0xf]
      %v248 = vld [vmem:[%s1 + $0x78] sm:$0xff]
      %v249 = vld [vmem:[%s1 + $0x80] sm:$0xff]
      %v250 = vld [vmem:[%s1 + $0x88] sm:$0xf]
      %v251 = vld [vmem:[%s1 + $0x8c] sm:$0xff]
      %v252 = vld [vmem:[%s1 + $0x94] sm:$0xff]
      %v253 = vld [vmem:[%s1 + $0x9c] sm:$0xf]
      %v254 = vld [vmem:[%s1 + $0xa0] sm:$0xff]
      %v255 = vld [vmem:[%s1 + $0xa8] sm:$0xff]
      %v256 = vld [vmem:[%s1 + $0xb0] sm:$0xf]
      %v257 = vld [vmem:[%s1 + $0xb4] sm:$0xff]
      %v258 = vld [vmem:[%s1 + $0xbc] sm:$0xff]
      %v259 = vld [vmem:[%s1 + $0xc4] sm:$0xf]
      %v260 = vld [vmem:[%s1 + $0xc8] sm:$0xff]
      %v261 = vld [vmem:[%s1 + $0xd0] sm:$0xff]
      %v262 = vld [vmem:[%s1 + $0xd8] sm:$0xf]
      %v263 = vld [vmem:[%s1 + $0xdc] sm:$0xff]
      %v264 = vld [vmem:[%s1 + $0xe4] sm:$0xff]
      %v265 = vld [vmem:[%s1 + $0xec] sm:$0xf]
      %v266 = vld [vmem:[%s1 + $0xf0] sm:$0xff]
      %v267 = vld [vmem:[%s1 + $0xf8] sm:$0xff]
      %v268 = vld [vmem:[%s1 + $0x100] sm:$0xf]
      %v269 = vld [vmem:[%s1 + $0x104] sm:$0xff]
      %v270 = vld [vmem:[%s1 + $0x10c] sm:$0xff]
      %v271 = vld [vmem:[%s1 + $0x114] sm:$0xf]
      %v272 = vld [vmem:[%s1 + $0x118] sm:$0xff]
      %v273 = vld [vmem:[%s1 + $0x120] sm:$0xff]
      %v274 = vld [vmem:[%s1 + $0x128] sm:$0xf]
      %v275 = vld [vmem:[%s1 + $0x12c] sm:$0xff]
      %v276 = vld [vmem:[%s1 + $0x134] sm:$0xff]
      %v277 = vld [vmem:[%s1 + $0x13c] sm:$0xf]
      %v278 = vld [vmem:[%s220] sm:$0xf]
      %v279 = vld [vmem:[%s220 + $0x4] sm:$0xf]
      %v280 = vld [vmem:[%s220 + $0x8] sm:$0xf]
      %v281 = vld [vmem:[%s220 + $0xc] sm:$0xf]
      %v282 = vld [vmem:[%s220 + $0x10] sm:$0xf]
      %v283 = vld [vmem:[%s220 + $0x14] sm:$0xf]
      %v284 = vld [vmem:[%s220 + $0x18] sm:$0xf]
      %v285 = vld [vmem:[%s220 + $0x1c] sm:$0xf]
      %v286 = vld [vmem:[%s220 + $0x20] sm:$0xf]
      %v287 = vld [vmem:[%s220 + $0x24] sm:$0xf]
      %v288 = vld [vmem:[%s220 + $0x28] sm:$0xf]
      %v289 = vld [vmem:[%s220 + $0x2c] sm:$0xf]
      %v290 = vld [vmem:[%s220 + $0x30] sm:$0xf]
      %v291 = vld [vmem:[%s220 + $0x34] sm:$0xf]
      %v292 = vld [vmem:[%s220 + $0x38] sm:$0xf]
      %v293 = vld [vmem:[%s220 + $0x3c] sm:$0xf]
      %v294 = vld [vmem:[%s220 + $0x40] sm:$0xf]
      %v295 = vld [vmem:[%s220 + $0x44] sm:$0xf]
      %v296 = vld [vmem:[%s220 + $0x48] sm:$0xf]
      %v297 = vld [vmem:[%s220 + $0x4c] sm:$0xf]
      %v298 = vld [vmem:[%s220 + $0x50] sm:$0xf]
      %v299 = vld [vmem:[%s220 + $0x54] sm:$0xf]
      %v300 = vld [vmem:[%s220 + $0x58] sm:$0xf]
      %v301 = vld [vmem:[%s220 + $0x5c] sm:$0xf]
      %v302 = vld [vmem:[%s220 + $0x60] sm:$0xf]
      %v303 = vld [vmem:[%s220 + $0x64] sm:$0xf]
      %v304 = vld [vmem:[%s220 + $0x68] sm:$0xf]
      %v305 = vld [vmem:[%s220 + $0x6c] sm:$0xf]
      %v306 = vld [vmem:[%s220 + $0x70] sm:$0xf]
      %v307 = vld [vmem:[%s220 + $0x74] sm:$0xf]
      %v308 = vld [vmem:[%s220 + $0x78] sm:$0xf]
      %v309 = vld [vmem:[%s220 + $0x7c] sm:$0xf]
      %v310 = vld [vmem:[%s220 + $0x80] sm:$0xf]
      %v311 = vld [vmem:[%s220 + $0x84] sm:$0xf]
      %v312 = vld [vmem:[%s220 + $0x88] sm:$0xf]
      %v313 = vld [vmem:[%s220 + $0x8c] sm:$0xf]
      %v314 = vld [vmem:[%s220 + $0x90] sm:$0xf]
      %v315 = vld [vmem:[%s220 + $0x94] sm:$0xf]
      %v316 = vld [vmem:[%s220 + $0x98] sm:$0xf]
      %v317 = vld [vmem:[%s220 + $0x9c] sm:$0xf]
      %v318 = vld [vmem:[%s220 + $0xa0] sm:$0xf]
      %v319 = vld [vmem:[%s220 + $0xa4] sm:$0xf]
      %v320 = vld [vmem:[%s220 + $0xa8] sm:$0xf]
      %v321 = vld [vmem:[%s220 + $0xac] sm:$0xf]
      %v322 = vld [vmem:[%s220 + $0xb0] sm:$0xf]
      %v323 = vld [vmem:[%s220 + $0xb4] sm:$0xf]
      %v324 = vld [vmem:[%s220 + $0xb8] sm:$0xf]
      %v325 = vld [vmem:[%s220 + $0xbc] sm:$0xf]
      %v326 = vld [vmem:[%s220 + $0xc0] sm:$0xf]
      %v327 = vld [vmem:[%s220 + $0xc4] sm:$0xf]
      %v328 = vld [vmem:[%s220 + $0xc8] sm:$0xf]
      %v329 = vld [vmem:[%s220 + $0xcc] sm:$0xf]
      %v330 = vld [vmem:[%s220 + $0xd0] sm:$0xf]
      %v331 = vld [vmem:[%s220 + $0xd4] sm:$0xf]
      %v332 = vld [vmem:[%s220 + $0xd8] sm:$0xf]
      %v333 = vld [vmem:[%s220 + $0xdc] sm:$0xf]
      %v334 = vld [vmem:[%s220 + $0xe0] sm:$0xf]
      %v335 = vld [vmem:[%s220 + $0xe4] sm:$0xf]
      %v336 = vld [vmem:[%s220 + $0xe8] sm:$0xf]
      %v337 = vld [vmem:[%s220 + $0xec] sm:$0xf]
      %v338 = vld [vmem:[%s220 + $0xf0] sm:$0xf]
      %v339 = vld [vmem:[%s220 + $0xf4] sm:$0xf]
      %v340 = vld [vmem:[%s220 + $0xf8] sm:$0xf]
      %v341 = vld [vmem:[%s220 + $0xfc] sm:$0xf]
      %v342 = vld [vmem:[%s220 + $0x100] sm:$0xf]
      %v343 = vld [vmem:[%s220 + $0x104] sm:$0xf]
      %v344 = vld [vmem:[%s220 + $0x108] sm:$0xf]
      %v345 = vld [vmem:[%s220 + $0x10c] sm:$0xf]
      %v346 = vld [vmem:[%s220 + $0x110] sm:$0xf]
      %v347 = vld [vmem:[%s220 + $0x114] sm:$0xf]
      %v348 = vld [vmem:[%s220 + $0x118] sm:$0xf]
      %v349 = vld [vmem:[%s220 + $0x11c] sm:$0xf]
      %v398 = vunpack.c.l.b16 %v230
      %v399 = vunpack.c.h.b16 %v230
      %v400 = vunpack.c.l.b16 %v231
      %v401 = vunpack.c.h.b16 %v231
      %v402 = vunpack.c.l.b16 %v232
      %v403 = vunpack.c.l.b16 %v233
      %v404 = vunpack.c.h.b16 %v233
      %v405 = vunpack.c.l.b16 %v234
      %v406 = vunpack.c.h.b16 %v234
      %v407 = vunpack.c.l.b16 %v235
      %v408 = vunpack.c.l.b16 %v236
      %v409 = vunpack.c.h.b16 %v236
      %v410 = vunpack.c.l.b16 %v237
      %v411 = vunpack.c.h.b16 %v237
      %v412 = vunpack.c.l.b16 %v238
      %v413 = vunpack.c.l.b16 %v239
      %v414 = vunpack.c.h.b16 %v239
      %v415 = vunpack.c.l.b16 %v240
      %v416 = vunpack.c.h.b16 %v240
      %v417 = vunpack.c.l.b16 %v241
      %v418 = vunpack.c.l.b16 %v242
      %v419 = vunpack.c.h.b16 %v242
      %v420 = vunpack.c.l.b16 %v243
      %v421 = vunpack.c.h.b16 %v243
      %v422 = vunpack.c.l.b16 %v244
      %v423 = vunpack.c.l.b16 %v245
      %v424 = vunpack.c.h.b16 %v245
      %v425 = vunpack.c.l.b16 %v246
      %v426 = vunpack.c.h.b16 %v246
      %v427 = vunpack.c.l.b16 %v247
      %v428 = vunpack.c.l.b16 %v248
      %v429 = vunpack.c.h.b16 %v248
      %v430 = vunpack.c.l.b16 %v249
      %v431 = vunpack.c.h.b16 %v249
      %v432 = vunpack.c.l.b16 %v250
      %v433 = vunpack.c.l.b16 %v251
      %v434 = vunpack.c.h.b16 %v251
      %v435 = vunpack.c.l.b16 %v252
      %v436 = vunpack.c.h.b16 %v252
      %v437 = vunpack.c.l.b16 %v253
      %v438 = vunpack.c.l.b16 %v254
      %v439 = vunpack.c.h.b16 %v254
      %v440 = vunpack.c.l.b16 %v255
      %v441 = vunpack.c.h.b16 %v255
      %v442 = vunpack.c.l.b16 %v256
      %v443 = vunpack.c.l.b16 %v257
      %v444 = vunpack.c.h.b16 %v257
      %v445 = vunpack.c.l.b16 %v258
      %v446 = vunpack.c.h.b16 %v258
      %v447 = vunpack.c.l.b16 %v259
      %v448 = vunpack.c.l.b16 %v260
      %v449 = vunpack.c.h.b16 %v260
      %v450 = vunpack.c.l.b16 %v261
      %v451 = vunpack.c.h.b16 %v261
      %v452 = vunpack.c.l.b16 %v262
      %v453 = vunpack.c.l.b16 %v263
      %v454 = vunpack.c.h.b16 %v263
      %v455 = vunpack.c.l.b16 %v264
      %v456 = vunpack.c.h.b16 %v264
      %v457 = vunpack.c.l.b16 %v265
      %v458 = vunpack.c.l.b16 %v266
      %v459 = vunpack.c.h.b16 %v266
      %v460 = vunpack.c.l.b16 %v267
      %v461 = vunpack.c.h.b16 %v267
      %v462 = vunpack.c.l.b16 %v268
      %v463 = vunpack.c.l.b16 %v269
      %v464 = vunpack.c.h.b16 %v269
      %v465 = vunpack.c.l.b16 %v270
      %v466 = vunpack.c.h.b16 %v270
      %v467 = vunpack.c.l.b16 %v271
      %v468 = vunpack.c.l.b16 %v272
      %v469 = vunpack.c.h.b16 %v272
      %v470 = vunpack.c.l.b16 %v273
      %v471 = vunpack.c.h.b16 %v273
      %v472 = vunpack.c.l.b16 %v274
      %v473 = vunpack.c.l.b16 %v275
      %v474 = vunpack.c.h.b16 %v275
      %v475 = vunpack.c.l.b16 %v276
      %v476 = vunpack.c.h.b16 %v276
      %v477 = vunpack.c.l.b16 %v277
      %v478 = vpack.c.b16 %v403, %v398
      %v479 = vpack.c.b16 %v404, %v399
      %v480 = vpack.c.b16 %v405, %v400
      %v481 = vpack.c.b16 %v406, %v401
      %v482 = vpack.c.b16 %v407, %v402
      %v483 = vpack.c.b16 %v413, %v408
      %v484 = vpack.c.b16 %v414, %v409
      %v485 = vpack.c.b16 %v415, %v410
      %v486 = vpack.c.b16 %v416, %v411
      %v487 = vpack.c.b16 %v417, %v412
      %v488 = vpack.c.b16 %v423, %v418
      %v489 = vpack.c.b16 %v424, %v419
      %v490 = vpack.c.b16 %v425, %v420
      %v491 = vpack.c.b16 %v426, %v421
      %v492 = vpack.c.b16 %v427, %v422
      %v493 = vpack.c.b16 %v433, %v428
      %v494 = vpack.c.b16 %v434, %v429
      %v495 = vpack.c.b16 %v435, %v430
      %v496 = vpack.c.b16 %v436, %v431
      %v497 = vpack.c.b16 %v437, %v432
      %v498 = vpack.c.b16 %v443, %v438
      %v499 = vpack.c.b16 %v444, %v439
      %v500 = vpack.c.b16 %v445, %v440
      %v501 = vpack.c.b16 %v446, %v441
      %v502 = vpack.c.b16 %v447, %v442
      %v503 = vpack.c.b16 %v453, %v448
      %v504 = vpack.c.b16 %v454, %v449
      %v505 = vpack.c.b16 %v455, %v450
      %v506 = vpack.c.b16 %v456, %v451
      %v507 = vpack.c.b16 %v457, %v452
      %v508 = vpack.c.b16 %v463, %v458
      %v509 = vpack.c.b16 %v464, %v459
      %v510 = vpack.c.b16 %v465, %v460
      %v511 = vpack.c.b16 %v466, %v461
      %v512 = vpack.c.b16 %v467, %v462
      %v513 = vpack.c.b16 %v473, %v468
      %v514 = vpack.c.b16 %v474, %v469
      %v515 = vpack.c.b16 %v475, %v470
      %v516 = vpack.c.b16 %v476, %v471
      %v517 = vpack.c.b16 %v477, %v472
      %v622 = vunpack.c.l.b16 %v278
      %v623 = vunpack.c.l.b16 %v279
      %v624 = vunpack.c.l.b16 %v280
      %v625 = vunpack.c.l.b16 %v281
      %v626 = vunpack.c.l.b16 %v282
      %v627 = vunpack.c.l.b16 %v283
      %v628 = vunpack.c.l.b16 %v284
      %v629 = vunpack.c.l.b16 %v285
      %v630 = vunpack.c.l.b16 %v286
      %v631 = vunpack.c.l.b16 %v287
      %v632 = vunpack.c.l.b16 %v288
      %v633 = vunpack.c.l.b16 %v289
      %v634 = vunpack.c.l.b16 %v290
      %v635 = vunpack.c.l.b16 %v291
      %v636 = vunpack.c.l.b16 %v292
      %v637 = vunpack.c.l.b16 %v293
      %v638 = vunpack.c.l.b16 %v294
      %v639 = vunpack.c.l.b16 %v295
      %v640 = vunpack.c.l.b16 %v296
      %v641 = vunpack.c.l.b16 %v297
      %v642 = vunpack.c.l.b16 %v298
      %v643 = vunpack.c.l.b16 %v299
      %v644 = vunpack.c.l.b16 %v300
      %v645 = vunpack.c.l.b16 %v301
      %v646 = vunpack.c.l.b16 %v302
      %v647 = vunpack.c.l.b16 %v303
      %v648 = vunpack.c.l.b16 %v304
      %v649 = vunpack.c.l.b16 %v305
      %v650 = vunpack.c.l.b16 %v306
      %v651 = vunpack.c.l.b16 %v307
      %v652 = vunpack.c.l.b16 %v308
      %v653 = vunpack.c.l.b16 %v309
      %v654 = vunpack.c.l.b16 %v310
      %v655 = vunpack.c.l.b16 %v311
      %v656 = vunpack.c.l.b16 %v312
      %v657 = vunpack.c.l.b16 %v313
      %v658 = vunpack.c.l.b16 %v314
      %v659 = vunpack.c.l.b16 %v315
      %v660 = vunpack.c.l.b16 %v316
      %v661 = vunpack.c.l.b16 %v317
      %v662 = vunpack.c.l.b16 %v318
      %v663 = vunpack.c.l.b16 %v319
      %v664 = vunpack.c.l.b16 %v320
      %v665 = vunpack.c.l.b16 %v321
      %v666 = vunpack.c.l.b16 %v322
      %v667 = vunpack.c.l.b16 %v323
      %v668 = vunpack.c.l.b16 %v324
      %v669 = vunpack.c.l.b16 %v325
      %v670 = vunpack.c.l.b16 %v326
      %v671 = vunpack.c.l.b16 %v327
      %v672 = vunpack.c.l.b16 %v328
      %v673 = vunpack.c.l.b16 %v329
      %v674 = vunpack.c.l.b16 %v330
      %v675 = vunpack.c.l.b16 %v331
      %v676 = vunpack.c.l.b16 %v332
      %v677 = vunpack.c.l.b16 %v333
      %v678 = vunpack.c.l.b16 %v334
      %v679 = vunpack.c.l.b16 %v335
      %v680 = vunpack.c.l.b16 %v336
      %v681 = vunpack.c.l.b16 %v337
      %v682 = vunpack.c.l.b16 %v338
      %v683 = vunpack.c.l.b16 %v339
      %v684 = vunpack.c.l.b16 %v340
      %v685 = vunpack.c.l.b16 %v341
      %v686 = vunpack.c.l.b16 %v342
      %v687 = vunpack.c.l.b16 %v343
      %v688 = vunpack.c.l.b16 %v344
      %v689 = vunpack.c.l.b16 %v345
      %v690 = vunpack.c.l.b16 %v346
      %v691 = vunpack.c.l.b16 %v347
      %v692 = vunpack.c.l.b16 %v348
      %v693 = vunpack.c.l.b16 %v349
      %v694 = vpack.c.b16 %v623, %v622
      %v695 = vpack.c.b16 %v625, %v624
      %v696 = vpack.c.b16 %v627, %v626
      %v697 = vpack.c.b16 %v629, %v628
      %v698 = vpack.c.b16 %v631, %v630
      %v699 = vpack.c.b16 %v633, %v632
      %v700 = vpack.c.b16 %v635, %v634
      %v701 = vpack.c.b16 %v637, %v636
      %v702 = vpack.c.b16 %v639, %v638
      %v703 = vpack.c.b16 %v641, %v640
      %v704 = vpack.c.b16 %v643, %v642
      %v705 = vpack.c.b16 %v645, %v644
      %v706 = vpack.c.b16 %v647, %v646
      %v707 = vpack.c.b16 %v649, %v648
      %v708 = vpack.c.b16 %v651, %v650
      %v709 = vpack.c.b16 %v653, %v652
      %v710 = vpack.c.b16 %v655, %v654
      %v711 = vpack.c.b16 %v657, %v656
      %v712 = vpack.c.b16 %v659, %v658
      %v713 = vpack.c.b16 %v661, %v660
      %v714 = vpack.c.b16 %v663, %v662
      %v715 = vpack.c.b16 %v665, %v664
      %v716 = vpack.c.b16 %v667, %v666
      %v717 = vpack.c.b16 %v669, %v668
      %v718 = vpack.c.b16 %v671, %v670
      %v719 = vpack.c.b16 %v673, %v672
      %v720 = vpack.c.b16 %v675, %v674
      %v721 = vpack.c.b16 %v677, %v676
      %v722 = vpack.c.b16 %v679, %v678
      %v723 = vpack.c.b16 %v681, %v680
      %v724 = vpack.c.b16 %v683, %v682
      %v725 = vpack.c.b16 %v685, %v684
      %v726 = vpack.c.b16 %v687, %v686
      %v727 = vpack.c.b16 %v689, %v688
      %v728 = vpack.c.b16 %v691, %v690
      %v729 = vpack.c.b16 %v693, %v692
      %vm766 = vcmask 523264
      %v768 = vsel %vm766, %v482, 0
      %v771 = vsel %vm766, %v487, 0
      %v774 = vsel %vm766, %v492, 0
      %v777 = vsel %vm766, %v497, 0
      %v780 = vsel %vm766, %v502, 0
      %v783 = vsel %vm766, %v507, 0
      %v786 = vsel %vm766, %v512, 0
      %v789 = vsel %vm766, %v517, 0
      %791 = vmatprep.subr.bf16.mxu0 0
      %792 = vmatpush1.bf16.msra.mxu0 %v701
      %793 = vmatprep.subr.bf16.mxu0 0
      %794 = vmatpush1.bf16.msra.mxu0 %v700
      %795 = vmatprep.subr.bf16.mxu0 0
      %796 = vmatpush1.bf16.msra.mxu0 %v699
      %797 = vmatprep.subr.bf16.mxu0 0
      %798 = vmatpush1.bf16.msra.mxu0 %v698
      %799 = vmatprep.subr.bf16.mxu0 0
      %800 = vmatpush1.bf16.msra.mxu0 %v697
      %801 = vmatprep.subr.bf16.mxu0 0
      %802 = vmatpush1.bf16.msra.mxu0 %v696
      %803 = vmatprep.subr.bf16.mxu0 0
      %804 = vmatpush1.bf16.msra.mxu0 %v695
      %805 = vmatprep.subr.bf16.mxu0 0
      %806 = vmatpush1.bf16.msra.mxu0 %v694
      %807 = vmatprep.subr.bf16.mxu0 0
      %808 = vmatpush2.bf16.msra.mxu0 %v709
      %809 = vmatprep.subr.bf16.mxu0 0
      %810 = vmatpush2.bf16.msra.mxu0 %v708
      %811 = vmatprep.subr.bf16.mxu0 0
      %812 = vmatpush2.bf16.msra.mxu0 %v707
      %813 = vmatprep.subr.bf16.mxu0 0
      %814 = vmatpush2.bf16.msra.mxu0 %v706
      %815 = vmatprep.subr.bf16.mxu0 0
      %816 = vmatpush2.bf16.msra.mxu0 %v705
      %817 = vmatprep.subr.bf16.mxu0 0
      %818 = vmatpush2.bf16.msra.mxu0 %v704
      %819 = vmatprep.subr.bf16.mxu0 0
      %820 = vmatpush2.bf16.msra.mxu0 %v703
      %821 = vmatprep.subr.bf16.mxu0 0
      %822 = vmatpush2.bf16.msra.mxu0 %v702
      %823 = vmatprep.mubr.bf16.mxu0 %v479
      %824 = vmatmul.mubr.bf16.gmra.mxu0 %v478
      %v825 = vpop.f32.mrf.mxu0
      %v826 = vadd.f32 0.0, %v825
      %v827 = vpop.f32.mrf.mxu0
      %v828 = vpop.f32.mrf.mxu0
      %v829 = vadd.f32 0.0, %v828
      %v830 = vpop.f32.mrf.mxu0
      %831 = vmatprep.mubr.bf16.mxu0 %v484
      %832 = vmatmul.mubr.bf16.gmra.mxu0 %v483
      %v833 = vpop.f32.mrf.mxu0
      %v834 = vadd.f32 0.0, %v833
      %v835 = vpop.f32.mrf.mxu0
      %v836 = vpop.f32.mrf.mxu0
      %v837 = vadd.f32 0.0, %v836
      %v838 = vpop.f32.mrf.mxu0
      %839 = vmatprep.mubr.bf16.mxu0 %v489
      %840 = vmatmul.mubr.bf16.gmra.mxu0 %v488
      %v841 = vpop.f32.mrf.mxu0
      %v842 = vadd.f32 0.0, %v841
      %v843 = vpop.f32.mrf.mxu0
      %v844 = vpop.f32.mrf.mxu0
      %v845 = vadd.f32 0.0, %v844
      %v846 = vpop.f32.mrf.mxu0
      %847 = vmatprep.mubr.bf16.mxu0 %v494
      %848 = vmatmul.mubr.bf16.gmra.mxu0 %v493
      %v849 = vpop.f32.mrf.mxu0
      %v850 = vadd.f32 0.0, %v849
      %v851 = vpop.f32.mrf.mxu0
      %v852 = vpop.f32.mrf.mxu0
      %v853 = vadd.f32 0.0, %v852
      %v854 = vpop.f32.mrf.mxu0
      %855 = vmatprep.mubr.bf16.mxu0 %v499
      %856 = vmatmul.mubr.bf16.gmra.mxu0 %v498
      %v857 = vpop.f32.mrf.mxu0
      %v858 = vadd.f32 0.0, %v857
      %v859 = vpop.f32.mrf.mxu0
      %v860 = vpop.f32.mrf.mxu0
      %v861 = vadd.f32 0.0, %v860
      %v862 = vpop.f32.mrf.mxu0
      %863 = vmatprep.mubr.bf16.mxu0 %v504
      %864 = vmatmul.mubr.bf16.gmra.mxu0 %v503
      %v865 = vpop.f32.mrf.mxu0
      %v866 = vadd.f32 0.0, %v865
      %v867 = vpop.f32.mrf.mxu0
      %v868 = vpop.f32.mrf.mxu0
      %v869 = vadd.f32 0.0, %v868
      %v870 = vpop.f32.mrf.mxu0
      %871 = vmatprep.mubr.bf16.mxu0 %v509
      %872 = vmatmul.mubr.bf16.gmra.mxu0 %v508
      %v873 = vpop.f32.mrf.mxu0
      %v874 = vadd.f32 0.0, %v873
      %v875 = vpop.f32.mrf.mxu0
      %v876 = vpop.f32.mrf.mxu0
      %v877 = vadd.f32 0.0, %v876
      %v878 = vpop.f32.mrf.mxu0
      %879 = vmatprep.mubr.bf16.mxu0 %v514
      %880 = vmatmul.mubr.bf16.gmra.mxu0 %v513
      %v881 = vpop.f32.mrf.mxu0
      %v882 = vadd.f32 0.0, %v881
      %v883 = vpop.f32.mrf.mxu0
      %v884 = vpop.f32.mrf.mxu0
      %v885 = vadd.f32 0.0, %v884
      %v886 = vpop.f32.mrf.mxu0
      %887 = vdwg.mxu0
      %888 = vmatprep.subr.bf16.mxu0 0
      %889 = vmatpush1.bf16.msra.mxu0 %v717
      %890 = vmatprep.subr.bf16.mxu0 0
      %891 = vmatpush1.bf16.msra.mxu0 %v716
      %892 = vmatprep.subr.bf16.mxu0 0
      %893 = vmatpush1.bf16.msra.mxu0 %v715
      %894 = vmatprep.subr.bf16.mxu0 0
      %895 = vmatpush1.bf16.msra.mxu0 %v714
      %896 = vmatprep.subr.bf16.mxu0 0
      %897 = vmatpush1.bf16.msra.mxu0 %v713
      %898 = vmatprep.subr.bf16.mxu0 0
      %899 = vmatpush1.bf16.msra.mxu0 %v712
      %900 = vmatprep.subr.bf16.mxu0 0
      %901 = vmatpush1.bf16.msra.mxu0 %v711
      %902 = vmatprep.subr.bf16.mxu0 0
      %903 = vmatpush1.bf16.msra.mxu0 %v710
      %904 = vmatprep.subr.bf16.mxu0 0
      %905 = vmatpush2.bf16.msra.mxu0 %v725
      %906 = vmatprep.subr.bf16.mxu0 0
      %907 = vmatpush2.bf16.msra.mxu0 %v724
      %908 = vmatprep.subr.bf16.mxu0 0
      %909 = vmatpush2.bf16.msra.mxu0 %v723
      %910 = vmatprep.subr.bf16.mxu0 0
      %911 = vmatpush2.bf16.msra.mxu0 %v722
      %912 = vmatprep.subr.bf16.mxu0 0
      %913 = vmatpush2.bf16.msra.mxu0 %v721
      %914 = vmatprep.subr.bf16.mxu0 0
      %915 = vmatpush2.bf16.msra.mxu0 %v720
      %916 = vmatprep.subr.bf16.mxu0 0
      %917 = vmatpush2.bf16.msra.mxu0 %v719
      %918 = vmatprep.subr.bf16.mxu0 0
      %919 = vmatpush2.bf16.msra.mxu0 %v718
      %920 = vmatprep.mubr.bf16.mxu0 %v481
      %921 = vmatmul.mubr.bf16.gmra.mxu0 %v480
      %v922 = vpop.f32.mrf.mxu0
      %v923 = vadd.f32 %v826, %v922
      %v924 = vpop.f32.mrf.mxu0
      %v925 = vpop.f32.mrf.mxu0
      %v926 = vadd.f32 %v829, %v925
      %v927 = vpop.f32.mrf.mxu0
      %928 = vmatprep.mubr.bf16.mxu0 %v486
      %929 = vmatmul.mubr.bf16.gmra.mxu0 %v485
      %v930 = vpop.f32.mrf.mxu0
      %v931 = vadd.f32 %v834, %v930
      %v932 = vpop.f32.mrf.mxu0
      %v933 = vpop.f32.mrf.mxu0
      %v934 = vadd.f32 %v837, %v933
      %v935 = vpop.f32.mrf.mxu0
      %936 = vmatprep.mubr.bf16.mxu0 %v491
      %937 = vmatmul.mubr.bf16.gmra.mxu0 %v490
      %v938 = vpop.f32.mrf.mxu0
      %v939 = vadd.f32 %v842, %v938
      %v940 = vpop.f32.mrf.mxu0
      %v941 = vpop.f32.mrf.mxu0
      %v942 = vadd.f32 %v845, %v941
      %v943 = vpop.f32.mrf.mxu0
      %944 = vmatprep.mubr.bf16.mxu0 %v496
      %945 = vmatmul.mubr.bf16.gmra.mxu0 %v495
      %v946 = vpop.f32.mrf.mxu0
      %v947 = vadd.f32 %v850, %v946
      %v948 = vpop.f32.mrf.mxu0
      %v949 = vpop.f32.mrf.mxu0
      %v950 = vadd.f32 %v853, %v949
      %v951 = vpop.f32.mrf.mxu0
      %952 = vmatprep.mubr.bf16.mxu0 %v501
      %953 = vmatmul.mubr.bf16.gmra.mxu0 %v500
      %v954 = vpop.f32.mrf.mxu0
      %v955 = vadd.f32 %v858, %v954
      %v956 = vpop.f32.mrf.mxu0
      %v957 = vpop.f32.mrf.mxu0
      %v958 = vadd.f32 %v861, %v957
      %v959 = vpop.f32.mrf.mxu0
      %960 = vmatprep.mubr.bf16.mxu0 %v506
      %961 = vmatmul.mubr.bf16.gmra.mxu0 %v505
      %v962 = vpop.f32.mrf.mxu0
      %v963 = vadd.f32 %v866, %v962
      %v964 = vpop.f32.mrf.mxu0
      %v965 = vpop.f32.mrf.mxu0
      %v966 = vadd.f32 %v869, %v965
      %v967 = vpop.f32.mrf.mxu0
      %968 = vmatprep.mubr.bf16.mxu0 %v511
      %969 = vmatmul.mubr.bf16.gmra.mxu0 %v510
      %v970 = vpop.f32.mrf.mxu0
      %v971 = vadd.f32 %v874, %v970
      %v972 = vpop.f32.mrf.mxu0
      %v973 = vpop.f32.mrf.mxu0
      %v974 = vadd.f32 %v877, %v973
      %v975 = vpop.f32.mrf.mxu0
      %976 = vmatprep.mubr.bf16.mxu0 %v516
      %977 = vmatmul.mubr.bf16.gmra.mxu0 %v515
      %v978 = vpop.f32.mrf.mxu0
      %v979 = vadd.f32 %v882, %v978
      %v980 = vpop.f32.mrf.mxu0
      %v981 = vpop.f32.mrf.mxu0
      %v982 = vadd.f32 %v885, %v981
      %v983 = vpop.f32.mrf.mxu0
      %984 = vdwg.mxu0
      %985 = vmatprep.subr.bf16.mxu0 0
      %986 = vmatpush1.bf16.msra.mxu0 0
      %987 = vmatprep.subr.bf16.mxu0 0
      %988 = vmatpush1.bf16.msra.mxu0 0
      %989 = vmatprep.subr.bf16.mxu0 0
      %990 = vmatpush1.bf16.msra.mxu0 0
      %991 = vmatprep.subr.bf16.mxu0 0
      %992 = vmatpush1.bf16.msra.mxu0 0
      %993 = vmatprep.subr.bf16.mxu0 0
      %994 = vmatpush1.bf16.msra.mxu0 %v729
      %995 = vmatprep.subr.bf16.mxu0 0
      %996 = vmatpush1.bf16.msra.mxu0 %v728
      %997 = vmatprep.subr.bf16.mxu0 0
      %998 = vmatpush1.bf16.msra.mxu0 %v727
      %999 = vmatprep.subr.bf16.mxu0 0
      %1000 = vmatpush1.bf16.msra.mxu0 %v726
      %1001 = vmatprep.subr.bf16.mxu0 0
      %1002 = vmatpush2.bf16.msra.mxu0 0
      %1003 = vmatprep.subr.bf16.mxu0 0
      %1004 = vmatpush2.bf16.msra.mxu0 0
      %1005 = vmatprep.subr.bf16.mxu0 0
      %1006 = vmatpush2.bf16.msra.mxu0 0
      %1007 = vmatprep.subr.bf16.mxu0 0
      %1008 = vmatpush2.bf16.msra.mxu0 0
      %1009 = vmatprep.subr.bf16.mxu0 0
      %1010 = vmatpush2.bf16.msra.mxu0 0
      %1011 = vmatprep.subr.bf16.mxu0 0
      %1012 = vmatpush2.bf16.msra.mxu0 0
      %1013 = vmatprep.subr.bf16.mxu0 0
      %1014 = vmatpush2.bf16.msra.mxu0 0
      %1015 = vmatprep.subr.bf16.mxu0 0
      %1016 = vmatpush2.bf16.msra.mxu0 0
      %1017 = vmatprep.mubr.bf16.mxu0 0
      %1018 = vmatmul.mubr.bf16.gmra.mxu0 %v768
      %v1019 = vpop.f32.mrf.mxu0
      %v1020 = vadd.f32 %v923, %v1019
      %v1021 = vpop.f32.mrf.mxu0
      %v1022 = vpop.f32.mrf.mxu0
      %v1023 = vadd.f32 %v926, %v1022
      %v1024 = vpop.f32.mrf.mxu0
      %1025 = vmatprep.mubr.bf16.mxu0 0
      %1026 = vmatmul.mubr.bf16.gmra.mxu0 %v771
      %v1027 = vpop.f32.mrf.mxu0
      %v1028 = vadd.f32 %v931, %v1027
      %v1029 = vpop.f32.mrf.mxu0
      %v1030 = vpop.f32.mrf.mxu0
      %v1031 = vadd.f32 %v934, %v1030
      %v1032 = vpop.f32.mrf.mxu0
      %1033 = vmatprep.mubr.bf16.mxu0 0
      %1034 = vmatmul.mubr.bf16.gmra.mxu0 %v774
      %v1035 = vpop.f32.mrf.mxu0
      %v1036 = vadd.f32 %v939, %v1035
      %v1037 = vpop.f32.mrf.mxu0
      %v1038 = vpop.f32.mrf.mxu0
      %v1039 = vadd.f32 %v942, %v1038
      %v1040 = vpop.f32.mrf.mxu0
      %1041 = vmatprep.mubr.bf16.mxu0 0
      %1042 = vmatmul.mubr.bf16.gmra.mxu0 %v777
      %v1043 = vpop.f32.mrf.mxu0
      %v1044 = vadd.f32 %v947, %v1043
      %v1045 = vpop.f32.mrf.mxu0
      %v1046 = vpop.f32.mrf.mxu0
      %v1047 = vadd.f32 %v950, %v1046
      %v1048 = vpop.f32.mrf.mxu0
      %1049 = vmatprep.mubr.bf16.mxu0 0
      %1050 = vmatmul.mubr.bf16.gmra.mxu0 %v780
      %v1051 = vpop.f32.mrf.mxu0
      %v1052 = vadd.f32 %v955, %v1051
      %v1053 = vpop.f32.mrf.mxu0
      %v1054 = vpop.f32.mrf.mxu0
      %v1055 = vadd.f32 %v958, %v1054
      %v1056 = vpop.f32.mrf.mxu0
      %1057 = vmatprep.mubr.bf16.mxu0 0
      %1058 = vmatmul.mubr.bf16.gmra.mxu0 %v783
      %v1059 = vpop.f32.mrf.mxu0
      %v1060 = vadd.f32 %v963, %v1059
      %v1061 = vpop.f32.mrf.mxu0
      %v1062 = vpop.f32.mrf.mxu0
      %v1063 = vadd.f32 %v966, %v1062
      %v1064 = vpop.f32.mrf.mxu0
      %1065 = vmatprep.mubr.bf16.mxu0 0
      %1066 = vmatmul.mubr.bf16.gmra.mxu0 %v786
      %v1067 = vpop.f32.mrf.mxu0
      %v1068 = vadd.f32 %v971, %v1067
      %v1069 = vpop.f32.mrf.mxu0
      %v1070 = vpop.f32.mrf.mxu0
      %v1071 = vadd.f32 %v974, %v1070
      %v1072 = vpop.f32.mrf.mxu0
      %1073 = vmatprep.mubr.bf16.mxu0 0
      %1074 = vmatmul.mubr.bf16.gmra.mxu0 %v789
      %v1075 = vpop.f32.mrf.mxu0
      %v1076 = vadd.f32 %v979, %v1075
      %v1077 = vpop.f32.mrf.mxu0
      %v1078 = vpop.f32.mrf.mxu0
      %v1079 = vadd.f32 %v982, %v1078
      %v1080 = vpop.f32.mrf.mxu0
      %1081 = vdwg.mxu0
      %v1082 = vld [vmem:[%s2] sm:$0xff]
      %v1083 = vld [vmem:[%s2 + $0x8] sm:$0xff]
      %v1084 = vld [vmem:[%s2 + $0x10] sm:$0xff]
      %v1085 = vld [vmem:[%s2 + $0x18] sm:$0xff]
      %v1086 = vld [vmem:[%s2 + $0x20] sm:$0xff]
      %v1087 = vld [vmem:[%s2 + $0x28] sm:$0xff]
      %v1088 = vld [vmem:[%s2 + $0x30] sm:$0xff]
      %v1089 = vld [vmem:[%s2 + $0x38] sm:$0xff]
      %v1090 = vld [vmem:[%s2 + $0x40] sm:$0xff]
      %v1091 = vld [vmem:[%s2 + $0x48] sm:$0xff]
      %v1092 = vld [vmem:[%s2 + $0x50] sm:$0xff]
      %v1093 = vld [vmem:[%s2 + $0x58] sm:$0xff]
      %v1094 = vld [vmem:[%s2 + $0x60] sm:$0xff]
      %v1095 = vld [vmem:[%s2 + $0x68] sm:$0xff]
      %v1096 = vld [vmem:[%s2 + $0x70] sm:$0xff]
      %v1097 = vld [vmem:[%s2 + $0x78] sm:$0xff]
      %1099 = vset.pattern.permute.xlu0 0
      %1100 = vperm.xlu0 %1099, %v1082
      %v1101 = vpop.permute.xlu0 %1100
      %1104 = vset.pattern.permute.xlu0 0
      %1105 = vperm.xlu0 %1104, %v1083
      %v1106 = vpop.permute.xlu0 %1105
      %1109 = vset.pattern.permute.xlu0 0
      %1110 = vperm.xlu0 %1109, %v1084
      %v1111 = vpop.permute.xlu0 %1110
      %1114 = vset.pattern.permute.xlu0 0
      %1115 = vperm.xlu0 %1114, %v1085
      %v1116 = vpop.permute.xlu0 %1115
      %1119 = vset.pattern.permute.xlu0 0
      %1120 = vperm.xlu0 %1119, %v1086
      %v1121 = vpop.permute.xlu0 %1120
      %1124 = vset.pattern.permute.xlu0 0
      %1125 = vperm.xlu0 %1124, %v1087
      %v1126 = vpop.permute.xlu0 %1125
      %1129 = vset.pattern.permute.xlu0 0
      %1130 = vperm.xlu0 %1129, %v1088
      %v1131 = vpop.permute.xlu0 %1130
      %1134 = vset.pattern.permute.xlu0 0
      %1135 = vperm.xlu0 %1134, %v1089
      %v1136 = vpop.permute.xlu0 %1135
      %1139 = vset.pattern.permute.xlu0 0
      %1140 = vperm.xlu0 %1139, %v1090
      %v1141 = vpop.permute.xlu0 %1140
      %1144 = vset.pattern.permute.xlu0 0
      %1145 = vperm.xlu0 %1144, %v1091
      %v1146 = vpop.permute.xlu0 %1145
      %1149 = vset.pattern.permute.xlu0 0
      %1150 = vperm.xlu0 %1149, %v1092
      %v1151 = vpop.permute.xlu0 %1150
      %1154 = vset.pattern.permute.xlu0 0
      %1155 = vperm.xlu0 %1154, %v1093
      %v1156 = vpop.permute.xlu0 %1155
      %1159 = vset.pattern.permute.xlu0 0
      %1160 = vperm.xlu0 %1159, %v1094
      %v1161 = vpop.permute.xlu0 %1160
      %1164 = vset.pattern.permute.xlu0 0
      %1165 = vperm.xlu0 %1164, %v1095
      %v1166 = vpop.permute.xlu0 %1165
      %1169 = vset.pattern.permute.xlu0 0
      %1170 = vperm.xlu0 %1169, %v1096
      %v1171 = vpop.permute.xlu0 %1170
      %1174 = vset.pattern.permute.xlu0 0
      %1175 = vperm.xlu0 %1174, %v1097
      %v1176 = vpop.permute.xlu0 %1175
      %v1178 = vmul.f32 %v1020, %v1101
      %v1179 = vmul.f32 %v1023, %v1106
      %v1180 = vmul.f32 %v1028, %v1111
      %v1181 = vmul.f32 %v1031, %v1116
      %v1182 = vmul.f32 %v1036, %v1121
      %v1183 = vmul.f32 %v1039, %v1126
      %v1184 = vmul.f32 %v1044, %v1131
      %v1185 = vmul.f32 %v1047, %v1136
      %v1186 = vmul.f32 %v1052, %v1141
      %v1187 = vmul.f32 %v1055, %v1146
      %v1188 = vmul.f32 %v1060, %v1151
      %v1189 = vmul.f32 %v1063, %v1156
      %v1190 = vmul.f32 %v1068, %v1161
      %v1191 = vmul.f32 %v1071, %v1166
      %v1192 = vmul.f32 %v1076, %v1171
      %v1193 = vmul.f32 %v1079, %v1176
      %v1194 = vld [vmem:[%s3] sm:$0xff]
      %v1195 = vld [vmem:[%s3 + $0x8] sm:$0xff]
      %v1196 = vld [vmem:[%s3 + $0x10] sm:$0xff]
      %v1197 = vld [vmem:[%s3 + $0x18] sm:$0xff]
      %v1198 = vld [vmem:[%s3 + $0x20] sm:$0xff]
      %v1199 = vld [vmem:[%s3 + $0x28] sm:$0xff]
      %v1200 = vld [vmem:[%s3 + $0x30] sm:$0xff]
      %v1201 = vld [vmem:[%s3 + $0x38] sm:$0xff]
      %v1202 = vld [vmem:[%s3 + $0x40] sm:$0xff]
      %v1203 = vld [vmem:[%s3 + $0x48] sm:$0xff]
      %v1204 = vld [vmem:[%s3 + $0x50] sm:$0xff]
      %v1205 = vld [vmem:[%s3 + $0x58] sm:$0xff]
      %v1206 = vld [vmem:[%s3 + $0x60] sm:$0xff]
      %v1207 = vld [vmem:[%s3 + $0x68] sm:$0xff]
      %v1208 = vld [vmem:[%s3 + $0x70] sm:$0xff]
      %v1209 = vld [vmem:[%s3 + $0x78] sm:$0xff]
      %1211 = vset.pattern.permute.xlu0 0
      %1212 = vperm.xlu0 %1211, %v1194
      %v1213 = vpop.permute.xlu0 %1212
      %1216 = vset.pattern.permute.xlu0 0
      %1217 = vperm.xlu0 %1216, %v1195
      %v1218 = vpop.permute.xlu0 %1217
      %1221 = vset.pattern.permute.xlu0 0
      %1222 = vperm.xlu0 %1221, %v1196
      %v1223 = vpop.permute.xlu0 %1222
      %1226 = vset.pattern.permute.xlu0 0
      %1227 = vperm.xlu0 %1226, %v1197
      %v1228 = vpop.permute.xlu0 %1227
      %1231 = vset.pattern.permute.xlu0 0
      %1232 = vperm.xlu0 %1231, %v1198
      %v1233 = vpop.permute.xlu0 %1232
      %1236 = vset.pattern.permute.xlu0 0
      %1237 = vperm.xlu0 %1236, %v1199
      %v1238 = vpop.permute.xlu0 %1237
      %1241 = vset.pattern.permute.xlu0 0
      %1242 = vperm.xlu0 %1241, %v1200
      %v1243 = vpop.permute.xlu0 %1242
      %1246 = vset.pattern.permute.xlu0 0
      %1247 = vperm.xlu0 %1246, %v1201
      %v1248 = vpop.permute.xlu0 %1247
      %1251 = vset.pattern.permute.xlu0 0
      %1252 = vperm.xlu0 %1251, %v1202
      %v1253 = vpop.permute.xlu0 %1252
      %1256 = vset.pattern.permute.xlu0 0
      %1257 = vperm.xlu0 %1256, %v1203
      %v1258 = vpop.permute.xlu0 %1257
      %1261 = vset.pattern.permute.xlu0 0
      %1262 = vperm.xlu0 %1261, %v1204
      %v1263 = vpop.permute.xlu0 %1262
      %1266 = vset.pattern.permute.xlu0 0
      %1267 = vperm.xlu0 %1266, %v1205
      %v1268 = vpop.permute.xlu0 %1267
      %1271 = vset.pattern.permute.xlu0 0
      %1272 = vperm.xlu0 %1271, %v1206
      %v1273 = vpop.permute.xlu0 %1272
      %1276 = vset.pattern.permute.xlu0 0
      %1277 = vperm.xlu0 %1276, %v1207
      %v1278 = vpop.permute.xlu0 %1277
      %1281 = vset.pattern.permute.xlu0 0
      %1282 = vperm.xlu0 %1281, %v1208
      %v1283 = vpop.permute.xlu0 %1282
      %1286 = vset.pattern.permute.xlu0 0
      %1287 = vperm.xlu0 %1286, %v1209
      %v1288 = vpop.permute.xlu0 %1287
      %v1290 = vadd.f32 %v1178, %v1213
      %v1291 = vadd.f32 %v1179, %v1218
      %v1292 = vadd.f32 %v1180, %v1223
      %v1293 = vadd.f32 %v1181, %v1228
      %v1294 = vadd.f32 %v1182, %v1233
      %v1295 = vadd.f32 %v1183, %v1238
      %v1296 = vadd.f32 %v1184, %v1243
      %v1297 = vadd.f32 %v1185, %v1248
      %v1298 = vadd.f32 %v1186, %v1253
      %v1299 = vadd.f32 %v1187, %v1258
      %v1300 = vadd.f32 %v1188, %v1263
      %v1301 = vadd.f32 %v1189, %v1268
      %v1302 = vadd.f32 %v1190, %v1273
      %v1303 = vadd.f32 %v1191, %v1278
      %v1304 = vadd.f32 %v1192, %v1283
      %v1305 = vadd.f32 %v1193, %v1288
      %v1306 = vmax.f32 %v1290, 0.0
      %v1307 = vmax.f32 %v1291, 0.0
      %v1308 = vmax.f32 %v1292, 0.0
      %v1309 = vmax.f32 %v1293, 0.0
      %v1310 = vmax.f32 %v1294, 0.0
      %v1311 = vmax.f32 %v1295, 0.0
      %v1312 = vmax.f32 %v1296, 0.0
      %v1313 = vmax.f32 %v1297, 0.0
      %v1314 = vmax.f32 %v1298, 0.0
      %v1315 = vmax.f32 %v1299, 0.0
      %v1316 = vmax.f32 %v1300, 0.0
      %v1317 = vmax.f32 %v1301, 0.0
      %v1318 = vmax.f32 %v1302, 0.0
      %v1319 = vmax.f32 %v1303, 0.0
      %v1320 = vmax.f32 %v1304, 0.0
      %v1321 = vmax.f32 %v1305, 0.0
      %vm1322 = vcmask 31744
      %1323 = vst.msk [vmem:[%s228] sm:$0xff] %vm1322, %v1306
      %1324 = vst.msk [vmem:[%s228 + $0x8] sm:$0xff] %vm1322, %v1307
      %1325 = vst.msk [vmem:[%s228 + $0x10] sm:$0xff] %vm1322, %v1308
      %1326 = vst.msk [vmem:[%s228 + $0x18] sm:$0xff] %vm1322, %v1309
      %1327 = vst.msk [vmem:[%s228 + $0x20] sm:$0xff] %vm1322, %v1310
      %1328 = vst.msk [vmem:[%s228 + $0x28] sm:$0xff] %vm1322, %v1311
      %1329 = vst.msk [vmem:[%s228 + $0x30] sm:$0xff] %vm1322, %v1312
      %1330 = vst.msk [vmem:[%s228 + $0x38] sm:$0xff] %vm1322, %v1313
      %1331 = vst.msk [vmem:[%s228 + $0x40] sm:$0xff] %vm1322, %v1314
      %1332 = vst.msk [vmem:[%s228 + $0x48] sm:$0xff] %vm1322, %v1315
      %1333 = vst.msk [vmem:[%s228 + $0x50] sm:$0xff] %vm1322, %v1316
      %1334 = vst.msk [vmem:[%s228 + $0x58] sm:$0xff] %vm1322, %v1317
      %1335 = vst.msk [vmem:[%s228 + $0x60] sm:$0xff] %vm1322, %v1318
      %1336 = vst.msk [vmem:[%s228 + $0x68] sm:$0xff] %vm1322, %v1319
      %1337 = vst.msk [vmem:[%s228 + $0x70] sm:$0xff] %vm1322, %v1320
      %1338 = vst.msk [vmem:[%s228 + $0x78] sm:$0xff] %vm1322, %v1321
      %p1339 = scmp.lt.s32.totalorder %s19, 1
      %s1340 = scalar_select %p1339, %s19, 1
      %p1341 = scmp.lt.s32.totalorder %s20, 0
      %s1342 = scalar_select %p1341, %s20, 0
      %s1343 = smul.addr %s1340, 16
      %s1344 = sadd.s32 %s1342, %s1343
      %s1345 = smul.addr %s1344, 8
      %s1346 = scalar_lea.vmem %s4, %s1345
      // Predicated region
      $region37: #{dgmn2_patch_embed_forward.11} parent=35 // pred_check
        %p1347 = pneg %p138
      $region38: #{dgmn2_patch_embed_forward.11} parent=35 // pred_check_branch
        %1349 = sbr.rel (%p1347) target = $region40
      $region39: #{dgmn2_patch_embed_forward.11} parent=35 // pred_region
        _
      $region40: #{dgmn2_patch_embed_forward.11} parent=35 // pred_fallthru
        _
    $region36: #{dgmn2_patch_embed_forward.11} parent=5 // pred_fallthru
      _
    %p1350 = scmp.le.s32.totalorder 2, %s10
    // Predicated region
    $region41: #{dgmn2_patch_embed_forward.11} parent=5 // pred_check
      %p1351 = pneg %p1350
    $region42: #{dgmn2_patch_embed_forward.11} parent=5 // pred_check_branch
      %1353 = sbr.rel (%p1351) target = $region44
    $region43: #{dgmn2_patch_embed_forward.11} parent=5 // pred_region
      %s1354 = ssub.s32 %s10, 2
      // Predicated region
      $region45: #{dgmn2_patch_embed_forward.11} parent=43 // pred_check
        %p1355 = pneg %p144
      $region46: #{dgmn2_patch_embed_forward.11} parent=43 // pred_check_branch
        %1357 = sbr.rel (%p1355) target = $region48
      $region47: #{dgmn2_patch_embed_forward.11} parent=43 // pred_region
        %p1358 = scmp.lt.s32.totalorder %s21, 1
        %s1359 = scalar_select %p1358, %s21, 1
        %p1360 = scmp.lt.s32.totalorder %s22, 0
        %s1361 = scalar_select %p1360, %s22, 0
        %s1362 = smul.addr %s1359, 16
        %s1363 = sadd.s32 %s1361, %s1362
        %s1364 = smul.addr %s1363, 8
        %s1365 = scalar_lea.vmem %s4, %s1364
      $region48: #{dgmn2_patch_embed_forward.11} parent=43 // pred_fallthru
        _
    $region44: #{dgmn2_patch_embed_forward.11} parent=5 // pred_fallthru
      _
  $region6: #{dgmn2_patch_embed_forward.11} parent=0 // loop_footer
    %s14 = sadd.s32 1, %s10
  $region7: #{dgmn2_patch_embed_forward.11} parent=0 // loop_footer_branch
    %9 = sbr.rel target = $region3
  $region8: #{dgmn2_patch_embed_forward.11} parent=0 // loop_exit
    _

</llo_original>
